<compile_context>
chip_gen: v7x
topology: tpu7x:2x2x1
jax: 0.10.0
libtpu: 0.0.40
codegen_flags: <defaults>
</compile_context>

<pallas_src>
import functools

import jax
import jax.numpy as jnp
from jax import lax
from jax.experimental import pallas as pl
from jax.experimental.pallas import tpu as pltpu

_BIG = 1e10  # "infinity" for out-of-domain neighbours (well below sqrt(f32 max))


def eikonal3d_kernel(u0_ref, f_ref, pdlo_ref, pdhi_ref, phlo_ref, phhi_ref,
                     pwlo_ref, pwhi_ref, u_ref, *, h, D, H, W,
                     block_sweeps, max_blocks, tol):
    n_lane = H * W

    # Load once; everything below is loop-invariant except u.
    u = u0_ref[...].astype(jnp.float32)                     # (D, H*W)
    fh = f_ref[...].astype(jnp.float32) * jnp.float32(h)
    fh2 = fh * fh
    two_fh2 = 2.0 * fh2
    three_fh2 = 3.0 * fh2

    # Boundary penalties: 0 in the interior, _BIG where the neighbour in that
    # direction is out of the domain (precomputed in the wrapper).
    pdlo = pdlo_ref[...]
    pdhi = pdhi_ref[...]
    phlo = phlo_ref[...]
    phhi = phhi_ref[...]
    pwlo = pwlo_ref[...]
    pwhi = pwhi_ref[...]

    def nbr_min(uu, axis, n, step, pen_lo, pen_hi):
        # min(u[i-1], u[i+1]) along the logical axis encoded by (axis, step).
        # Rolls are circular; wrapped entries land exactly on positions whose
        # penalty is _BIG (u is always in [0, _BIG], so max() masks them).
        um = jnp.maximum(pltpu.roll(uu, step, axis=axis), pen_lo)
        up = jnp.maximum(pltpu.roll(uu, n - step, axis=axis), pen_hi)
        return jnp.minimum(um, up)

    def sweep(uu):
        a = nbr_min(uu, 0, D, 1, pdlo, pdhi)            # z: sublane roll by 1
        b = nbr_min(uu, 1, n_lane, W, phlo, phhi)       # y: lane roll by W
        c = nbr_min(uu, 1, n_lane, 1, pwlo, pwhi)       # x: lane roll by 1

        # Sort (a, b, c) -> lo <= mid <= hi with a 3-element sorting network.
        lo1 = jnp.minimum(a, b)
        hi1 = jnp.maximum(a, b)
        lo = jnp.minimum(lo1, c)
        t = jnp.maximum(lo1, c)
        mid = jnp.minimum(hi1, t)
        hi = jnp.maximum(hi1, t)

        # 1D candidate.
        x1 = lo + fh
        # 2D candidate: (x-lo)^2 + (x-mid)^2 = (f h)^2
        lm = lo - mid
        d2 = jnp.maximum(two_fh2 - lm * lm, 0.0)
        x2 = 0.5 * ((lo + mid) + jnp.sqrt(d2))
        # 3D candidate: (x-lo)^2 + (x-mid)^2 + (x-hi)^2 = (f h)^2
        s = (lo + mid) + hi
        q = jnp.maximum(s * s - 3.0 * (lo * lo + mid * mid + hi * hi) + three_fh2, 0.0)
        x3 = (s + jnp.sqrt(q)) * (1.0 / 3.0)

        cand = jnp.where(x1 <= mid, x1, jnp.where(x2 <= hi, x2, x3))
        return jnp.minimum(uu, cand)

    tol_f = jnp.float32(tol)

    def cond_fn(carry):
        _, delta, blk = carry
        return jnp.logical_and(delta > tol_f, blk < max_blocks)

    def body_fn(carry):
        u_cur, _, blk = carry
        u_new = u_cur
        for _ in range(block_sweeps):   # static unroll: LLO sees the whole block
            u_new = sweep(u_new)
        delta = jnp.max(jnp.abs(u_new - u_cur))
        return u_new, delta, blk + 1

    u_final, _, _ = lax.while_loop(
        cond_fn, body_fn, (u, jnp.float32(_BIG), jnp.int32(0)))

    u_ref[...] = u_final.astype(u_ref.dtype)


def eikonal3d(u0, f, h, *, block_sweeps=8, max_sweeps=None, tol=0.0):
    """Pallas forward of Eikonal3D: u = eikonal3d_op.forward(u0, f, h)."""
    assert u0.shape == f.shape and u0.ndim == 3
    D, H, W = u0.shape
    if max_sweeps is None:
        # Hard safety cap; the in-kernel convergence check normally exits far
        # earlier (~D+H+W sweeps).
        max_sweeps = 4 * (D + H + W)
    max_blocks = (int(max_sweeps) + int(block_sweeps) - 1) // int(block_sweeps)

    # Lane-dense packing: fold (H, W) into one trailing axis of length H*W so
    # the lane axis is (ideally) a multiple of 128 instead of a small W.
    u0_2d = u0.reshape(D, H * W)
    f_2d = f.reshape(D, H * W)

    # Boundary penalty planes ({0, _BIG}) built once outside the kernel.
    shape3 = (D, H, W)
    d_idx = lax.broadcasted_iota(jnp.int32, shape3, 0)
    h_idx = lax.broadcasted_iota(jnp.int32, shape3, 1)
    w_idx = lax.broadcasted_iota(jnp.int32, shape3, 2)

    def pen(mask3d):
        return jnp.where(mask3d, _BIG, 0.0).astype(jnp.float32).reshape(D, H * W)

    pens = (pen(d_idx == 0), pen(d_idx == D - 1),
            pen(h_idx == 0), pen(h_idx == H - 1),
            pen(w_idx == 0), pen(w_idx == W - 1))

    kernel = functools.partial(
        eikonal3d_kernel, h=float(h), D=D, H=H, W=W,
        block_sweeps=int(block_sweeps), max_blocks=int(max_blocks),
        tol=float(tol))

    # Size the scoped VMEM for the live set (u carry, fh terms, penalties,
    # sweep temporaries), with headroom below physical limits.
    vol_bytes = D * H * W * 4
    vmem_limit = int(min(100 * 2**20, max(8 * 2**20, 32 * vol_bytes)))

    full_spec = pl.BlockSpec((D, H * W), lambda: (0, 0))
    out2d = pl.pallas_call(
        kernel,
        out_shape=jax.ShapeDtypeStruct((D, H * W), u0.dtype),
        grid=(),
        in_specs=[full_spec] * 8,
        out_specs=full_spec,
        input_output_aliases={0: 0},   # u0 and u share shape/dtype; reuse buffer
        compiler_params=pltpu.CompilerParams(vmem_limit_bytes=vmem_limit),
    )(u0_2d, f_2d, *pens)
    return out2d.reshape(D, H, W)


if __name__ == "__main__":
    key = jax.random.PRNGKey(0)
    D = H = W = 16
    h = 0.1

    # u0: "infinite" travel time everywhere, 0 at the source voxel (corner).
    u0 = jnp.full((D, H, W), 1e4, dtype=jnp.float32)
    u0 = u0.at[0, 0, 0].set(0.0)
    # f: strictly positive slowness field.
    f = 1.0 + 0.5 * jax.random.uniform(key, (D, H, W), dtype=jnp.float32)

    u = eikonal3d(u0, f, h)
    jax.block_until_ready(u)

    # light sanity checks (no effect on output contract)
    assert bool(jnp.isfinite(u).all())
    assert float(u[0, 0, 0]) == 0.0
    assert bool((u[1:, :, :] > 0).all())
    assert float(u.max()) < 100.0  # converged: the front reached every voxel

    print("KERNEL_OK")
</pallas_src>

<mosaic_0001>
module attributes {stable_mosaic.version = 11 : i64} {
  func.func @eikonal3d_kernel(%arg0: memref<16x256xf32, #tpu.memory_space<vmem>>, %arg1: memref<16x256xf32, #tpu.memory_space<vmem>>, %arg2: memref<16x256xf32, #tpu.memory_space<vmem>>, %arg3: memref<16x256xf32, #tpu.memory_space<vmem>>, %arg4: memref<16x256xf32, #tpu.memory_space<vmem>>, %arg5: memref<16x256xf32, #tpu.memory_space<vmem>>, %arg6: memref<16x256xf32, #tpu.memory_space<vmem>>, %arg7: memref<16x256xf32, #tpu.memory_space<vmem>>, %arg8: memref<16x256xf32, #tpu.memory_space<vmem>>) attributes {dimension_semantics = [], scalar_prefetch = 0 : i64, scratch_operands = 0 : i64, tpu.core_type = #tpu.core_type<tc>} {
    %c0 = arith.constant 0 : index
    %c0_0 = arith.constant 0 : index
    %0 = vector.load %arg0[%c0, %c0_0] : memref<16x256xf32, #tpu.memory_space<vmem>>, vector<16x256xf32>
    %c0_1 = arith.constant 0 : index
    %c0_2 = arith.constant 0 : index
    %1 = vector.load %arg1[%c0_1, %c0_2] : memref<16x256xf32, #tpu.memory_space<vmem>>, vector<16x256xf32>
    %cst = arith.constant 1.000000e-01 : f32
    %2 = vector.broadcast %cst : f32 to vector<16x256xf32>
    %3 = arith.mulf %1, %2 : vector<16x256xf32>
    %4 = arith.mulf %3, %3 : vector<16x256xf32>
    %cst_3 = arith.constant 2.000000e+00 : f32
    %5 = vector.broadcast %cst_3 : f32 to vector<16x256xf32>
    %6 = arith.mulf %5, %4 : vector<16x256xf32>
    %cst_4 = arith.constant 3.000000e+00 : f32
    %7 = vector.broadcast %cst_4 : f32 to vector<16x256xf32>
    %8 = arith.mulf %7, %4 : vector<16x256xf32>
    %c0_5 = arith.constant 0 : index
    %c0_6 = arith.constant 0 : index
    %9 = vector.load %arg2[%c0_5, %c0_6] : memref<16x256xf32, #tpu.memory_space<vmem>>, vector<16x256xf32>
    %c0_7 = arith.constant 0 : index
    %c0_8 = arith.constant 0 : index
    %10 = vector.load %arg3[%c0_7, %c0_8] : memref<16x256xf32, #tpu.memory_space<vmem>>, vector<16x256xf32>
    %c0_9 = arith.constant 0 : index
    %c0_10 = arith.constant 0 : index
    %11 = vector.load %arg4[%c0_9, %c0_10] : memref<16x256xf32, #tpu.memory_space<vmem>>, vector<16x256xf32>
    %c0_11 = arith.constant 0 : index
    %c0_12 = arith.constant 0 : index
    %12 = vector.load %arg5[%c0_11, %c0_12] : memref<16x256xf32, #tpu.memory_space<vmem>>, vector<16x256xf32>
    %c0_13 = arith.constant 0 : index
    %c0_14 = arith.constant 0 : index
    %13 = vector.load %arg6[%c0_13, %c0_14] : memref<16x256xf32, #tpu.memory_space<vmem>>, vector<16x256xf32>
    %c0_15 = arith.constant 0 : index
    %c0_16 = arith.constant 0 : index
    %14 = vector.load %arg7[%c0_15, %c0_16] : memref<16x256xf32, #tpu.memory_space<vmem>>, vector<16x256xf32>
    %cst_17 = arith.constant 0.000000e+00 : f32
    %cst_18 = arith.constant 1.000000e+10 : f32
    %c0_i32 = arith.constant 0 : i32
    %15:3 = scf.while (%arg9 = %0, %arg10 = %cst_18, %arg11 = %c0_i32) : (vector<16x256xf32>, f32, i32) -> (vector<16x256xf32>, f32, i32) {
      %17 = arith.cmpf ogt, %arg10, %cst_17 : f32
      %c24_i32 = arith.constant 24 : i32
      %18 = arith.cmpi slt, %arg11, %c24_i32 : i32
      %19 = arith.andi %17, %18 : i1
      scf.condition(%19) %arg9, %arg10, %arg11 : vector<16x256xf32>, f32, i32
    } do {
    ^bb0(%arg9: vector<16x256xf32>, %arg10: f32, %arg11: i32):
      %c1_i32 = arith.constant 1 : i32
      %17 = tpu.dynamic_rotate %arg9 by %c1_i32 dim 0 : vector<16x256xf32>, i32 -> vector<16x256xf32>
      %18 = arith.maximumf %17, %9 : vector<16x256xf32>
      %c15_i32 = arith.constant 15 : i32
      %19 = tpu.dynamic_rotate %arg9 by %c15_i32 dim 0 : vector<16x256xf32>, i32 -> vector<16x256xf32>
      %20 = arith.maximumf %19, %10 : vector<16x256xf32>
      %21 = arith.minimumf %18, %20 : vector<16x256xf32>
      %c16_i32 = arith.constant 16 : i32
      %22 = tpu.dynamic_rotate %arg9 by %c16_i32 dim 1 : vector<16x256xf32>, i32 -> vector<16x256xf32>
      %23 = arith.maximumf %22, %11 : vector<16x256xf32>
      %c240_i32 = arith.constant 240 : i32
      %24 = tpu.dynamic_rotate %arg9 by %c240_i32 dim 1 : vector<16x256xf32>, i32 -> vector<16x256xf32>
      %25 = arith.maximumf %24, %12 : vector<16x256xf32>
      %26 = arith.minimumf %23, %25 : vector<16x256xf32>
      %c1_i32_21 = arith.constant 1 : i32
      %27 = tpu.dynamic_rotate %arg9 by %c1_i32_21 dim 1 : vector<16x256xf32>, i32 -> vector<16x256xf32>
      %28 = arith.maximumf %27, %13 : vector<16x256xf32>
      %c255_i32 = arith.constant 255 : i32
      %29 = tpu.dynamic_rotate %arg9 by %c255_i32 dim 1 : vector<16x256xf32>, i32 -> vector<16x256xf32>
      %30 = arith.maximumf %29, %14 : vector<16x256xf32>
      %31 = arith.minimumf %28, %30 : vector<16x256xf32>
      %32 = arith.minimumf %21, %26 : vector<16x256xf32>
      %33 = arith.maximumf %21, %26 : vector<16x256xf32>
      %34 = arith.minimumf %32, %31 : vector<16x256xf32>
      %35 = arith.maximumf %32, %31 : vector<16x256xf32>
      %36 = arith.minimumf %33, %35 : vector<16x256xf32>
      %37 = arith.maximumf %33, %35 : vector<16x256xf32>
      %38 = arith.addf %34, %3 : vector<16x256xf32>
      %39 = arith.subf %34, %36 : vector<16x256xf32>
      %40 = arith.mulf %39, %39 : vector<16x256xf32>
      %41 = arith.subf %6, %40 : vector<16x256xf32>
      %cst_22 = arith.constant 0.000000e+00 : f32
      %42 = vector.broadcast %cst_22 : f32 to vector<16x256xf32>
      %43 = arith.maximumf %41, %42 : vector<16x256xf32>
      %44 = arith.addf %34, %36 : vector<16x256xf32>
      %45 = math.sqrt %43 : vector<16x256xf32>
      %46 = arith.addf %44, %45 : vector<16x256xf32>
      %cst_23 = arith.constant 5.000000e-01 : f32
      %47 = vector.broadcast %cst_23 : f32 to vector<16x256xf32>
      %48 = arith.mulf %47, %46 : vector<16x256xf32>
      %49 = arith.addf %34, %36 : vector<16x256xf32>
      %50 = arith.addf %49, %37 : vector<16x256xf32>
      %51 = arith.mulf %50, %50 : vector<16x256xf32>
      %52 = arith.mulf %34, %34 : vector<16x256xf32>
      %53 = arith.mulf %36, %36 : vector<16x256xf32>
      %54 = arith.addf %52, %53 : vector<16x256xf32>
      %55 = arith.mulf %37, %37 : vector<16x256xf32>
      %56 = arith.addf %54, %55 : vector<16x256xf32>
      %cst_24 = arith.constant 3.000000e+00 : f32
      %57 = vector.broadcast %cst_24 : f32 to vector<16x256xf32>
      %58 = arith.mulf %57, %56 : vector<16x256xf32>
      %59 = arith.subf %51, %58 : vector<16x256xf32>
      %60 = arith.addf %59, %8 : vector<16x256xf32>
      %cst_25 = arith.constant 0.000000e+00 : f32
      %61 = vector.broadcast %cst_25 : f32 to vector<16x256xf32>
      %62 = arith.maximumf %60, %61 : vector<16x256xf32>
      %63 = math.sqrt %62 : vector<16x256xf32>
      %64 = arith.addf %50, %63 : vector<16x256xf32>
      %cst_26 = arith.constant 0.333333343 : f32
      %65 = vector.broadcast %cst_26 : f32 to vector<16x256xf32>
      %66 = arith.mulf %64, %65 : vector<16x256xf32>
      %67 = arith.cmpf ole, %38, %36 : vector<16x256xf32>
      %68 = arith.cmpf ole, %48, %37 : vector<16x256xf32>
      %69 = arith.select %68, %48, %66 : vector<16x256xi1>, vector<16x256xf32>
      %70 = arith.select %67, %38, %69 : vector<16x256xi1>, vector<16x256xf32>
      %71 = arith.minimumf %arg9, %70 : vector<16x256xf32>
      %c1_i32_27 = arith.constant 1 : i32
      %72 = tpu.dynamic_rotate %71 by %c1_i32_27 dim 0 : vector<16x256xf32>, i32 -> vector<16x256xf32>
      %73 = arith.maximumf %72, %9 : vector<16x256xf32>
      %c15_i32_28 = arith.constant 15 : i32
      %74 = tpu.dynamic_rotate %71 by %c15_i32_28 dim 0 : vector<16x256xf32>, i32 -> vector<16x256xf32>
      %75 = arith.maximumf %74, %10 : vector<16x256xf32>
      %76 = arith.minimumf %73, %75 : vector<16x256xf32>
      %c16_i32_29 = arith.constant 16 : i32
      %77 = tpu.dynamic_rotate %71 by %c16_i32_29 dim 1 : vector<16x256xf32>, i32 -> vector<16x256xf32>
      %78 = arith.maximumf %77, %11 : vector<16x256xf32>
      %c240_i32_30 = arith.constant 240 : i32
      %79 = tpu.dynamic_rotate %71 by %c240_i32_30 dim 1 : vector<16x256xf32>, i32 -> vector<16x256xf32>
      %80 = arith.maximumf %79, %12 : vector<16x256xf32>
      %81 = arith.minimumf %78, %80 : vector<16x256xf32>
      %c1_i32_31 = arith.constant 1 : i32
      %82 = tpu.dynamic_rotate %71 by %c1_i32_31 dim 1 : vector<16x256xf32>, i32 -> vector<16x256xf32>
      %83 = arith.maximumf %82, %13 : vector<16x256xf32>
      %c255_i32_32 = arith.constant 255 : i32
      %84 = tpu.dynamic_rotate %71 by %c255_i32_32 dim 1 : vector<16x256xf32>, i32 -> vector<16x256xf32>
      %85 = arith.maximumf %84, %14 : vector<16x256xf32>
      %86 = arith.minimumf %83, %85 : vector<16x256xf32>
      %87 = arith.minimumf %76, %81 : vector<16x256xf32>
      %88 = arith.maximumf %76, %81 : vector<16x256xf32>
      %89 = arith.minimumf %87, %86 : vector<16x256xf32>
      %90 = arith.maximumf %87, %86 : vector<16x256xf32>
      %91 = arith.minimumf %88, %90 : vector<16x256xf32>
      %92 = arith.maximumf %88, %90 : vector<16x256xf32>
      %93 = arith.addf %89, %3 : vector<16x256xf32>
      %94 = arith.subf %89, %91 : vector<16x256xf32>
      %95 = arith.mulf %94, %94 : vector<16x256xf32>
      %96 = arith.subf %6, %95 : vector<16x256xf32>
      %cst_33 = arith.constant 0.000000e+00 : f32
      %97 = vector.broadcast %cst_33 : f32 to vector<16x256xf32>
      %98 = arith.maximumf %96, %97 : vector<16x256xf32>
      %99 = arith.addf %89, %91 : vector<16x256xf32>
      %100 = math.sqrt %98 : vector<16x256xf32>
      %101 = arith.addf %99, %100 : vector<16x256xf32>
      %cst_34 = arith.constant 5.000000e-01 : f32
      %102 = vector.broadcast %cst_34 : f32 to vector<16x256xf32>
      %103 = arith.mulf %102, %101 : vector<16x256xf32>
      %104 = arith.addf %89, %91 : vector<16x256xf32>
      %105 = arith.addf %104, %92 : vector<16x256xf32>
      %106 = arith.mulf %105, %105 : vector<16x256xf32>
      %107 = arith.mulf %89, %89 : vector<16x256xf32>
      %108 = arith.mulf %91, %91 : vector<16x256xf32>
      %109 = arith.addf %107, %108 : vector<16x256xf32>
      %110 = arith.mulf %92, %92 : vector<16x256xf32>
      %111 = arith.addf %109, %110 : vector<16x256xf32>
      %cst_35 = arith.constant 3.000000e+00 : f32
      %112 = vector.broadcast %cst_35 : f32 to vector<16x256xf32>
      %113 = arith.mulf %112, %111 : vector<16x256xf32>
      %114 = arith.subf %106, %113 : vector<16x256xf32>
      %115 = arith.addf %114, %8 : vector<16x256xf32>
      %cst_36 = arith.constant 0.000000e+00 : f32
      %116 = vector.broadcast %cst_36 : f32 to vector<16x256xf32>
      %117 = arith.maximumf %115, %116 : vector<16x256xf32>
      %118 = math.sqrt %117 : vector<16x256xf32>
      %119 = arith.addf %105, %118 : vector<16x256xf32>
      %cst_37 = arith.constant 0.333333343 : f32
      %120 = vector.broadcast %cst_37 : f32 to vector<16x256xf32>
      %121 = arith.mulf %119, %120 : vector<16x256xf32>
      %122 = arith.cmpf ole, %93, %91 : vector<16x256xf32>
      %123 = arith.cmpf ole, %103, %92 : vector<16x256xf32>
      %124 = arith.select %123, %103, %121 : vector<16x256xi1>, vector<16x256xf32>
      %125 = arith.select %122, %93, %124 : vector<16x256xi1>, vector<16x256xf32>
      %126 = arith.minimumf %71, %125 : vector<16x256xf32>
      %c1_i32_38 = arith.constant 1 : i32
      %127 = tpu.dynamic_rotate %126 by %c1_i32_38 dim 0 : vector<16x256xf32>, i32 -> vector<16x256xf32>
      %128 = arith.maximumf %127, %9 : vector<16x256xf32>
      %c15_i32_39 = arith.constant 15 : i32
      %129 = tpu.dynamic_rotate %126 by %c15_i32_39 dim 0 : vector<16x256xf32>, i32 -> vector<16x256xf32>
      %130 = arith.maximumf %129, %10 : vector<16x256xf32>
      %131 = arith.minimumf %128, %130 : vector<16x256xf32>
      %c16_i32_40 = arith.constant 16 : i32
      %132 = tpu.dynamic_rotate %126 by %c16_i32_40 dim 1 : vector<16x256xf32>, i32 -> vector<16x256xf32>
      %133 = arith.maximumf %132, %11 : vector<16x256xf32>
      %c240_i32_41 = arith.constant 240 : i32
      %134 = tpu.dynamic_rotate %126 by %c240_i32_41 dim 1 : vector<16x256xf32>, i32 -> vector<16x256xf32>
      %135 = arith.maximumf %134, %12 : vector<16x256xf32>
      %136 = arith.minimumf %133, %135 : vector<16x256xf32>
      %c1_i32_42 = arith.constant 1 : i32
      %137 = tpu.dynamic_rotate %126 by %c1_i32_42 dim 1 : vector<16x256xf32>, i32 -> vector<16x256xf32>
      %138 = arith.maximumf %137, %13 : vector<16x256xf32>
      %c255_i32_43 = arith.constant 255 : i32
      %139 = tpu.dynamic_rotate %126 by %c255_i32_43 dim 1 : vector<16x256xf32>, i32 -> vector<16x256xf32>
      %140 = arith.maximumf %139, %14 : vector<16x256xf32>
      %141 = arith.minimumf %138, %140 : vector<16x256xf32>
      %142 = arith.minimumf %131, %136 : vector<16x256xf32>
      %143 = arith.maximumf %131, %136 : vector<16x256xf32>
      %144 = arith.minimumf %142, %141 : vector<16x256xf32>
      %145 = arith.maximumf %142, %141 : vector<16x256xf32>
      %146 = arith.minimumf %143, %145 : vector<16x256xf32>
      %147 = arith.maximumf %143, %145 : vector<16x256xf32>
      %148 = arith.addf %144, %3 : vector<16x256xf32>
      %149 = arith.subf %144, %146 : vector<16x256xf32>
      %150 = arith.mulf %149, %149 : vector<16x256xf32>
      %151 = arith.subf %6, %150 : vector<16x256xf32>
      %cst_44 = arith.constant 0.000000e+00 : f32
      %152 = vector.broadcast %cst_44 : f32 to vector<16x256xf32>
      %153 = arith.maximumf %151, %152 : vector<16x256xf32>
      %154 = arith.addf %144, %146 : vector<16x256xf32>
      %155 = math.sqrt %153 : vector<16x256xf32>
      %156 = arith.addf %154, %155 : vector<16x256xf32>
      %cst_45 = arith.constant 5.000000e-01 : f32
      %157 = vector.broadcast %cst_45 : f32 to vector<16x256xf32>
      %158 = arith.mulf %157, %156 : vector<16x256xf32>
      %159 = arith.addf %144, %146 : vector<16x256xf32>
      %160 = arith.addf %159, %147 : vector<16x256xf32>
      %161 = arith.mulf %160, %160 : vector<16x256xf32>
      %162 = arith.mulf %144, %144 : vector<16x256xf32>
      %163 = arith.mulf %146, %146 : vector<16x256xf32>
      %164 = arith.addf %162, %163 : vector<16x256xf32>
      %165 = arith.mulf %147, %147 : vector<16x256xf32>
      %166 = arith.addf %164, %165 : vector<16x256xf32>
      %cst_46 = arith.constant 3.000000e+00 : f32
      %167 = vector.broadcast %cst_46 : f32 to vector<16x256xf32>
      %168 = arith.mulf %167, %166 : vector<16x256xf32>
      %169 = arith.subf %161, %168 : vector<16x256xf32>
      %170 = arith.addf %169, %8 : vector<16x256xf32>
      %cst_47 = arith.constant 0.000000e+00 : f32
      %171 = vector.broadcast %cst_47 : f32 to vector<16x256xf32>
      %172 = arith.maximumf %170, %171 : vector<16x256xf32>
      %173 = math.sqrt %172 : vector<16x256xf32>
      %174 = arith.addf %160, %173 : vector<16x256xf32>
      %cst_48 = arith.constant 0.333333343 : f32
      %175 = vector.broadcast %cst_48 : f32 to vector<16x256xf32>
      %176 = arith.mulf %174, %175 : vector<16x256xf32>
      %177 = arith.cmpf ole, %148, %146 : vector<16x256xf32>
      %178 = arith.cmpf ole, %158, %147 : vector<16x256xf32>
      %179 = arith.select %178, %158, %176 : vector<16x256xi1>, vector<16x256xf32>
      %180 = arith.select %177, %148, %179 : vector<16x256xi1>, vector<16x256xf32>
      %181 = arith.minimumf %126, %180 : vector<16x256xf32>
      %c1_i32_49 = arith.constant 1 : i32
      %182 = tpu.dynamic_rotate %181 by %c1_i32_49 dim 0 : vector<16x256xf32>, i32 -> vector<16x256xf32>
      %183 = arith.maximumf %182, %9 : vector<16x256xf32>
      %c15_i32_50 = arith.constant 15 : i32
      %184 = tpu.dynamic_rotate %181 by %c15_i32_50 dim 0 : vector<16x256xf32>, i32 -> vector<16x256xf32>
      %185 = arith.maximumf %184, %10 : vector<16x256xf32>
      %186 = arith.minimumf %183, %185 : vector<16x256xf32>
      %c16_i32_51 = arith.constant 16 : i32
      %187 = tpu.dynamic_rotate %181 by %c16_i32_51 dim 1 : vector<16x256xf32>, i32 -> vector<16x256xf32>
      %188 = arith.maximumf %187, %11 : vector<16x256xf32>
      %c240_i32_52 = arith.constant 240 : i32
      %189 = tpu.dynamic_rotate %181 by %c240_i32_52 dim 1 : vector<16x256xf32>, i32 -> vector<16x256xf32>
      %190 = arith.maximumf %189, %12 : vector<16x256xf32>
      %191 = arith.minimumf %188, %190 : vector<16x256xf32>
      %c1_i32_53 = arith.constant 1 : i32
      %192 = tpu.dynamic_rotate %181 by %c1_i32_53 dim 1 : vector<16x256xf32>, i32 -> vector<16x256xf32>
      %193 = arith.maximumf %192, %13 : vector<16x256xf32>
      %c255_i32_54 = arith.constant 255 : i32
      %194 = tpu.dynamic_rotate %181 by %c255_i32_54 dim 1 : vector<16x256xf32>, i32 -> vector<16x256xf32>
      %195 = arith.maximumf %194, %14 : vector<16x256xf32>
      %196 = arith.minimumf %193, %195 : vector<16x256xf32>
      %197 = arith.minimumf %186, %191 : vector<16x256xf32>
      %198 = arith.maximumf %186, %191 : vector<16x256xf32>
      %199 = arith.minimumf %197, %196 : vector<16x256xf32>
      %200 = arith.maximumf %197, %196 : vector<16x256xf32>
      %201 = arith.minimumf %198, %200 : vector<16x256xf32>
      %202 = arith.maximumf %198, %200 : vector<16x256xf32>
      %203 = arith.addf %199, %3 : vector<16x256xf32>
      %204 = arith.subf %199, %201 : vector<16x256xf32>
      %205 = arith.mulf %204, %204 : vector<16x256xf32>
      %206 = arith.subf %6, %205 : vector<16x256xf32>
      %cst_55 = arith.constant 0.000000e+00 : f32
      %207 = vector.broadcast %cst_55 : f32 to vector<16x256xf32>
      %208 = arith.maximumf %206, %207 : vector<16x256xf32>
      %209 = arith.addf %199, %201 : vector<16x256xf32>
      %210 = math.sqrt %208 : vector<16x256xf32>
      %211 = arith.addf %209, %210 : vector<16x256xf32>
      %cst_56 = arith.constant 5.000000e-01 : f32
      %212 = vector.broadcast %cst_56 : f32 to vector<16x256xf32>
      %213 = arith.mulf %212, %211 : vector<16x256xf32>
      %214 = arith.addf %199, %201 : vector<16x256xf32>
      %215 = arith.addf %214, %202 : vector<16x256xf32>
      %216 = arith.mulf %215, %215 : vector<16x256xf32>
      %217 = arith.mulf %199, %199 : vector<16x256xf32>
      %218 = arith.mulf %201, %201 : vector<16x256xf32>
      %219 = arith.addf %217, %218 : vector<16x256xf32>
      %220 = arith.mulf %202, %202 : vector<16x256xf32>
      %221 = arith.addf %219, %220 : vector<16x256xf32>
      %cst_57 = arith.constant 3.000000e+00 : f32
      %222 = vector.broadcast %cst_57 : f32 to vector<16x256xf32>
      %223 = arith.mulf %222, %221 : vector<16x256xf32>
      %224 = arith.subf %216, %223 : vector<16x256xf32>
      %225 = arith.addf %224, %8 : vector<16x256xf32>
      %cst_58 = arith.constant 0.000000e+00 : f32
      %226 = vector.broadcast %cst_58 : f32 to vector<16x256xf32>
      %227 = arith.maximumf %225, %226 : vector<16x256xf32>
      %228 = math.sqrt %227 : vector<16x256xf32>
      %229 = arith.addf %215, %228 : vector<16x256xf32>
      %cst_59 = arith.constant 0.333333343 : f32
      %230 = vector.broadcast %cst_59 : f32 to vector<16x256xf32>
      %231 = arith.mulf %229, %230 : vector<16x256xf32>
      %232 = arith.cmpf ole, %203, %201 : vector<16x256xf32>
      %233 = arith.cmpf ole, %213, %202 : vector<16x256xf32>
      %234 = arith.select %233, %213, %231 : vector<16x256xi1>, vector<16x256xf32>
      %235 = arith.select %232, %203, %234 : vector<16x256xi1>, vector<16x256xf32>
      %236 = arith.minimumf %181, %235 : vector<16x256xf32>
      %c1_i32_60 = arith.constant 1 : i32
      %237 = tpu.dynamic_rotate %236 by %c1_i32_60 dim 0 : vector<16x256xf32>, i32 -> vector<16x256xf32>
      %238 = arith.maximumf %237, %9 : vector<16x256xf32>
      %c15_i32_61 = arith.constant 15 : i32
      %239 = tpu.dynamic_rotate %236 by %c15_i32_61 dim 0 : vector<16x256xf32>, i32 -> vector<16x256xf32>
      %240 = arith.maximumf %239, %10 : vector<16x256xf32>
      %241 = arith.minimumf %238, %240 : vector<16x256xf32>
      %c16_i32_62 = arith.constant 16 : i32
      %242 = tpu.dynamic_rotate %236 by %c16_i32_62 dim 1 : vector<16x256xf32>, i32 -> vector<16x256xf32>
      %243 = arith.maximumf %242, %11 : vector<16x256xf32>
      %c240_i32_63 = arith.constant 240 : i32
      %244 = tpu.dynamic_rotate %236 by %c240_i32_63 dim 1 : vector<16x256xf32>, i32 -> vector<16x256xf32>
      %245 = arith.maximumf %244, %12 : vector<16x256xf32>
      %246 = arith.minimumf %243, %245 : vector<16x256xf32>
      %c1_i32_64 = arith.constant 1 : i32
      %247 = tpu.dynamic_rotate %236 by %c1_i32_64 dim 1 : vector<16x256xf32>, i32 -> vector<16x256xf32>
      %248 = arith.maximumf %247, %13 : vector<16x256xf32>
      %c255_i32_65 = arith.constant 255 : i32
      %249 = tpu.dynamic_rotate %236 by %c255_i32_65 dim 1 : vector<16x256xf32>, i32 -> vector<16x256xf32>
      %250 = arith.maximumf %249, %14 : vector<16x256xf32>
      %251 = arith.minimumf %248, %250 : vector<16x256xf32>
      %252 = arith.minimumf %241, %246 : vector<16x256xf32>
      %253 = arith.maximumf %241, %246 : vector<16x256xf32>
      %254 = arith.minimumf %252, %251 : vector<16x256xf32>
      %255 = arith.maximumf %252, %251 : vector<16x256xf32>
      %256 = arith.minimumf %253, %255 : vector<16x256xf32>
      %257 = arith.maximumf %253, %255 : vector<16x256xf32>
      %258 = arith.addf %254, %3 : vector<16x256xf32>
      %259 = arith.subf %254, %256 : vector<16x256xf32>
      %260 = arith.mulf %259, %259 : vector<16x256xf32>
      %261 = arith.subf %6, %260 : vector<16x256xf32>
      %cst_66 = arith.constant 0.000000e+00 : f32
      %262 = vector.broadcast %cst_66 : f32 to vector<16x256xf32>
      %263 = arith.maximumf %261, %262 : vector<16x256xf32>
      %264 = arith.addf %254, %256 : vector<16x256xf32>
      %265 = math.sqrt %263 : vector<16x256xf32>
      %266 = arith.addf %264, %265 : vector<16x256xf32>
      %cst_67 = arith.constant 5.000000e-01 : f32
      %267 = vector.broadcast %cst_67 : f32 to vector<16x256xf32>
      %268 = arith.mulf %267, %266 : vector<16x256xf32>
      %269 = arith.addf %254, %256 : vector<16x256xf32>
      %270 = arith.addf %269, %257 : vector<16x256xf32>
      %271 = arith.mulf %270, %270 : vector<16x256xf32>
      %272 = arith.mulf %254, %254 : vector<16x256xf32>
      %273 = arith.mulf %256, %256 : vector<16x256xf32>
      %274 = arith.addf %272, %273 : vector<16x256xf32>
      %275 = arith.mulf %257, %257 : vector<16x256xf32>
      %276 = arith.addf %274, %275 : vector<16x256xf32>
      %cst_68 = arith.constant 3.000000e+00 : f32
      %277 = vector.broadcast %cst_68 : f32 to vector<16x256xf32>
      %278 = arith.mulf %277, %276 : vector<16x256xf32>
      %279 = arith.subf %271, %278 : vector<16x256xf32>
      %280 = arith.addf %279, %8 : vector<16x256xf32>
      %cst_69 = arith.constant 0.000000e+00 : f32
      %281 = vector.broadcast %cst_69 : f32 to vector<16x256xf32>
      %282 = arith.maximumf %280, %281 : vector<16x256xf32>
      %283 = math.sqrt %282 : vector<16x256xf32>
      %284 = arith.addf %270, %283 : vector<16x256xf32>
      %cst_70 = arith.constant 0.333333343 : f32
      %285 = vector.broadcast %cst_70 : f32 to vector<16x256xf32>
      %286 = arith.mulf %284, %285 : vector<16x256xf32>
      %287 = arith.cmpf ole, %258, %256 : vector<16x256xf32>
      %288 = arith.cmpf ole, %268, %257 : vector<16x256xf32>
      %289 = arith.select %288, %268, %286 : vector<16x256xi1>, vector<16x256xf32>
      %290 = arith.select %287, %258, %289 : vector<16x256xi1>, vector<16x256xf32>
      %291 = arith.minimumf %236, %290 : vector<16x256xf32>
      %c1_i32_71 = arith.constant 1 : i32
      %292 = tpu.dynamic_rotate %291 by %c1_i32_71 dim 0 : vector<16x256xf32>, i32 -> vector<16x256xf32>
      %293 = arith.maximumf %292, %9 : vector<16x256xf32>
      %c15_i32_72 = arith.constant 15 : i32
      %294 = tpu.dynamic_rotate %291 by %c15_i32_72 dim 0 : vector<16x256xf32>, i32 -> vector<16x256xf32>
      %295 = arith.maximumf %294, %10 : vector<16x256xf32>
      %296 = arith.minimumf %293, %295 : vector<16x256xf32>
      %c16_i32_73 = arith.constant 16 : i32
      %297 = tpu.dynamic_rotate %291 by %c16_i32_73 dim 1 : vector<16x256xf32>, i32 -> vector<16x256xf32>
      %298 = arith.maximumf %297, %11 : vector<16x256xf32>
      %c240_i32_74 = arith.constant 240 : i32
      %299 = tpu.dynamic_rotate %291 by %c240_i32_74 dim 1 : vector<16x256xf32>, i32 -> vector<16x256xf32>
      %300 = arith.maximumf %299, %12 : vector<16x256xf32>
      %301 = arith.minimumf %298, %300 : vector<16x256xf32>
      %c1_i32_75 = arith.constant 1 : i32
      %302 = tpu.dynamic_rotate %291 by %c1_i32_75 dim 1 : vector<16x256xf32>, i32 -> vector<16x256xf32>
      %303 = arith.maximumf %302, %13 : vector<16x256xf32>
      %c255_i32_76 = arith.constant 255 : i32
      %304 = tpu.dynamic_rotate %291 by %c255_i32_76 dim 1 : vector<16x256xf32>, i32 -> vector<16x256xf32>
      %305 = arith.maximumf %304, %14 : vector<16x256xf32>
      %306 = arith.minimumf %303, %305 : vector<16x256xf32>
      %307 = arith.minimumf %296, %301 : vector<16x256xf32>
      %308 = arith.maximumf %296, %301 : vector<16x256xf32>
      %309 = arith.minimumf %307, %306 : vector<16x256xf32>
      %310 = arith.maximumf %307, %306 : vector<16x256xf32>
      %311 = arith.minimumf %308, %310 : vector<16x256xf32>
      %312 = arith.maximumf %308, %310 : vector<16x256xf32>
      %313 = arith.addf %309, %3 : vector<16x256xf32>
      %314 = arith.subf %309, %311 : vector<16x256xf32>
      %315 = arith.mulf %314, %314 : vector<16x256xf32>
      %316 = arith.subf %6, %315 : vector<16x256xf32>
      %cst_77 = arith.constant 0.000000e+00 : f32
      %317 = vector.broadcast %cst_77 : f32 to vector<16x256xf32>
      %318 = arith.maximumf %316, %317 : vector<16x256xf32>
      %319 = arith.addf %309, %311 : vector<16x256xf32>
      %320 = math.sqrt %318 : vector<16x256xf32>
      %321 = arith.addf %319, %320 : vector<16x256xf32>
      %cst_78 = arith.constant 5.000000e-01 : f32
      %322 = vector.broadcast %cst_78 : f32 to vector<16x256xf32>
      %323 = arith.mulf %322, %321 : vector<16x256xf32>
      %324 = arith.addf %309, %311 : vector<16x256xf32>
      %325 = arith.addf %324, %312 : vector<16x256xf32>
      %326 = arith.mulf %325, %325 : vector<16x256xf32>
      %327 = arith.mulf %309, %309 : vector<16x256xf32>
      %328 = arith.mulf %311, %311 : vector<16x256xf32>
      %329 = arith.addf %327, %328 : vector<16x256xf32>
      %330 = arith.mulf %312, %312 : vector<16x256xf32>
      %331 = arith.addf %329, %330 : vector<16x256xf32>
      %cst_79 = arith.constant 3.000000e+00 : f32
      %332 = vector.broadcast %cst_79 : f32 to vector<16x256xf32>
      %333 = arith.mulf %332, %331 : vector<16x256xf32>
      %334 = arith.subf %326, %333 : vector<16x256xf32>
      %335 = arith.addf %334, %8 : vector<16x256xf32>
      %cst_80 = arith.constant 0.000000e+00 : f32
      %336 = vector.broadcast %cst_80 : f32 to vector<16x256xf32>
      %337 = arith.maximumf %335, %336 : vector<16x256xf32>
      %338 = math.sqrt %337 : vector<16x256xf32>
      %339 = arith.addf %325, %338 : vector<16x256xf32>
      %cst_81 = arith.constant 0.333333343 : f32
      %340 = vector.broadcast %cst_81 : f32 to vector<16x256xf32>
      %341 = arith.mulf %339, %340 : vector<16x256xf32>
      %342 = arith.cmpf ole, %313, %311 : vector<16x256xf32>
      %343 = arith.cmpf ole, %323, %312 : vector<16x256xf32>
      %344 = arith.select %343, %323, %341 : vector<16x256xi1>, vector<16x256xf32>
      %345 = arith.select %342, %313, %344 : vector<16x256xi1>, vector<16x256xf32>
      %346 = arith.minimumf %291, %345 : vector<16x256xf32>
      %c1_i32_82 = arith.constant 1 : i32
      %347 = tpu.dynamic_rotate %346 by %c1_i32_82 dim 0 : vector<16x256xf32>, i32 -> vector<16x256xf32>
      %348 = arith.maximumf %347, %9 : vector<16x256xf32>
      %c15_i32_83 = arith.constant 15 : i32
      %349 = tpu.dynamic_rotate %346 by %c15_i32_83 dim 0 : vector<16x256xf32>, i32 -> vector<16x256xf32>
      %350 = arith.maximumf %349, %10 : vector<16x256xf32>
      %351 = arith.minimumf %348, %350 : vector<16x256xf32>
      %c16_i32_84 = arith.constant 16 : i32
      %352 = tpu.dynamic_rotate %346 by %c16_i32_84 dim 1 : vector<16x256xf32>, i32 -> vector<16x256xf32>
      %353 = arith.maximumf %352, %11 : vector<16x256xf32>
      %c240_i32_85 = arith.constant 240 : i32
      %354 = tpu.dynamic_rotate %346 by %c240_i32_85 dim 1 : vector<16x256xf32>, i32 -> vector<16x256xf32>
      %355 = arith.maximumf %354, %12 : vector<16x256xf32>
      %356 = arith.minimumf %353, %355 : vector<16x256xf32>
      %c1_i32_86 = arith.constant 1 : i32
      %357 = tpu.dynamic_rotate %346 by %c1_i32_86 dim 1 : vector<16x256xf32>, i32 -> vector<16x256xf32>
      %358 = arith.maximumf %357, %13 : vector<16x256xf32>
      %c255_i32_87 = arith.constant 255 : i32
      %359 = tpu.dynamic_rotate %346 by %c255_i32_87 dim 1 : vector<16x256xf32>, i32 -> vector<16x256xf32>
      %360 = arith.maximumf %359, %14 : vector<16x256xf32>
      %361 = arith.minimumf %358, %360 : vector<16x256xf32>
      %362 = arith.minimumf %351, %356 : vector<16x256xf32>
      %363 = arith.maximumf %351, %356 : vector<16x256xf32>
      %364 = arith.minimumf %362, %361 : vector<16x256xf32>
      %365 = arith.maximumf %362, %361 : vector<16x256xf32>
      %366 = arith.minimumf %363, %365 : vector<16x256xf32>
      %367 = arith.maximumf %363, %365 : vector<16x256xf32>
      %368 = arith.addf %364, %3 : vector<16x256xf32>
      %369 = arith.subf %364, %366 : vector<16x256xf32>
      %370 = arith.mulf %369, %369 : vector<16x256xf32>
      %371 = arith.subf %6, %370 : vector<16x256xf32>
      %cst_88 = arith.constant 0.000000e+00 : f32
      %372 = vector.broadcast %cst_88 : f32 to vector<16x256xf32>
      %373 = arith.maximumf %371, %372 : vector<16x256xf32>
      %374 = arith.addf %364, %366 : vector<16x256xf32>
      %375 = math.sqrt %373 : vector<16x256xf32>
      %376 = arith.addf %374, %375 : vector<16x256xf32>
      %cst_89 = arith.constant 5.000000e-01 : f32
      %377 = vector.broadcast %cst_89 : f32 to vector<16x256xf32>
      %378 = arith.mulf %377, %376 : vector<16x256xf32>
      %379 = arith.addf %364, %366 : vector<16x256xf32>
      %380 = arith.addf %379, %367 : vector<16x256xf32>
      %381 = arith.mulf %380, %380 : vector<16x256xf32>
      %382 = arith.mulf %364, %364 : vector<16x256xf32>
      %383 = arith.mulf %366, %366 : vector<16x256xf32>
      %384 = arith.addf %382, %383 : vector<16x256xf32>
      %385 = arith.mulf %367, %367 : vector<16x256xf32>
      %386 = arith.addf %384, %385 : vector<16x256xf32>
      %cst_90 = arith.constant 3.000000e+00 : f32
      %387 = vector.broadcast %cst_90 : f32 to vector<16x256xf32>
      %388 = arith.mulf %387, %386 : vector<16x256xf32>
      %389 = arith.subf %381, %388 : vector<16x256xf32>
      %390 = arith.addf %389, %8 : vector<16x256xf32>
      %cst_91 = arith.constant 0.000000e+00 : f32
      %391 = vector.broadcast %cst_91 : f32 to vector<16x256xf32>
      %392 = arith.maximumf %390, %391 : vector<16x256xf32>
      %393 = math.sqrt %392 : vector<16x256xf32>
      %394 = arith.addf %380, %393 : vector<16x256xf32>
      %cst_92 = arith.constant 0.333333343 : f32
      %395 = vector.broadcast %cst_92 : f32 to vector<16x256xf32>
      %396 = arith.mulf %394, %395 : vector<16x256xf32>
      %397 = arith.cmpf ole, %368, %366 : vector<16x256xf32>
      %398 = arith.cmpf ole, %378, %367 : vector<16x256xf32>
      %399 = arith.select %398, %378, %396 : vector<16x256xi1>, vector<16x256xf32>
      %400 = arith.select %397, %368, %399 : vector<16x256xi1>, vector<16x256xf32>
      %401 = arith.minimumf %346, %400 : vector<16x256xf32>
      %c1_i32_93 = arith.constant 1 : i32
      %402 = tpu.dynamic_rotate %401 by %c1_i32_93 dim 0 : vector<16x256xf32>, i32 -> vector<16x256xf32>
      %403 = arith.maximumf %402, %9 : vector<16x256xf32>
      %c15_i32_94 = arith.constant 15 : i32
      %404 = tpu.dynamic_rotate %401 by %c15_i32_94 dim 0 : vector<16x256xf32>, i32 -> vector<16x256xf32>
      %405 = arith.maximumf %404, %10 : vector<16x256xf32>
      %406 = arith.minimumf %403, %405 : vector<16x256xf32>
      %c16_i32_95 = arith.constant 16 : i32
      %407 = tpu.dynamic_rotate %401 by %c16_i32_95 dim 1 : vector<16x256xf32>, i32 -> vector<16x256xf32>
      %408 = arith.maximumf %407, %11 : vector<16x256xf32>
      %c240_i32_96 = arith.constant 240 : i32
      %409 = tpu.dynamic_rotate %401 by %c240_i32_96 dim 1 : vector<16x256xf32>, i32 -> vector<16x256xf32>
      %410 = arith.maximumf %409, %12 : vector<16x256xf32>
      %411 = arith.minimumf %408, %410 : vector<16x256xf32>
      %c1_i32_97 = arith.constant 1 : i32
      %412 = tpu.dynamic_rotate %401 by %c1_i32_97 dim 1 : vector<16x256xf32>, i32 -> vector<16x256xf32>
      %413 = arith.maximumf %412, %13 : vector<16x256xf32>
      %c255_i32_98 = arith.constant 255 : i32
      %414 = tpu.dynamic_rotate %401 by %c255_i32_98 dim 1 : vector<16x256xf32>, i32 -> vector<16x256xf32>
      %415 = arith.maximumf %414, %14 : vector<16x256xf32>
      %416 = arith.minimumf %413, %415 : vector<16x256xf32>
      %417 = arith.minimumf %406, %411 : vector<16x256xf32>
      %418 = arith.maximumf %406, %411 : vector<16x256xf32>
      %419 = arith.minimumf %417, %416 : vector<16x256xf32>
      %420 = arith.maximumf %417, %416 : vector<16x256xf32>
      %421 = arith.minimumf %418, %420 : vector<16x256xf32>
      %422 = arith.maximumf %418, %420 : vector<16x256xf32>
      %423 = arith.addf %419, %3 : vector<16x256xf32>
      %424 = arith.subf %419, %421 : vector<16x256xf32>
      %425 = arith.mulf %424, %424 : vector<16x256xf32>
      %426 = arith.subf %6, %425 : vector<16x256xf32>
      %cst_99 = arith.constant 0.000000e+00 : f32
      %427 = vector.broadcast %cst_99 : f32 to vector<16x256xf32>
      %428 = arith.maximumf %426, %427 : vector<16x256xf32>
      %429 = arith.addf %419, %421 : vector<16x256xf32>
      %430 = math.sqrt %428 : vector<16x256xf32>
      %431 = arith.addf %429, %430 : vector<16x256xf32>
      %cst_100 = arith.constant 5.000000e-01 : f32
      %432 = vector.broadcast %cst_100 : f32 to vector<16x256xf32>
      %433 = arith.mulf %432, %431 : vector<16x256xf32>
      %434 = arith.addf %419, %421 : vector<16x256xf32>
      %435 = arith.addf %434, %422 : vector<16x256xf32>
      %436 = arith.mulf %435, %435 : vector<16x256xf32>
      %437 = arith.mulf %419, %419 : vector<16x256xf32>
      %438 = arith.mulf %421, %421 : vector<16x256xf32>
      %439 = arith.addf %437, %438 : vector<16x256xf32>
      %440 = arith.mulf %422, %422 : vector<16x256xf32>
      %441 = arith.addf %439, %440 : vector<16x256xf32>
      %cst_101 = arith.constant 3.000000e+00 : f32
      %442 = vector.broadcast %cst_101 : f32 to vector<16x256xf32>
      %443 = arith.mulf %442, %441 : vector<16x256xf32>
      %444 = arith.subf %436, %443 : vector<16x256xf32>
      %445 = arith.addf %444, %8 : vector<16x256xf32>
      %cst_102 = arith.constant 0.000000e+00 : f32
      %446 = vector.broadcast %cst_102 : f32 to vector<16x256xf32>
      %447 = arith.maximumf %445, %446 : vector<16x256xf32>
      %448 = math.sqrt %447 : vector<16x256xf32>
      %449 = arith.addf %435, %448 : vector<16x256xf32>
      %cst_103 = arith.constant 0.333333343 : f32
      %450 = vector.broadcast %cst_103 : f32 to vector<16x256xf32>
      %451 = arith.mulf %449, %450 : vector<16x256xf32>
      %452 = arith.cmpf ole, %423, %421 : vector<16x256xf32>
      %453 = arith.cmpf ole, %433, %422 : vector<16x256xf32>
      %454 = arith.select %453, %433, %451 : vector<16x256xi1>, vector<16x256xf32>
      %455 = arith.select %452, %423, %454 : vector<16x256xi1>, vector<16x256xf32>
      %456 = arith.minimumf %401, %455 : vector<16x256xf32>
      %457 = arith.subf %456, %arg9 : vector<16x256xf32>
      %458 = math.absf %457 : vector<16x256xf32>
      %459 = vector.shape_cast %458 : vector<16x256xf32> to vector<1x16x256xf32>
      %cst_104 = arith.constant dense<0xFF800000> : vector<1xf32>
      %460 = vector.multi_reduction <maximumf>, %459, %cst_104 [1, 2] : vector<1x16x256xf32> to vector<1xf32>
      %461 = vector.shape_cast %460 : vector<1xf32> to vector<1x1x1xf32>
      %462 = vector.extract %461[0, 0, 0] : f32 from vector<1x1x1xf32>
      %c1_i32_105 = arith.constant 1 : i32
      %463 = arith.addi %arg11, %c1_i32_105 : i32
      scf.yield %456, %462, %463 : vector<16x256xf32>, f32, i32
    }
    %c0_19 = arith.constant 0 : index
    %c0_20 = arith.constant 0 : index
    %16 = vector.load %arg8[%c0_19, %c0_20] : memref<16x256xf32, #tpu.memory_space<vmem>>, vector<16x256xf32>
    tpu.vector_store %arg8[%c0_19, %c0_20], %15#0 {strides = array<i32>} : memref<16x256xf32, #tpu.memory_space<vmem>>, vector<16x256xf32>,
    return
  }
}

</mosaic_0001>

<llo_original>
// kernel: tpu_custom_call.1
$region0: #{tpu_custom_call.1}
  #allocation0 [shape = 'u32[]', space=smem, size = 0x4, offset = 0x4, fixed_abs, tag = 'smem constant byte address 0x4 - core index']
  #allocation1 [shape = 'u32[144,128]{1,0:T(1,128)}', space=vmem, size = 0x12000, scoped, tag = 'internal scratch']
  %s0 = inlined_call_operand.hbm [shape: f32[16,256], index: 0, kind: input, shape index: {}, may-alias: {0,8}]
  %s1 = inlined_call_operand.vmem [shape: f32[16,256], index: 1, kind: input, shape index: {}]
  %s2 = inlined_call_operand.vmem [shape: f32[16,256], index: 2, kind: input, shape index: {}]
  %s3 = inlined_call_operand.hbm [shape: f32[16,256], index: 3, kind: input, shape index: {}]
  %s4 = inlined_call_operand.hbm [shape: f32[16,256], index: 4, kind: input, shape index: {}]
  %s5 = inlined_call_operand.hbm [shape: f32[16,256], index: 5, kind: input, shape index: {}]
  %s6 = inlined_call_operand.hbm [shape: f32[16,256], index: 6, kind: input, shape index: {}]
  %s7 = inlined_call_operand.hbm [shape: f32[16,256], index: 7, kind: input, shape index: {}]
  %s8 = inlined_call_operand.hbm [shape: f32[16,256], index: 8, kind: output, shape index: {}, may-alias: {0,8}]
  %s9 = sld [smem:[#allocation0]]
  $region73: #{tpu_custom_call.1} parent=0
    _
  %s11 = ssub.s32 1, %s9
  %s12 = scalar_select 0, %s11, %s9
  $region1: #{tpu_custom_call.1} parent=0
    #allocation2 [shape = 'u8[16384]{0}', space=vmem, size = 0x4000, scoped, tag = 'input window, operand 0, single buffered']
    #allocation3 [shape = 's32[1]{0}', space=sflag, size = 0x4, scoped, tag = 'scoped memory for tpu_custom_call.1']
    #allocation4 [shape = 's32[1]{0}', space=sflag, size = 0x4, scoped, tag = 'scoped memory for tpu_custom_call.1']
    #allocation5 [shape = 'u8[16384]{0}', space=vmem, size = 0x4000, scoped, tag = 'input window, operand 3, single buffered']
    #allocation6 [shape = 's32[1]{0}', space=sflag, size = 0x4, scoped, tag = 'scoped memory for tpu_custom_call.1']
    #allocation7 [shape = 'u8[16384]{0}', space=vmem, size = 0x4000, scoped, tag = 'input window, operand 4, single buffered']
    #allocation8 [shape = 'u8[16384]{0}', space=vmem, size = 0x4000, scoped, tag = 'input window, operand 5, single buffered']
    #allocation9 [shape = 's32[1]{0}', space=sflag, size = 0x4, scoped, tag = 'scoped memory for tpu_custom_call.1']
    #allocation10 [shape = 'u8[16384]{0}', space=vmem, size = 0x4000, scoped, tag = 'input window, operand 6, single buffered']
    #allocation11 [shape = 'u8[16384]{0}', space=vmem, size = 0x4000, scoped, tag = 'input window, operand 7, single buffered']
    #allocation12 [shape = 's32[1]{0}', space=sflag, size = 0x4, scoped, tag = 'scoped memory for tpu_custom_call.1']
    #allocation13 [shape = 'u8[16384]{0}', space=vmem, size = 0x4000, scoped, tag = 'output window, operand 0, single buffered']
    %13 = vsyncpa [#allocation3], 0
    %14 = vsyncpa [#allocation6], 0
    %15 = vsyncpa [#allocation9], 0
    %16 = vsyncpa [#allocation12], 0
    %17 = vsyncpa [#allocation4], 0
    // Predicated region
    $region2: #{tpu_custom_call.1} parent=1 // pred_check
      _
    $region3: #{tpu_custom_call.1} parent=1 // pred_check_branch
      %19 = sbr.rel (0) target = $region5
    $region4: #{tpu_custom_call.1} parent=1 // pred_region
      %s21 = ssub.s32 512, 512
      %22 = vsyncadd [#allocation3], %s21
      %s23 = sshll.u32 [#allocation2], 4
      %s24 = int_to_ptr.vmem [resolvable:$true] %s23
      %29 = dma.hbm_to_vmem [thread:$0]  %s0, 512, %s24, [#allocation3], 256, 256, 16
    $region5: #{tpu_custom_call.1} parent=1 // pred_fallthru
      _
    // Predicated region
    $region6: #{tpu_custom_call.1} parent=1 // pred_check
      _
    $region7: #{tpu_custom_call.1} parent=1 // pred_check_branch
      %31 = sbr.rel (0) target = $region9
    $region8: #{tpu_custom_call.1} parent=1 // pred_region
      _
    $region9: #{tpu_custom_call.1} parent=1 // pred_fallthru
      _
    // Predicated region
    $region10: #{tpu_custom_call.1} parent=1 // pred_check
      _
    $region11: #{tpu_custom_call.1} parent=1 // pred_check_branch
      %33 = sbr.rel (0) target = $region13
    $region12: #{tpu_custom_call.1} parent=1 // pred_region
      _
    $region13: #{tpu_custom_call.1} parent=1 // pred_fallthru
      _
    // Predicated region
    $region14: #{tpu_custom_call.1} parent=1 // pred_check
      _
    $region15: #{tpu_custom_call.1} parent=1 // pred_check_branch
      %35 = sbr.rel (0) target = $region17
    $region16: #{tpu_custom_call.1} parent=1 // pred_region
      %s37 = ssub.s32 512, 512
      %38 = vsyncadd [#allocation6], %s37
      %s39 = sshll.u32 [#allocation5], 4
      %s40 = int_to_ptr.vmem [resolvable:$true] %s39
      %45 = dma.hbm_to_vmem [thread:$0]  %s3, 512, %s40, [#allocation6], 256, 256, 16
    $region17: #{tpu_custom_call.1} parent=1 // pred_fallthru
      _
    // Predicated region
    $region18: #{tpu_custom_call.1} parent=1 // pred_check
      _
    $region19: #{tpu_custom_call.1} parent=1 // pred_check_branch
      %47 = sbr.rel (0) target = $region21
    $region20: #{tpu_custom_call.1} parent=1 // pred_region
      %s49 = ssub.s32 512, 512
      %50 = vsyncadd [#allocation6], %s49
      %s51 = sshll.u32 [#allocation7], 4
      %s52 = int_to_ptr.vmem [resolvable:$true] %s51
      %57 = dma.hbm_to_vmem [thread:$0]  %s4, 512, %s52, [#allocation6], 256, 256, 16
    $region21: #{tpu_custom_call.1} parent=1 // pred_fallthru
      _
    // Predicated region
    $region22: #{tpu_custom_call.1} parent=1 // pred_check
      _
    $region23: #{tpu_custom_call.1} parent=1 // pred_check_branch
      %59 = sbr.rel (0) target = $region25
    $region24: #{tpu_custom_call.1} parent=1 // pred_region
      %s61 = ssub.s32 512, 512
      %62 = vsyncadd [#allocation9], %s61
      %s63 = sshll.u32 [#allocation8], 4
      %s64 = int_to_ptr.vmem [resolvable:$true] %s63
      %69 = dma.hbm_to_vmem [thread:$0]  %s5, 512, %s64, [#allocation9], 256, 256, 16
    $region25: #{tpu_custom_call.1} parent=1 // pred_fallthru
      _
    // Predicated region
    $region26: #{tpu_custom_call.1} parent=1 // pred_check
      _
    $region27: #{tpu_custom_call.1} parent=1 // pred_check_branch
      %71 = sbr.rel (0) target = $region29
    $region28: #{tpu_custom_call.1} parent=1 // pred_region
      %s73 = ssub.s32 512, 512
      %74 = vsyncadd [#allocation9], %s73
      %s75 = sshll.u32 [#allocation10], 4
      %s76 = int_to_ptr.vmem [resolvable:$true] %s75
      %81 = dma.hbm_to_vmem [thread:$0]  %s6, 512, %s76, [#allocation9], 256, 256, 16
    $region29: #{tpu_custom_call.1} parent=1 // pred_fallthru
      _
    // Predicated region
    $region30: #{tpu_custom_call.1} parent=1 // pred_check
      _
    $region31: #{tpu_custom_call.1} parent=1 // pred_check_branch
      %83 = sbr.rel (0) target = $region33
    $region32: #{tpu_custom_call.1} parent=1 // pred_region
      %s85 = ssub.s32 512, 512
      %86 = vsyncadd [#allocation12], %s85
      %s87 = sshll.u32 [#allocation11], 4
      %s88 = int_to_ptr.vmem [resolvable:$true] %s87
      %93 = dma.hbm_to_vmem [thread:$0]  %s7, 512, %s88, [#allocation12], 256, 256, 16
    $region33: #{tpu_custom_call.1} parent=1 // pred_fallthru
      _
    // Predicated region
    $region34: #{tpu_custom_call.1} parent=1 // pred_check
      _
    $region35: #{tpu_custom_call.1} parent=1 // pred_check_branch
      %95 = sbr.rel (0) target = $region37
    $region36: #{tpu_custom_call.1} parent=1 // pred_region
      %96 = dma.done [#allocation3], 512
    $region37: #{tpu_custom_call.1} parent=1 // pred_fallthru
      _
    // Predicated region
    $region38: #{tpu_custom_call.1} parent=1 // pred_check
      _
    $region39: #{tpu_custom_call.1} parent=1 // pred_check_branch
      %98 = sbr.rel (0) target = $region41
    $region40: #{tpu_custom_call.1} parent=1 // pred_region
      %99 = dma.done [#allocation6], 512
    $region41: #{tpu_custom_call.1} parent=1 // pred_fallthru
      _
    // Predicated region
    $region42: #{tpu_custom_call.1} parent=1 // pred_check
      _
    $region43: #{tpu_custom_call.1} parent=1 // pred_check_branch
      %101 = sbr.rel (0) target = $region45
    $region44: #{tpu_custom_call.1} parent=1 // pred_region
      %102 = dma.done [#allocation6], 512
    $region45: #{tpu_custom_call.1} parent=1 // pred_fallthru
      _
    // Predicated region
    $region46: #{tpu_custom_call.1} parent=1 // pred_check
      _
    $region47: #{tpu_custom_call.1} parent=1 // pred_check_branch
      %104 = sbr.rel (0) target = $region49
    $region48: #{tpu_custom_call.1} parent=1 // pred_region
      %105 = dma.done [#allocation9], 512
    $region49: #{tpu_custom_call.1} parent=1 // pred_fallthru
      _
    // Predicated region
    $region50: #{tpu_custom_call.1} parent=1 // pred_check
      _
    $region51: #{tpu_custom_call.1} parent=1 // pred_check_branch
      %107 = sbr.rel (0) target = $region53
    $region52: #{tpu_custom_call.1} parent=1 // pred_region
      %108 = dma.done [#allocation9], 512
    $region53: #{tpu_custom_call.1} parent=1 // pred_fallthru
      _
    // Predicated region
    $region54: #{tpu_custom_call.1} parent=1 // pred_check
      _
    $region55: #{tpu_custom_call.1} parent=1 // pred_check_branch
      %110 = sbr.rel (0) target = $region57
    $region56: #{tpu_custom_call.1} parent=1 // pred_region
      %111 = dma.done [#allocation12], 512
    $region57: #{tpu_custom_call.1} parent=1 // pred_fallthru
      _
    %v112 = vld [vmem:[#allocation2] sm:$0xff]
    %v113 = vld [vmem:[#allocation2 + $0x8] sm:$0xff]
    %v114 = vld [vmem:[#allocation2 + $0x10] sm:$0xff]
    %v115 = vld [vmem:[#allocation2 + $0x18] sm:$0xff]
    %v116 = vld [vmem:[%s1] sm:$0xff]
    %v117 = vld [vmem:[%s1 + $0x8] sm:$0xff]
    %v118 = vld [vmem:[%s1 + $0x10] sm:$0xff]
    %v119 = vld [vmem:[%s1 + $0x18] sm:$0xff]
    %v120 = vmul.f32 %v116, 0.1
    %v121 = vmul.f32 %v117, 0.1
    %v122 = vmul.f32 %v118, 0.1
    %v123 = vmul.f32 %v119, 0.1
    %v124 = vmul.f32 %v120, %v120
    %v125 = vmul.f32 %v121, %v121
    %v126 = vmul.f32 %v122, %v122
    %v127 = vmul.f32 %v123, %v123
    %v128 = vmul.f32 %v124, 2.0
    %v129 = vmul.f32 %v125, 2.0
    %v130 = vmul.f32 %v126, 2.0
    %v131 = vmul.f32 %v127, 2.0
    %v132 = vmul.f32 %v124, 3.0
    %v133 = vmul.f32 %v125, 3.0
    %v134 = vmul.f32 %v126, 3.0
    %v135 = vmul.f32 %v127, 3.0
    %v136 = vld [vmem:[%s2] sm:$0xff]
    %v137 = vld [vmem:[%s2 + $0x8] sm:$0xff]
    %v138 = vld [vmem:[%s2 + $0x10] sm:$0xff]
    %v139 = vld [vmem:[%s2 + $0x18] sm:$0xff]
    %v140 = vld [vmem:[#allocation5] sm:$0xff]
    %v141 = vld [vmem:[#allocation5 + $0x8] sm:$0xff]
    %v142 = vld [vmem:[#allocation5 + $0x10] sm:$0xff]
    %v143 = vld [vmem:[#allocation5 + $0x18] sm:$0xff]
    %v144 = vld [vmem:[#allocation7] sm:$0xff]
    %v145 = vld [vmem:[#allocation7 + $0x8] sm:$0xff]
    %v146 = vld [vmem:[#allocation7 + $0x10] sm:$0xff]
    %v147 = vld [vmem:[#allocation7 + $0x18] sm:$0xff]
    %v148 = vld [vmem:[#allocation8] sm:$0xff]
    %v149 = vld [vmem:[#allocation8 + $0x8] sm:$0xff]
    %v150 = vld [vmem:[#allocation8 + $0x10] sm:$0xff]
    %v151 = vld [vmem:[#allocation8 + $0x18] sm:$0xff]
    %v152 = vld [vmem:[#allocation10] sm:$0xff]
    %v153 = vld [vmem:[#allocation10 + $0x8] sm:$0xff]
    %v154 = vld [vmem:[#allocation10 + $0x10] sm:$0xff]
    %v155 = vld [vmem:[#allocation10 + $0x18] sm:$0xff]
    %v156 = vld [vmem:[#allocation11] sm:$0xff]
    %v157 = vld [vmem:[#allocation11 + $0x8] sm:$0xff]
    %v158 = vld [vmem:[#allocation11 + $0x10] sm:$0xff]
    %v159 = vld [vmem:[#allocation11 + $0x18] sm:$0xff]
    // While loop
    $region58: #{tpu_custom_call.1} parent=1 // loop_pre_header
      _
    $region59: #{tpu_custom_call.1} parent=1 // loop_header
      %v161 = vphi %v112, %v2451
      %v162 = vphi %v113, %v2452
      %v163 = vphi %v114, %v2453
      %v164 = vphi %v115, %v2454
      %s165 = sphi 1e+10, %s2474
      %s166 = sphi 0, %s2475
      %p167 = scmp.gt.f32.partialorder %s165, 0.0
      %p168 = scmp.lt.s32.totalorder %s166, 24
      %p169 = pnand %p167, %p168
      %p170 = pneg %p169
    $region60: #{tpu_custom_call.1} parent=1 // loop_header_branch
      %172 = sbr.rel (%p169) target = $region64
    $region61: #{tpu_custom_call.1} parent=1 // loop_body
      %v173 = vrot.slane %v161, 7
      %v174 = vrot.slane %v162, 7
      %v175 = vrot.slane %v163, 7
      %v176 = vrot.slane %v164, 7
      %v177 = vlaneseq
      %v178 = vshrl.u32 %v177, 7
      %vm179 = vcmp.lt.s32.totalorder %v178, 1
      %v180 = vsel %vm179, %v173, %v175
      %v181 = vsel %vm179, %v174, %v176
      %v182 = vsel %vm179, %v175, %v173
      %v183 = vsel %vm179, %v176, %v174
      %v184 = vmax.f32 %v182, %v136
      %v185 = vmax.f32 %v183, %v137
      %v186 = vmax.f32 %v180, %v138
      %v187 = vmax.f32 %v181, %v139
      %v188 = vrot.slane %v161, 1
      %v189 = vrot.slane %v162, 1
      %v190 = vrot.slane %v163, 1
      %v191 = vrot.slane %v164, 1
      %vm192 = vcmp.lt.s32.totalorder %v178, 7
      %v193 = vsel %vm192, %v188, %v190
      %v194 = vsel %vm192, %v189, %v191
      %v195 = vsel %vm192, %v190, %v188
      %v196 = vsel %vm192, %v191, %v189
      %v197 = vmax.f32 %v193, %v140
      %v198 = vmax.f32 %v194, %v141
      %v199 = vmax.f32 %v195, %v142
      %v200 = vmax.f32 %v196, %v143
      %v201 = vmin.f32 %v184, %v197
      %v202 = vmin.f32 %v185, %v198
      %v203 = vmin.f32 %v186, %v199
      %v204 = vmin.f32 %v187, %v200
      %205 = vrot.lane.b32.xlu0 %v161, 16
      %v206 = vpop.permute.xlu0 %205
      %207 = vrot.lane.b32.xlu0 %v163, 16
      %v208 = vpop.permute.xlu0 %207
      %209 = vrot.lane.b32.xlu0 %v162, 16
      %v210 = vpop.permute.xlu0 %209
      %211 = vrot.lane.b32.xlu0 %v164, 16
      %v212 = vpop.permute.xlu0 %211
      %v213 = vlaneseq
      %v214 = vand.u32 %v213, 127
      %vm215 = vcmp.lt.s32.totalorder %v214, 16
      %v216 = vsel %vm215, %v206, %v210
      %v217 = vsel %vm215, %v208, %v212
      %v218 = vsel %vm215, %v210, %v206
      %v219 = vsel %vm215, %v212, %v208
      %v220 = vmax.f32 %v218, %v144
      %v221 = vmax.f32 %v216, %v145
      %v222 = vmax.f32 %v219, %v146
      %v223 = vmax.f32 %v217, %v147
      %224 = vrot.lane.b32.xlu0 %v161, 112
      %v225 = vpop.permute.xlu0 %224
      %226 = vrot.lane.b32.xlu0 %v163, 112
      %v227 = vpop.permute.xlu0 %226
      %228 = vrot.lane.b32.xlu0 %v162, 112
      %v229 = vpop.permute.xlu0 %228
      %230 = vrot.lane.b32.xlu0 %v164, 112
      %v231 = vpop.permute.xlu0 %230
      %vm232 = vcmp.lt.s32.totalorder %v214, 112
      %v233 = vsel %vm232, %v225, %v229
      %v234 = vsel %vm232, %v227, %v231
      %v235 = vsel %vm232, %v229, %v225
      %v236 = vsel %vm232, %v231, %v227
      %v237 = vmax.f32 %v233, %v148
      %v238 = vmax.f32 %v235, %v149
      %v239 = vmax.f32 %v234, %v150
      %v240 = vmax.f32 %v236, %v151
      %v241 = vmin.f32 %v220, %v237
      %v242 = vmin.f32 %v221, %v238
      %v243 = vmin.f32 %v222, %v239
      %v244 = vmin.f32 %v223, %v240
      %245 = vrot.lane.b32.xlu0 %v161, 1
      %v246 = vpop.permute.xlu0 %245
      %247 = vrot.lane.b32.xlu0 %v163, 1
      %v248 = vpop.permute.xlu0 %247
      %249 = vrot.lane.b32.xlu0 %v162, 1
      %v250 = vpop.permute.xlu0 %249
      %251 = vrot.lane.b32.xlu0 %v164, 1
      %v252 = vpop.permute.xlu0 %251
      %vm253 = vcmp.lt.s32.totalorder %v214, 1
      %v254 = vsel %vm253, %v246, %v250
      %v255 = vsel %vm253, %v248, %v252
      %v256 = vsel %vm253, %v250, %v246
      %v257 = vsel %vm253, %v252, %v248
      %v258 = vmax.f32 %v256, %v152
      %v259 = vmax.f32 %v254, %v153
      %v260 = vmax.f32 %v257, %v154
      %v261 = vmax.f32 %v255, %v155
      %262 = vrot.lane.b32.xlu0 %v161, 127
      %v263 = vpop.permute.xlu0 %262
      %264 = vrot.lane.b32.xlu0 %v163, 127
      %v265 = vpop.permute.xlu0 %264
      %266 = vrot.lane.b32.xlu0 %v162, 127
      %v267 = vpop.permute.xlu0 %266
      %268 = vrot.lane.b32.xlu0 %v164, 127
      %v269 = vpop.permute.xlu0 %268
      %vm270 = vcmp.lt.s32.totalorder %v214, 127
      %v271 = vsel %vm270, %v263, %v267
      %v272 = vsel %vm270, %v265, %v269
      %v273 = vsel %vm270, %v267, %v263
      %v274 = vsel %vm270, %v269, %v265
      %v275 = vmax.f32 %v271, %v156
      %v276 = vmax.f32 %v273, %v157
      %v277 = vmax.f32 %v272, %v158
      %v278 = vmax.f32 %v274, %v159
      %v279 = vmin.f32 %v258, %v275
      %v280 = vmin.f32 %v259, %v276
      %v281 = vmin.f32 %v260, %v277
      %v282 = vmin.f32 %v261, %v278
      %v283 = vmin.f32 %v201, %v241
      %v284 = vmin.f32 %v202, %v242
      %v285 = vmin.f32 %v203, %v243
      %v286 = vmin.f32 %v204, %v244
      %v287 = vmax.f32 %v201, %v241
      %v288 = vmax.f32 %v202, %v242
      %v289 = vmax.f32 %v203, %v243
      %v290 = vmax.f32 %v204, %v244
      %v291 = vmin.f32 %v283, %v279
      %v292 = vmin.f32 %v284, %v280
      %v293 = vmin.f32 %v285, %v281
      %v294 = vmin.f32 %v286, %v282
      %v295 = vmax.f32 %v283, %v279
      %v296 = vmax.f32 %v284, %v280
      %v297 = vmax.f32 %v285, %v281
      %v298 = vmax.f32 %v286, %v282
      %v299 = vmin.f32 %v287, %v295
      %v300 = vmin.f32 %v288, %v296
      %v301 = vmin.f32 %v289, %v297
      %v302 = vmin.f32 %v290, %v298
      %v303 = vmax.f32 %v287, %v295
      %v304 = vmax.f32 %v288, %v296
      %v305 = vmax.f32 %v289, %v297
      %v306 = vmax.f32 %v290, %v298
      %v307 = vadd.f32 %v291, %v120
      %v308 = vadd.f32 %v292, %v121
      %v309 = vadd.f32 %v293, %v122
      %v310 = vadd.f32 %v294, %v123
      %v311 = vsub.f32 %v291, %v299
      %v312 = vsub.f32 %v292, %v300
      %v313 = vsub.f32 %v293, %v301
      %v314 = vsub.f32 %v294, %v302
      %v315 = vmul.f32 %v311, %v311
      %v316 = vmul.f32 %v312, %v312
      %v317 = vmul.f32 %v313, %v313
      %v318 = vmul.f32 %v314, %v314
      %v319 = vsub.f32 %v128, %v315
      %v320 = vsub.f32 %v129, %v316
      %v321 = vsub.f32 %v130, %v317
      %v322 = vsub.f32 %v131, %v318
      %v323 = vmax.f32 %v319, 0.0
      %v324 = vmax.f32 %v320, 0.0
      %v325 = vmax.f32 %v321, 0.0
      %v326 = vmax.f32 %v322, 0.0
      %v327 = vadd.f32 %v291, %v299
      %v328 = vadd.f32 %v292, %v300
      %v329 = vadd.f32 %v293, %v301
      %v330 = vadd.f32 %v294, %v302
      %v331 = vrsqrt.pop %v323
      %v332 = vmul.f32 %v323, %v331
      %vm333 = vcmp.eq.f32.partialorder %v323, inf
      %v334 = vsel %vm333, %v323, %v332
      %vm335 = vcmp.eq.f32.partialorder %v323, 0.0
      %v336 = vand.u32 %v323, 2147483648
      %v337 = vsel %vm335, %v336, %v334
      %v338 = vrsqrt.pop %v324
      %v339 = vmul.f32 %v324, %v338
      %vm340 = vcmp.eq.f32.partialorder %v324, inf
      %v341 = vsel %vm340, %v324, %v339
      %vm342 = vcmp.eq.f32.partialorder %v324, 0.0
      %v343 = vand.u32 %v324, 2147483648
      %v344 = vsel %vm342, %v343, %v341
      %v345 = vrsqrt.pop %v325
      %v346 = vmul.f32 %v325, %v345
      %vm347 = vcmp.eq.f32.partialorder %v325, inf
      %v348 = vsel %vm347, %v325, %v346
      %vm349 = vcmp.eq.f32.partialorder %v325, 0.0
      %v350 = vand.u32 %v325, 2147483648
      %v351 = vsel %vm349, %v350, %v348
      %v352 = vrsqrt.pop %v326
      %v353 = vmul.f32 %v326, %v352
      %vm354 = vcmp.eq.f32.partialorder %v326, inf
      %v355 = vsel %vm354, %v326, %v353
      %vm356 = vcmp.eq.f32.partialorder %v326, 0.0
      %v357 = vand.u32 %v326, 2147483648
      %v358 = vsel %vm356, %v357, %v355
      %v359 = vadd.f32 %v327, %v337
      %v360 = vadd.f32 %v328, %v344
      %v361 = vadd.f32 %v329, %v351
      %v362 = vadd.f32 %v330, %v358
      %v363 = vmul.f32 %v359, 0.5
      %v364 = vmul.f32 %v360, 0.5
      %v365 = vmul.f32 %v361, 0.5
      %v366 = vmul.f32 %v362, 0.5
      %v367 = vadd.f32 %v327, %v303
      %v368 = vadd.f32 %v328, %v304
      %v369 = vadd.f32 %v329, %v305
      %v370 = vadd.f32 %v330, %v306
      %v371 = vmul.f32 %v367, %v367
      %v372 = vmul.f32 %v368, %v368
      %v373 = vmul.f32 %v369, %v369
      %v374 = vmul.f32 %v370, %v370
      %v375 = vmul.f32 %v291, %v291
      %v376 = vmul.f32 %v292, %v292
      %v377 = vmul.f32 %v293, %v293
      %v378 = vmul.f32 %v294, %v294
      %v379 = vmul.f32 %v299, %v299
      %v380 = vmul.f32 %v300, %v300
      %v381 = vmul.f32 %v301, %v301
      %v382 = vmul.f32 %v302, %v302
      %v383 = vadd.f32 %v375, %v379
      %v384 = vadd.f32 %v376, %v380
      %v385 = vadd.f32 %v377, %v381
      %v386 = vadd.f32 %v378, %v382
      %v387 = vmul.f32 %v303, %v303
      %v388 = vmul.f32 %v304, %v304
      %v389 = vmul.f32 %v305, %v305
      %v390 = vmul.f32 %v306, %v306
      %v391 = vadd.f32 %v383, %v387
      %v392 = vadd.f32 %v384, %v388
      %v393 = vadd.f32 %v385, %v389
      %v394 = vadd.f32 %v386, %v390
      %v395 = vmul.f32 %v391, 3.0
      %v396 = vmul.f32 %v392, 3.0
      %v397 = vmul.f32 %v393, 3.0
      %v398 = vmul.f32 %v394, 3.0
      %v399 = vsub.f32 %v371, %v395
      %v400 = vsub.f32 %v372, %v396
      %v401 = vsub.f32 %v373, %v397
      %v402 = vsub.f32 %v374, %v398
      %v403 = vadd.f32 %v399, %v132
      %v404 = vadd.f32 %v400, %v133
      %v405 = vadd.f32 %v401, %v134
      %v406 = vadd.f32 %v402, %v135
      %v407 = vmax.f32 %v403, 0.0
      %v408 = vmax.f32 %v404, 0.0
      %v409 = vmax.f32 %v405, 0.0
      %v410 = vmax.f32 %v406, 0.0
      %v411 = vrsqrt.pop %v407
      %v412 = vmul.f32 %v407, %v411
      %vm413 = vcmp.eq.f32.partialorder %v407, inf
      %v414 = vsel %vm413, %v407, %v412
      %vm415 = vcmp.eq.f32.partialorder %v407, 0.0
      %v416 = vand.u32 %v407, 2147483648
      %v417 = vsel %vm415, %v416, %v414
      %v418 = vrsqrt.pop %v408
      %v419 = vmul.f32 %v408, %v418
      %vm420 = vcmp.eq.f32.partialorder %v408, inf
      %v421 = vsel %vm420, %v408, %v419
      %vm422 = vcmp.eq.f32.partialorder %v408, 0.0
      %v423 = vand.u32 %v408, 2147483648
      %v424 = vsel %vm422, %v423, %v421
      %v425 = vrsqrt.pop %v409
      %v426 = vmul.f32 %v409, %v425
      %vm427 = vcmp.eq.f32.partialorder %v409, inf
      %v428 = vsel %vm427, %v409, %v426
      %vm429 = vcmp.eq.f32.partialorder %v409, 0.0
      %v430 = vand.u32 %v409, 2147483648
      %v431 = vsel %vm429, %v430, %v428
      %v432 = vrsqrt.pop %v410
      %v433 = vmul.f32 %v410, %v432
      %vm434 = vcmp.eq.f32.partialorder %v410, inf
      %v435 = vsel %vm434, %v410, %v433
      %vm436 = vcmp.eq.f32.partialorder %v410, 0.0
      %v437 = vand.u32 %v410, 2147483648
      %v438 = vsel %vm436, %v437, %v435
      %v439 = vadd.f32 %v367, %v417
      %v440 = vadd.f32 %v368, %v424
      %v441 = vadd.f32 %v369, %v431
      %v442 = vadd.f32 %v370, %v438
      %v443 = vmul.f32 %v439, 0.33333334
      %v444 = vmul.f32 %v440, 0.33333334
      %v445 = vmul.f32 %v441, 0.33333334
      %v446 = vmul.f32 %v442, 0.33333334
      %vm447 = vcmp.le.f32.partialorder %v307, %v299
      %vm448 = vcmp.le.f32.partialorder %v308, %v300
      %vm449 = vcmp.le.f32.partialorder %v309, %v301
      %vm450 = vcmp.le.f32.partialorder %v310, %v302
      %vm451 = vcmp.le.f32.partialorder %v363, %v303
      %vm452 = vcmp.le.f32.partialorder %v364, %v304
      %vm453 = vcmp.le.f32.partialorder %v365, %v305
      %vm454 = vcmp.le.f32.partialorder %v366, %v306
      %v455 = vsel %vm451, %v363, %v443
      %v456 = vsel %vm452, %v364, %v444
      %v457 = vsel %vm453, %v365, %v445
      %v458 = vsel %vm454, %v366, %v446
      %v459 = vsel %vm447, %v307, %v455
      %v460 = vsel %vm448, %v308, %v456
      %v461 = vsel %vm449, %v309, %v457
      %v462 = vsel %vm450, %v310, %v458
      %v463 = vmin.f32 %v161, %v459
      %v464 = vmin.f32 %v162, %v460
      %v465 = vmin.f32 %v163, %v461
      %v466 = vmin.f32 %v164, %v462
      %v467 = vrot.slane %v463, 7
      %v468 = vrot.slane %v464, 7
      %v469 = vrot.slane %v465, 7
      %v470 = vrot.slane %v466, 7
      %v471 = vsel %vm179, %v467, %v469
      %v472 = vsel %vm179, %v468, %v470
      %v473 = vsel %vm179, %v469, %v467
      %v474 = vsel %vm179, %v470, %v468
      %v475 = vmax.f32 %v473, %v136
      %v476 = vmax.f32 %v474, %v137
      %v477 = vmax.f32 %v471, %v138
      %v478 = vmax.f32 %v472, %v139
      %v479 = vrot.slane %v463, 1
      %v480 = vrot.slane %v464, 1
      %v481 = vrot.slane %v465, 1
      %v482 = vrot.slane %v466, 1
      %v483 = vsel %vm192, %v479, %v481
      %v484 = vsel %vm192, %v480, %v482
      %v485 = vsel %vm192, %v481, %v479
      %v486 = vsel %vm192, %v482, %v480
      %v487 = vmax.f32 %v483, %v140
      %v488 = vmax.f32 %v484, %v141
      %v489 = vmax.f32 %v485, %v142
      %v490 = vmax.f32 %v486, %v143
      %v491 = vmin.f32 %v475, %v487
      %v492 = vmin.f32 %v476, %v488
      %v493 = vmin.f32 %v477, %v489
      %v494 = vmin.f32 %v478, %v490
      %495 = vrot.lane.b32.xlu0 %v463, 16
      %v496 = vpop.permute.xlu0 %495
      %497 = vrot.lane.b32.xlu0 %v465, 16
      %v498 = vpop.permute.xlu0 %497
      %499 = vrot.lane.b32.xlu0 %v464, 16
      %v500 = vpop.permute.xlu0 %499
      %501 = vrot.lane.b32.xlu0 %v466, 16
      %v502 = vpop.permute.xlu0 %501
      %v503 = vsel %vm215, %v496, %v500
      %v504 = vsel %vm215, %v498, %v502
      %v505 = vsel %vm215, %v500, %v496
      %v506 = vsel %vm215, %v502, %v498
      %v507 = vmax.f32 %v505, %v144
      %v508 = vmax.f32 %v503, %v145
      %v509 = vmax.f32 %v506, %v146
      %v510 = vmax.f32 %v504, %v147
      %511 = vrot.lane.b32.xlu0 %v463, 112
      %v512 = vpop.permute.xlu0 %511
      %513 = vrot.lane.b32.xlu0 %v465, 112
      %v514 = vpop.permute.xlu0 %513
      %515 = vrot.lane.b32.xlu0 %v464, 112
      %v516 = vpop.permute.xlu0 %515
      %517 = vrot.lane.b32.xlu0 %v466, 112
      %v518 = vpop.permute.xlu0 %517
      %v519 = vsel %vm232, %v512, %v516
      %v520 = vsel %vm232, %v514, %v518
      %v521 = vsel %vm232, %v516, %v512
      %v522 = vsel %vm232, %v518, %v514
      %v523 = vmax.f32 %v519, %v148
      %v524 = vmax.f32 %v521, %v149
      %v525 = vmax.f32 %v520, %v150
      %v526 = vmax.f32 %v522, %v151
      %v527 = vmin.f32 %v507, %v523
      %v528 = vmin.f32 %v508, %v524
      %v529 = vmin.f32 %v509, %v525
      %v530 = vmin.f32 %v510, %v526
      %531 = vrot.lane.b32.xlu0 %v463, 1
      %v532 = vpop.permute.xlu0 %531
      %533 = vrot.lane.b32.xlu0 %v465, 1
      %v534 = vpop.permute.xlu0 %533
      %535 = vrot.lane.b32.xlu0 %v464, 1
      %v536 = vpop.permute.xlu0 %535
      %537 = vrot.lane.b32.xlu0 %v466, 1
      %v538 = vpop.permute.xlu0 %537
      %v539 = vsel %vm253, %v532, %v536
      %v540 = vsel %vm253, %v534, %v538
      %v541 = vsel %vm253, %v536, %v532
      %v542 = vsel %vm253, %v538, %v534
      %v543 = vmax.f32 %v541, %v152
      %v544 = vmax.f32 %v539, %v153
      %v545 = vmax.f32 %v542, %v154
      %v546 = vmax.f32 %v540, %v155
      %547 = vrot.lane.b32.xlu0 %v463, 127
      %v548 = vpop.permute.xlu0 %547
      %549 = vrot.lane.b32.xlu0 %v465, 127
      %v550 = vpop.permute.xlu0 %549
      %551 = vrot.lane.b32.xlu0 %v464, 127
      %v552 = vpop.permute.xlu0 %551
      %553 = vrot.lane.b32.xlu0 %v466, 127
      %v554 = vpop.permute.xlu0 %553
      %v555 = vsel %vm270, %v548, %v552
      %v556 = vsel %vm270, %v550, %v554
      %v557 = vsel %vm270, %v552, %v548
      %v558 = vsel %vm270, %v554, %v550
      %v559 = vmax.f32 %v555, %v156
      %v560 = vmax.f32 %v557, %v157
      %v561 = vmax.f32 %v556, %v158
      %v562 = vmax.f32 %v558, %v159
      %v563 = vmin.f32 %v543, %v559
      %v564 = vmin.f32 %v544, %v560
      %v565 = vmin.f32 %v545, %v561
      %v566 = vmin.f32 %v546, %v562
      %v567 = vmin.f32 %v491, %v527
      %v568 = vmin.f32 %v492, %v528
      %v569 = vmin.f32 %v493, %v529
      %v570 = vmin.f32 %v494, %v530
      %v571 = vmax.f32 %v491, %v527
      %v572 = vmax.f32 %v492, %v528
      %v573 = vmax.f32 %v493, %v529
      %v574 = vmax.f32 %v494, %v530
      %v575 = vmin.f32 %v567, %v563
      %v576 = vmin.f32 %v568, %v564
      %v577 = vmin.f32 %v569, %v565
      %v578 = vmin.f32 %v570, %v566
      %v579 = vmax.f32 %v567, %v563
      %v580 = vmax.f32 %v568, %v564
      %v581 = vmax.f32 %v569, %v565
      %v582 = vmax.f32 %v570, %v566
      %v583 = vmin.f32 %v571, %v579
      %v584 = vmin.f32 %v572, %v580
      %v585 = vmin.f32 %v573, %v581
      %v586 = vmin.f32 %v574, %v582
      %v587 = vmax.f32 %v571, %v579
      %v588 = vmax.f32 %v572, %v580
      %v589 = vmax.f32 %v573, %v581
      %v590 = vmax.f32 %v574, %v582
      %v591 = vadd.f32 %v575, %v120
      %v592 = vadd.f32 %v576, %v121
      %v593 = vadd.f32 %v577, %v122
      %v594 = vadd.f32 %v578, %v123
      %v595 = vsub.f32 %v575, %v583
      %v596 = vsub.f32 %v576, %v584
      %v597 = vsub.f32 %v577, %v585
      %v598 = vsub.f32 %v578, %v586
      %v599 = vmul.f32 %v595, %v595
      %v600 = vmul.f32 %v596, %v596
      %v601 = vmul.f32 %v597, %v597
      %v602 = vmul.f32 %v598, %v598
      %v603 = vsub.f32 %v128, %v599
      %v604 = vsub.f32 %v129, %v600
      %v605 = vsub.f32 %v130, %v601
      %v606 = vsub.f32 %v131, %v602
      %v607 = vmax.f32 %v603, 0.0
      %v608 = vmax.f32 %v604, 0.0
      %v609 = vmax.f32 %v605, 0.0
      %v610 = vmax.f32 %v606, 0.0
      %v611 = vadd.f32 %v575, %v583
      %v612 = vadd.f32 %v576, %v584
      %v613 = vadd.f32 %v577, %v585
      %v614 = vadd.f32 %v578, %v586
      %v615 = vrsqrt.pop %v607
      %v616 = vmul.f32 %v607, %v615
      %vm617 = vcmp.eq.f32.partialorder %v607, inf
      %v618 = vsel %vm617, %v607, %v616
      %vm619 = vcmp.eq.f32.partialorder %v607, 0.0
      %v620 = vand.u32 %v607, 2147483648
      %v621 = vsel %vm619, %v620, %v618
      %v622 = vrsqrt.pop %v608
      %v623 = vmul.f32 %v608, %v622
      %vm624 = vcmp.eq.f32.partialorder %v608, inf
      %v625 = vsel %vm624, %v608, %v623
      %vm626 = vcmp.eq.f32.partialorder %v608, 0.0
      %v627 = vand.u32 %v608, 2147483648
      %v628 = vsel %vm626, %v627, %v625
      %v629 = vrsqrt.pop %v609
      %v630 = vmul.f32 %v609, %v629
      %vm631 = vcmp.eq.f32.partialorder %v609, inf
      %v632 = vsel %vm631, %v609, %v630
      %vm633 = vcmp.eq.f32.partialorder %v609, 0.0
      %v634 = vand.u32 %v609, 2147483648
      %v635 = vsel %vm633, %v634, %v632
      %v636 = vrsqrt.pop %v610
      %v637 = vmul.f32 %v610, %v636
      %vm638 = vcmp.eq.f32.partialorder %v610, inf
      %v639 = vsel %vm638, %v610, %v637
      %vm640 = vcmp.eq.f32.partialorder %v610, 0.0
      %v641 = vand.u32 %v610, 2147483648
      %v642 = vsel %vm640, %v641, %v639
      %v643 = vadd.f32 %v611, %v621
      %v644 = vadd.f32 %v612, %v628
      %v645 = vadd.f32 %v613, %v635
      %v646 = vadd.f32 %v614, %v642
      %v647 = vmul.f32 %v643, 0.5
      %v648 = vmul.f32 %v644, 0.5
      %v649 = vmul.f32 %v645, 0.5
      %v650 = vmul.f32 %v646, 0.5
      %v651 = vadd.f32 %v611, %v587
      %v652 = vadd.f32 %v612, %v588
      %v653 = vadd.f32 %v613, %v589
      %v654 = vadd.f32 %v614, %v590
      %v655 = vmul.f32 %v651, %v651
      %v656 = vmul.f32 %v652, %v652
      %v657 = vmul.f32 %v653, %v653
      %v658 = vmul.f32 %v654, %v654
      %v659 = vmul.f32 %v575, %v575
      %v660 = vmul.f32 %v576, %v576
      %v661 = vmul.f32 %v577, %v577
      %v662 = vmul.f32 %v578, %v578
      %v663 = vmul.f32 %v583, %v583
      %v664 = vmul.f32 %v584, %v584
      %v665 = vmul.f32 %v585, %v585
      %v666 = vmul.f32 %v586, %v586
      %v667 = vadd.f32 %v659, %v663
      %v668 = vadd.f32 %v660, %v664
      %v669 = vadd.f32 %v661, %v665
      %v670 = vadd.f32 %v662, %v666
      %v671 = vmul.f32 %v587, %v587
      %v672 = vmul.f32 %v588, %v588
      %v673 = vmul.f32 %v589, %v589
      %v674 = vmul.f32 %v590, %v590
      %v675 = vadd.f32 %v667, %v671
      %v676 = vadd.f32 %v668, %v672
      %v677 = vadd.f32 %v669, %v673
      %v678 = vadd.f32 %v670, %v674
      %v679 = vmul.f32 %v675, 3.0
      %v680 = vmul.f32 %v676, 3.0
      %v681 = vmul.f32 %v677, 3.0
      %v682 = vmul.f32 %v678, 3.0
      %v683 = vsub.f32 %v655, %v679
      %v684 = vsub.f32 %v656, %v680
      %v685 = vsub.f32 %v657, %v681
      %v686 = vsub.f32 %v658, %v682
      %v687 = vadd.f32 %v683, %v132
      %v688 = vadd.f32 %v684, %v133
      %v689 = vadd.f32 %v685, %v134
      %v690 = vadd.f32 %v686, %v135
      %v691 = vmax.f32 %v687, 0.0
      %v692 = vmax.f32 %v688, 0.0
      %v693 = vmax.f32 %v689, 0.0
      %v694 = vmax.f32 %v690, 0.0
      %v695 = vrsqrt.pop %v691
      %v696 = vmul.f32 %v691, %v695
      %vm697 = vcmp.eq.f32.partialorder %v691, inf
      %v698 = vsel %vm697, %v691, %v696
      %vm699 = vcmp.eq.f32.partialorder %v691, 0.0
      %v700 = vand.u32 %v691, 2147483648
      %v701 = vsel %vm699, %v700, %v698
      %v702 = vrsqrt.pop %v692
      %v703 = vmul.f32 %v692, %v702
      %vm704 = vcmp.eq.f32.partialorder %v692, inf
      %v705 = vsel %vm704, %v692, %v703
      %vm706 = vcmp.eq.f32.partialorder %v692, 0.0
      %v707 = vand.u32 %v692, 2147483648
      %v708 = vsel %vm706, %v707, %v705
      %v709 = vrsqrt.pop %v693
      %v710 = vmul.f32 %v693, %v709
      %vm711 = vcmp.eq.f32.partialorder %v693, inf
      %v712 = vsel %vm711, %v693, %v710
      %vm713 = vcmp.eq.f32.partialorder %v693, 0.0
      %v714 = vand.u32 %v693, 2147483648
      %v715 = vsel %vm713, %v714, %v712
      %v716 = vrsqrt.pop %v694
      %v717 = vmul.f32 %v694, %v716
      %vm718 = vcmp.eq.f32.partialorder %v694, inf
      %v719 = vsel %vm718, %v694, %v717
      %vm720 = vcmp.eq.f32.partialorder %v694, 0.0
      %v721 = vand.u32 %v694, 2147483648
      %v722 = vsel %vm720, %v721, %v719
      %v723 = vadd.f32 %v651, %v701
      %v724 = vadd.f32 %v652, %v708
      %v725 = vadd.f32 %v653, %v715
      %v726 = vadd.f32 %v654, %v722
      %v727 = vmul.f32 %v723, 0.33333334
      %v728 = vmul.f32 %v724, 0.33333334
      %v729 = vmul.f32 %v725, 0.33333334
      %v730 = vmul.f32 %v726, 0.33333334
      %vm731 = vcmp.le.f32.partialorder %v591, %v583
      %vm732 = vcmp.le.f32.partialorder %v592, %v584
      %vm733 = vcmp.le.f32.partialorder %v593, %v585
      %vm734 = vcmp.le.f32.partialorder %v594, %v586
      %vm735 = vcmp.le.f32.partialorder %v647, %v587
      %vm736 = vcmp.le.f32.partialorder %v648, %v588
      %vm737 = vcmp.le.f32.partialorder %v649, %v589
      %vm738 = vcmp.le.f32.partialorder %v650, %v590
      %v739 = vsel %vm735, %v647, %v727
      %v740 = vsel %vm736, %v648, %v728
      %v741 = vsel %vm737, %v649, %v729
      %v742 = vsel %vm738, %v650, %v730
      %v743 = vsel %vm731, %v591, %v739
      %v744 = vsel %vm732, %v592, %v740
      %v745 = vsel %vm733, %v593, %v741
      %v746 = vsel %vm734, %v594, %v742
      %v747 = vmin.f32 %v463, %v743
      %v748 = vmin.f32 %v464, %v744
      %v749 = vmin.f32 %v465, %v745
      %v750 = vmin.f32 %v466, %v746
      %v751 = vrot.slane %v747, 7
      %v752 = vrot.slane %v748, 7
      %v753 = vrot.slane %v749, 7
      %v754 = vrot.slane %v750, 7
      %v755 = vsel %vm179, %v751, %v753
      %v756 = vsel %vm179, %v752, %v754
      %v757 = vsel %vm179, %v753, %v751
      %v758 = vsel %vm179, %v754, %v752
      %v759 = vmax.f32 %v757, %v136
      %v760 = vmax.f32 %v758, %v137
      %v761 = vmax.f32 %v755, %v138
      %v762 = vmax.f32 %v756, %v139
      %v763 = vrot.slane %v747, 1
      %v764 = vrot.slane %v748, 1
      %v765 = vrot.slane %v749, 1
      %v766 = vrot.slane %v750, 1
      %v767 = vsel %vm192, %v763, %v765
      %v768 = vsel %vm192, %v764, %v766
      %v769 = vsel %vm192, %v765, %v763
      %v770 = vsel %vm192, %v766, %v764
      %v771 = vmax.f32 %v767, %v140
      %v772 = vmax.f32 %v768, %v141
      %v773 = vmax.f32 %v769, %v142
      %v774 = vmax.f32 %v770, %v143
      %v775 = vmin.f32 %v759, %v771
      %v776 = vmin.f32 %v760, %v772
      %v777 = vmin.f32 %v761, %v773
      %v778 = vmin.f32 %v762, %v774
      %779 = vrot.lane.b32.xlu0 %v747, 16
      %v780 = vpop.permute.xlu0 %779
      %781 = vrot.lane.b32.xlu0 %v749, 16
      %v782 = vpop.permute.xlu0 %781
      %783 = vrot.lane.b32.xlu0 %v748, 16
      %v784 = vpop.permute.xlu0 %783
      %785 = vrot.lane.b32.xlu0 %v750, 16
      %v786 = vpop.permute.xlu0 %785
      %v787 = vsel %vm215, %v780, %v784
      %v788 = vsel %vm215, %v782, %v786
      %v789 = vsel %vm215, %v784, %v780
      %v790 = vsel %vm215, %v786, %v782
      %v791 = vmax.f32 %v789, %v144
      %v792 = vmax.f32 %v787, %v145
      %v793 = vmax.f32 %v790, %v146
      %v794 = vmax.f32 %v788, %v147
      %795 = vrot.lane.b32.xlu0 %v747, 112
      %v796 = vpop.permute.xlu0 %795
      %797 = vrot.lane.b32.xlu0 %v749, 112
      %v798 = vpop.permute.xlu0 %797
      %799 = vrot.lane.b32.xlu0 %v748, 112
      %v800 = vpop.permute.xlu0 %799
      %801 = vrot.lane.b32.xlu0 %v750, 112
      %v802 = vpop.permute.xlu0 %801
      %v803 = vsel %vm232, %v796, %v800
      %v804 = vsel %vm232, %v798, %v802
      %v805 = vsel %vm232, %v800, %v796
      %v806 = vsel %vm232, %v802, %v798
      %v807 = vmax.f32 %v803, %v148
      %v808 = vmax.f32 %v805, %v149
      %v809 = vmax.f32 %v804, %v150
      %v810 = vmax.f32 %v806, %v151
      %v811 = vmin.f32 %v791, %v807
      %v812 = vmin.f32 %v792, %v808
      %v813 = vmin.f32 %v793, %v809
      %v814 = vmin.f32 %v794, %v810
      %815 = vrot.lane.b32.xlu0 %v747, 1
      %v816 = vpop.permute.xlu0 %815
      %817 = vrot.lane.b32.xlu0 %v749, 1
      %v818 = vpop.permute.xlu0 %817
      %819 = vrot.lane.b32.xlu0 %v748, 1
      %v820 = vpop.permute.xlu0 %819
      %821 = vrot.lane.b32.xlu0 %v750, 1
      %v822 = vpop.permute.xlu0 %821
      %v823 = vsel %vm253, %v816, %v820
      %v824 = vsel %vm253, %v818, %v822
      %v825 = vsel %vm253, %v820, %v816
      %v826 = vsel %vm253, %v822, %v818
      %v827 = vmax.f32 %v825, %v152
      %v828 = vmax.f32 %v823, %v153
      %v829 = vmax.f32 %v826, %v154
      %v830 = vmax.f32 %v824, %v155
      %831 = vrot.lane.b32.xlu0 %v747, 127
      %v832 = vpop.permute.xlu0 %831
      %833 = vrot.lane.b32.xlu0 %v749, 127
      %v834 = vpop.permute.xlu0 %833
      %835 = vrot.lane.b32.xlu0 %v748, 127
      %v836 = vpop.permute.xlu0 %835
      %837 = vrot.lane.b32.xlu0 %v750, 127
      %v838 = vpop.permute.xlu0 %837
      %v839 = vsel %vm270, %v832, %v836
      %v840 = vsel %vm270, %v834, %v838
      %v841 = vsel %vm270, %v836, %v832
      %v842 = vsel %vm270, %v838, %v834
      %v843 = vmax.f32 %v839, %v156
      %v844 = vmax.f32 %v841, %v157
      %v845 = vmax.f32 %v840, %v158
      %v846 = vmax.f32 %v842, %v159
      %v847 = vmin.f32 %v827, %v843
      %v848 = vmin.f32 %v828, %v844
      %v849 = vmin.f32 %v829, %v845
      %v850 = vmin.f32 %v830, %v846
      %v851 = vmin.f32 %v775, %v811
      %v852 = vmin.f32 %v776, %v812
      %v853 = vmin.f32 %v777, %v813
      %v854 = vmin.f32 %v778, %v814
      %v855 = vmax.f32 %v775, %v811
      %v856 = vmax.f32 %v776, %v812
      %v857 = vmax.f32 %v777, %v813
      %v858 = vmax.f32 %v778, %v814
      %v859 = vmin.f32 %v851, %v847
      %v860 = vmin.f32 %v852, %v848
      %v861 = vmin.f32 %v853, %v849
      %v862 = vmin.f32 %v854, %v850
      %v863 = vmax.f32 %v851, %v847
      %v864 = vmax.f32 %v852, %v848
      %v865 = vmax.f32 %v853, %v849
      %v866 = vmax.f32 %v854, %v850
      %v867 = vmin.f32 %v855, %v863
      %v868 = vmin.f32 %v856, %v864
      %v869 = vmin.f32 %v857, %v865
      %v870 = vmin.f32 %v858, %v866
      %v871 = vmax.f32 %v855, %v863
      %v872 = vmax.f32 %v856, %v864
      %v873 = vmax.f32 %v857, %v865
      %v874 = vmax.f32 %v858, %v866
      %v875 = vadd.f32 %v859, %v120
      %v876 = vadd.f32 %v860, %v121
      %v877 = vadd.f32 %v861, %v122
      %v878 = vadd.f32 %v862, %v123
      %v879 = vsub.f32 %v859, %v867
      %v880 = vsub.f32 %v860, %v868
      %v881 = vsub.f32 %v861, %v869
      %v882 = vsub.f32 %v862, %v870
      %v883 = vmul.f32 %v879, %v879
      %v884 = vmul.f32 %v880, %v880
      %v885 = vmul.f32 %v881, %v881
      %v886 = vmul.f32 %v882, %v882
      %v887 = vsub.f32 %v128, %v883
      %v888 = vsub.f32 %v129, %v884
      %v889 = vsub.f32 %v130, %v885
      %v890 = vsub.f32 %v131, %v886
      %v891 = vmax.f32 %v887, 0.0
      %v892 = vmax.f32 %v888, 0.0
      %v893 = vmax.f32 %v889, 0.0
      %v894 = vmax.f32 %v890, 0.0
      %v895 = vadd.f32 %v859, %v867
      %v896 = vadd.f32 %v860, %v868
      %v897 = vadd.f32 %v861, %v869
      %v898 = vadd.f32 %v862, %v870
      %v899 = vrsqrt.pop %v891
      %v900 = vmul.f32 %v891, %v899
      %vm901 = vcmp.eq.f32.partialorder %v891, inf
      %v902 = vsel %vm901, %v891, %v900
      %vm903 = vcmp.eq.f32.partialorder %v891, 0.0
      %v904 = vand.u32 %v891, 2147483648
      %v905 = vsel %vm903, %v904, %v902
      %v906 = vrsqrt.pop %v892
      %v907 = vmul.f32 %v892, %v906
      %vm908 = vcmp.eq.f32.partialorder %v892, inf
      %v909 = vsel %vm908, %v892, %v907
      %vm910 = vcmp.eq.f32.partialorder %v892, 0.0
      %v911 = vand.u32 %v892, 2147483648
      %v912 = vsel %vm910, %v911, %v909
      %v913 = vrsqrt.pop %v893
      %v914 = vmul.f32 %v893, %v913
      %vm915 = vcmp.eq.f32.partialorder %v893, inf
      %v916 = vsel %vm915, %v893, %v914
      %vm917 = vcmp.eq.f32.partialorder %v893, 0.0
      %v918 = vand.u32 %v893, 2147483648
      %v919 = vsel %vm917, %v918, %v916
      %v920 = vrsqrt.pop %v894
      %v921 = vmul.f32 %v894, %v920
      %vm922 = vcmp.eq.f32.partialorder %v894, inf
      %v923 = vsel %vm922, %v894, %v921
      %vm924 = vcmp.eq.f32.partialorder %v894, 0.0
      %v925 = vand.u32 %v894, 2147483648
      %v926 = vsel %vm924, %v925, %v923
      %v927 = vadd.f32 %v895, %v905
      %v928 = vadd.f32 %v896, %v912
      %v929 = vadd.f32 %v897, %v919
      %v930 = vadd.f32 %v898, %v926
      %v931 = vmul.f32 %v927, 0.5
      %v932 = vmul.f32 %v928, 0.5
      %v933 = vmul.f32 %v929, 0.5
      %v934 = vmul.f32 %v930, 0.5
      %v935 = vadd.f32 %v895, %v871
      %v936 = vadd.f32 %v896, %v872
      %v937 = vadd.f32 %v897, %v873
      %v938 = vadd.f32 %v898, %v874
      %v939 = vmul.f32 %v935, %v935
      %v940 = vmul.f32 %v936, %v936
      %v941 = vmul.f32 %v937, %v937
      %v942 = vmul.f32 %v938, %v938
      %v943 = vmul.f32 %v859, %v859
      %v944 = vmul.f32 %v860, %v860
      %v945 = vmul.f32 %v861, %v861
      %v946 = vmul.f32 %v862, %v862
      %v947 = vmul.f32 %v867, %v867
      %v948 = vmul.f32 %v868, %v868
      %v949 = vmul.f32 %v869, %v869
      %v950 = vmul.f32 %v870, %v870
      %v951 = vadd.f32 %v943, %v947
      %v952 = vadd.f32 %v944, %v948
      %v953 = vadd.f32 %v945, %v949
      %v954 = vadd.f32 %v946, %v950
      %v955 = vmul.f32 %v871, %v871
      %v956 = vmul.f32 %v872, %v872
      %v957 = vmul.f32 %v873, %v873
      %v958 = vmul.f32 %v874, %v874
      %v959 = vadd.f32 %v951, %v955
      %v960 = vadd.f32 %v952, %v956
      %v961 = vadd.f32 %v953, %v957
      %v962 = vadd.f32 %v954, %v958
      %v963 = vmul.f32 %v959, 3.0
      %v964 = vmul.f32 %v960, 3.0
      %v965 = vmul.f32 %v961, 3.0
      %v966 = vmul.f32 %v962, 3.0
      %v967 = vsub.f32 %v939, %v963
      %v968 = vsub.f32 %v940, %v964
      %v969 = vsub.f32 %v941, %v965
      %v970 = vsub.f32 %v942, %v966
      %v971 = vadd.f32 %v967, %v132
      %v972 = vadd.f32 %v968, %v133
      %v973 = vadd.f32 %v969, %v134
      %v974 = vadd.f32 %v970, %v135
      %v975 = vmax.f32 %v971, 0.0
      %v976 = vmax.f32 %v972, 0.0
      %v977 = vmax.f32 %v973, 0.0
      %v978 = vmax.f32 %v974, 0.0
      %v979 = vrsqrt.pop %v975
      %v980 = vmul.f32 %v975, %v979
      %vm981 = vcmp.eq.f32.partialorder %v975, inf
      %v982 = vsel %vm981, %v975, %v980
      %vm983 = vcmp.eq.f32.partialorder %v975, 0.0
      %v984 = vand.u32 %v975, 2147483648
      %v985 = vsel %vm983, %v984, %v982
      %v986 = vrsqrt.pop %v976
      %v987 = vmul.f32 %v976, %v986
      %vm988 = vcmp.eq.f32.partialorder %v976, inf
      %v989 = vsel %vm988, %v976, %v987
      %vm990 = vcmp.eq.f32.partialorder %v976, 0.0
      %v991 = vand.u32 %v976, 2147483648
      %v992 = vsel %vm990, %v991, %v989
      %v993 = vrsqrt.pop %v977
      %v994 = vmul.f32 %v977, %v993
      %vm995 = vcmp.eq.f32.partialorder %v977, inf
      %v996 = vsel %vm995, %v977, %v994
      %vm997 = vcmp.eq.f32.partialorder %v977, 0.0
      %v998 = vand.u32 %v977, 2147483648
      %v999 = vsel %vm997, %v998, %v996
      %v1000 = vrsqrt.pop %v978
      %v1001 = vmul.f32 %v978, %v1000
      %vm1002 = vcmp.eq.f32.partialorder %v978, inf
      %v1003 = vsel %vm1002, %v978, %v1001
      %vm1004 = vcmp.eq.f32.partialorder %v978, 0.0
      %v1005 = vand.u32 %v978, 2147483648
      %v1006 = vsel %vm1004, %v1005, %v1003
      %v1007 = vadd.f32 %v935, %v985
      %v1008 = vadd.f32 %v936, %v992
      %v1009 = vadd.f32 %v937, %v999
      %v1010 = vadd.f32 %v938, %v1006
      %v1011 = vmul.f32 %v1007, 0.33333334
      %v1012 = vmul.f32 %v1008, 0.33333334
      %v1013 = vmul.f32 %v1009, 0.33333334
      %v1014 = vmul.f32 %v1010, 0.33333334
      %vm1015 = vcmp.le.f32.partialorder %v875, %v867
      %vm1016 = vcmp.le.f32.partialorder %v876, %v868
      %vm1017 = vcmp.le.f32.partialorder %v877, %v869
      %vm1018 = vcmp.le.f32.partialorder %v878, %v870
      %vm1019 = vcmp.le.f32.partialorder %v931, %v871
      %vm1020 = vcmp.le.f32.partialorder %v932, %v872
      %vm1021 = vcmp.le.f32.partialorder %v933, %v873
      %vm1022 = vcmp.le.f32.partialorder %v934, %v874
      %v1023 = vsel %vm1019, %v931, %v1011
      %v1024 = vsel %vm1020, %v932, %v1012
      %v1025 = vsel %vm1021, %v933, %v1013
      %v1026 = vsel %vm1022, %v934, %v1014
      %v1027 = vsel %vm1015, %v875, %v1023
      %v1028 = vsel %vm1016, %v876, %v1024
      %v1029 = vsel %vm1017, %v877, %v1025
      %v1030 = vsel %vm1018, %v878, %v1026
      %v1031 = vmin.f32 %v747, %v1027
      %v1032 = vmin.f32 %v748, %v1028
      %v1033 = vmin.f32 %v749, %v1029
      %v1034 = vmin.f32 %v750, %v1030
      %v1035 = vrot.slane %v1031, 7
      %v1036 = vrot.slane %v1032, 7
      %v1037 = vrot.slane %v1033, 7
      %v1038 = vrot.slane %v1034, 7
      %v1039 = vsel %vm179, %v1035, %v1037
      %v1040 = vsel %vm179, %v1036, %v1038
      %v1041 = vsel %vm179, %v1037, %v1035
      %v1042 = vsel %vm179, %v1038, %v1036
      %v1043 = vmax.f32 %v1041, %v136
      %v1044 = vmax.f32 %v1042, %v137
      %v1045 = vmax.f32 %v1039, %v138
      %v1046 = vmax.f32 %v1040, %v139
      %v1047 = vrot.slane %v1031, 1
      %v1048 = vrot.slane %v1032, 1
      %v1049 = vrot.slane %v1033, 1
      %v1050 = vrot.slane %v1034, 1
      %v1051 = vsel %vm192, %v1047, %v1049
      %v1052 = vsel %vm192, %v1048, %v1050
      %v1053 = vsel %vm192, %v1049, %v1047
      %v1054 = vsel %vm192, %v1050, %v1048
      %v1055 = vmax.f32 %v1051, %v140
      %v1056 = vmax.f32 %v1052, %v141
      %v1057 = vmax.f32 %v1053, %v142
      %v1058 = vmax.f32 %v1054, %v143
      %v1059 = vmin.f32 %v1043, %v1055
      %v1060 = vmin.f32 %v1044, %v1056
      %v1061 = vmin.f32 %v1045, %v1057
      %v1062 = vmin.f32 %v1046, %v1058
      %1063 = vrot.lane.b32.xlu0 %v1031, 16
      %v1064 = vpop.permute.xlu0 %1063
      %1065 = vrot.lane.b32.xlu0 %v1033, 16
      %v1066 = vpop.permute.xlu0 %1065
      %1067 = vrot.lane.b32.xlu0 %v1032, 16
      %v1068 = vpop.permute.xlu0 %1067
      %1069 = vrot.lane.b32.xlu0 %v1034, 16
      %v1070 = vpop.permute.xlu0 %1069
      %v1071 = vsel %vm215, %v1064, %v1068
      %v1072 = vsel %vm215, %v1066, %v1070
      %v1073 = vsel %vm215, %v1068, %v1064
      %v1074 = vsel %vm215, %v1070, %v1066
      %v1075 = vmax.f32 %v1073, %v144
      %v1076 = vmax.f32 %v1071, %v145
      %v1077 = vmax.f32 %v1074, %v146
      %v1078 = vmax.f32 %v1072, %v147
      %1079 = vrot.lane.b32.xlu0 %v1031, 112
      %v1080 = vpop.permute.xlu0 %1079
      %1081 = vrot.lane.b32.xlu0 %v1033, 112
      %v1082 = vpop.permute.xlu0 %1081
      %1083 = vrot.lane.b32.xlu0 %v1032, 112
      %v1084 = vpop.permute.xlu0 %1083
      %1085 = vrot.lane.b32.xlu0 %v1034, 112
      %v1086 = vpop.permute.xlu0 %1085
      %v1087 = vsel %vm232, %v1080, %v1084
      %v1088 = vsel %vm232, %v1082, %v1086
      %v1089 = vsel %vm232, %v1084, %v1080
      %v1090 = vsel %vm232, %v1086, %v1082
      %v1091 = vmax.f32 %v1087, %v148
      %v1092 = vmax.f32 %v1089, %v149
      %v1093 = vmax.f32 %v1088, %v150
      %v1094 = vmax.f32 %v1090, %v151
      %v1095 = vmin.f32 %v1075, %v1091
      %v1096 = vmin.f32 %v1076, %v1092
      %v1097 = vmin.f32 %v1077, %v1093
      %v1098 = vmin.f32 %v1078, %v1094
      %1099 = vrot.lane.b32.xlu0 %v1031, 1
      %v1100 = vpop.permute.xlu0 %1099
      %1101 = vrot.lane.b32.xlu0 %v1033, 1
      %v1102 = vpop.permute.xlu0 %1101
      %1103 = vrot.lane.b32.xlu0 %v1032, 1
      %v1104 = vpop.permute.xlu0 %1103
      %1105 = vrot.lane.b32.xlu0 %v1034, 1
      %v1106 = vpop.permute.xlu0 %1105
      %v1107 = vsel %vm253, %v1100, %v1104
      %v1108 = vsel %vm253, %v1102, %v1106
      %v1109 = vsel %vm253, %v1104, %v1100
      %v1110 = vsel %vm253, %v1106, %v1102
      %v1111 = vmax.f32 %v1109, %v152
      %v1112 = vmax.f32 %v1107, %v153
      %v1113 = vmax.f32 %v1110, %v154
      %v1114 = vmax.f32 %v1108, %v155
      %1115 = vrot.lane.b32.xlu0 %v1031, 127
      %v1116 = vpop.permute.xlu0 %1115
      %1117 = vrot.lane.b32.xlu0 %v1033, 127
      %v1118 = vpop.permute.xlu0 %1117
      %1119 = vrot.lane.b32.xlu0 %v1032, 127
      %v1120 = vpop.permute.xlu0 %1119
      %1121 = vrot.lane.b32.xlu0 %v1034, 127
      %v1122 = vpop.permute.xlu0 %1121
      %v1123 = vsel %vm270, %v1116, %v1120
      %v1124 = vsel %vm270, %v1118, %v1122
      %v1125 = vsel %vm270, %v1120, %v1116
      %v1126 = vsel %vm270, %v1122, %v1118
      %v1127 = vmax.f32 %v1123, %v156
      %v1128 = vmax.f32 %v1125, %v157
      %v1129 = vmax.f32 %v1124, %v158
      %v1130 = vmax.f32 %v1126, %v159
      %v1131 = vmin.f32 %v1111, %v1127
      %v1132 = vmin.f32 %v1112, %v1128
      %v1133 = vmin.f32 %v1113, %v1129
      %v1134 = vmin.f32 %v1114, %v1130
      %v1135 = vmin.f32 %v1059, %v1095
      %v1136 = vmin.f32 %v1060, %v1096
      %v1137 = vmin.f32 %v1061, %v1097
      %v1138 = vmin.f32 %v1062, %v1098
      %v1139 = vmax.f32 %v1059, %v1095
      %v1140 = vmax.f32 %v1060, %v1096
      %v1141 = vmax.f32 %v1061, %v1097
      %v1142 = vmax.f32 %v1062, %v1098
      %v1143 = vmin.f32 %v1135, %v1131
      %v1144 = vmin.f32 %v1136, %v1132
      %v1145 = vmin.f32 %v1137, %v1133
      %v1146 = vmin.f32 %v1138, %v1134
      %v1147 = vmax.f32 %v1135, %v1131
      %v1148 = vmax.f32 %v1136, %v1132
      %v1149 = vmax.f32 %v1137, %v1133
      %v1150 = vmax.f32 %v1138, %v1134
      %v1151 = vmin.f32 %v1139, %v1147
      %v1152 = vmin.f32 %v1140, %v1148
      %v1153 = vmin.f32 %v1141, %v1149
      %v1154 = vmin.f32 %v1142, %v1150
      %v1155 = vmax.f32 %v1139, %v1147
      %v1156 = vmax.f32 %v1140, %v1148
      %v1157 = vmax.f32 %v1141, %v1149
      %v1158 = vmax.f32 %v1142, %v1150
      %v1159 = vadd.f32 %v1143, %v120
      %v1160 = vadd.f32 %v1144, %v121
      %v1161 = vadd.f32 %v1145, %v122
      %v1162 = vadd.f32 %v1146, %v123
      %v1163 = vsub.f32 %v1143, %v1151
      %v1164 = vsub.f32 %v1144, %v1152
      %v1165 = vsub.f32 %v1145, %v1153
      %v1166 = vsub.f32 %v1146, %v1154
      %v1167 = vmul.f32 %v1163, %v1163
      %v1168 = vmul.f32 %v1164, %v1164
      %v1169 = vmul.f32 %v1165, %v1165
      %v1170 = vmul.f32 %v1166, %v1166
      %v1171 = vsub.f32 %v128, %v1167
      %v1172 = vsub.f32 %v129, %v1168
      %v1173 = vsub.f32 %v130, %v1169
      %v1174 = vsub.f32 %v131, %v1170
      %v1175 = vmax.f32 %v1171, 0.0
      %v1176 = vmax.f32 %v1172, 0.0
      %v1177 = vmax.f32 %v1173, 0.0
      %v1178 = vmax.f32 %v1174, 0.0
      %v1179 = vadd.f32 %v1143, %v1151
      %v1180 = vadd.f32 %v1144, %v1152
      %v1181 = vadd.f32 %v1145, %v1153
      %v1182 = vadd.f32 %v1146, %v1154
      %v1183 = vrsqrt.pop %v1175
      %v1184 = vmul.f32 %v1175, %v1183
      %vm1185 = vcmp.eq.f32.partialorder %v1175, inf
      %v1186 = vsel %vm1185, %v1175, %v1184
      %vm1187 = vcmp.eq.f32.partialorder %v1175, 0.0
      %v1188 = vand.u32 %v1175, 2147483648
      %v1189 = vsel %vm1187, %v1188, %v1186
      %v1190 = vrsqrt.pop %v1176
      %v1191 = vmul.f32 %v1176, %v1190
      %vm1192 = vcmp.eq.f32.partialorder %v1176, inf
      %v1193 = vsel %vm1192, %v1176, %v1191
      %vm1194 = vcmp.eq.f32.partialorder %v1176, 0.0
      %v1195 = vand.u32 %v1176, 2147483648
      %v1196 = vsel %vm1194, %v1195, %v1193
      %v1197 = vrsqrt.pop %v1177
      %v1198 = vmul.f32 %v1177, %v1197
      %vm1199 = vcmp.eq.f32.partialorder %v1177, inf
      %v1200 = vsel %vm1199, %v1177, %v1198
      %vm1201 = vcmp.eq.f32.partialorder %v1177, 0.0
      %v1202 = vand.u32 %v1177, 2147483648
      %v1203 = vsel %vm1201, %v1202, %v1200
      %v1204 = vrsqrt.pop %v1178
      %v1205 = vmul.f32 %v1178, %v1204
      %vm1206 = vcmp.eq.f32.partialorder %v1178, inf
      %v1207 = vsel %vm1206, %v1178, %v1205
      %vm1208 = vcmp.eq.f32.partialorder %v1178, 0.0
      %v1209 = vand.u32 %v1178, 2147483648
      %v1210 = vsel %vm1208, %v1209, %v1207
      %v1211 = vadd.f32 %v1179, %v1189
      %v1212 = vadd.f32 %v1180, %v1196
      %v1213 = vadd.f32 %v1181, %v1203
      %v1214 = vadd.f32 %v1182, %v1210
      %v1215 = vmul.f32 %v1211, 0.5
      %v1216 = vmul.f32 %v1212, 0.5
      %v1217 = vmul.f32 %v1213, 0.5
      %v1218 = vmul.f32 %v1214, 0.5
      %v1219 = vadd.f32 %v1179, %v1155
      %v1220 = vadd.f32 %v1180, %v1156
      %v1221 = vadd.f32 %v1181, %v1157
      %v1222 = vadd.f32 %v1182, %v1158
      %v1223 = vmul.f32 %v1219, %v1219
      %v1224 = vmul.f32 %v1220, %v1220
      %v1225 = vmul.f32 %v1221, %v1221
      %v1226 = vmul.f32 %v1222, %v1222
      %v1227 = vmul.f32 %v1143, %v1143
      %v1228 = vmul.f32 %v1144, %v1144
      %v1229 = vmul.f32 %v1145, %v1145
      %v1230 = vmul.f32 %v1146, %v1146
      %v1231 = vmul.f32 %v1151, %v1151
      %v1232 = vmul.f32 %v1152, %v1152
      %v1233 = vmul.f32 %v1153, %v1153
      %v1234 = vmul.f32 %v1154, %v1154
      %v1235 = vadd.f32 %v1227, %v1231
      %v1236 = vadd.f32 %v1228, %v1232
      %v1237 = vadd.f32 %v1229, %v1233
      %v1238 = vadd.f32 %v1230, %v1234
      %v1239 = vmul.f32 %v1155, %v1155
      %v1240 = vmul.f32 %v1156, %v1156
      %v1241 = vmul.f32 %v1157, %v1157
      %v1242 = vmul.f32 %v1158, %v1158
      %v1243 = vadd.f32 %v1235, %v1239
      %v1244 = vadd.f32 %v1236, %v1240
      %v1245 = vadd.f32 %v1237, %v1241
      %v1246 = vadd.f32 %v1238, %v1242
      %v1247 = vmul.f32 %v1243, 3.0
      %v1248 = vmul.f32 %v1244, 3.0
      %v1249 = vmul.f32 %v1245, 3.0
      %v1250 = vmul.f32 %v1246, 3.0
      %v1251 = vsub.f32 %v1223, %v1247
      %v1252 = vsub.f32 %v1224, %v1248
      %v1253 = vsub.f32 %v1225, %v1249
      %v1254 = vsub.f32 %v1226, %v1250
      %v1255 = vadd.f32 %v1251, %v132
      %v1256 = vadd.f32 %v1252, %v133
      %v1257 = vadd.f32 %v1253, %v134
      %v1258 = vadd.f32 %v1254, %v135
      %v1259 = vmax.f32 %v1255, 0.0
      %v1260 = vmax.f32 %v1256, 0.0
      %v1261 = vmax.f32 %v1257, 0.0
      %v1262 = vmax.f32 %v1258, 0.0
      %v1263 = vrsqrt.pop %v1259
      %v1264 = vmul.f32 %v1259, %v1263
      %vm1265 = vcmp.eq.f32.partialorder %v1259, inf
      %v1266 = vsel %vm1265, %v1259, %v1264
      %vm1267 = vcmp.eq.f32.partialorder %v1259, 0.0
      %v1268 = vand.u32 %v1259, 2147483648
      %v1269 = vsel %vm1267, %v1268, %v1266
      %v1270 = vrsqrt.pop %v1260
      %v1271 = vmul.f32 %v1260, %v1270
      %vm1272 = vcmp.eq.f32.partialorder %v1260, inf
      %v1273 = vsel %vm1272, %v1260, %v1271
      %vm1274 = vcmp.eq.f32.partialorder %v1260, 0.0
      %v1275 = vand.u32 %v1260, 2147483648
      %v1276 = vsel %vm1274, %v1275, %v1273
      %v1277 = vrsqrt.pop %v1261
      %v1278 = vmul.f32 %v1261, %v1277
      %vm1279 = vcmp.eq.f32.partialorder %v1261, inf
      %v1280 = vsel %vm1279, %v1261, %v1278
      %vm1281 = vcmp.eq.f32.partialorder %v1261, 0.0
      %v1282 = vand.u32 %v1261, 2147483648
      %v1283 = vsel %vm1281, %v1282, %v1280
      %v1284 = vrsqrt.pop %v1262
      %v1285 = vmul.f32 %v1262, %v1284
      %vm1286 = vcmp.eq.f32.partialorder %v1262, inf
      %v1287 = vsel %vm1286, %v1262, %v1285
      %vm1288 = vcmp.eq.f32.partialorder %v1262, 0.0
      %v1289 = vand.u32 %v1262, 2147483648
      %v1290 = vsel %vm1288, %v1289, %v1287
      %v1291 = vadd.f32 %v1219, %v1269
      %v1292 = vadd.f32 %v1220, %v1276
      %v1293 = vadd.f32 %v1221, %v1283
      %v1294 = vadd.f32 %v1222, %v1290
      %v1295 = vmul.f32 %v1291, 0.33333334
      %v1296 = vmul.f32 %v1292, 0.33333334
      %v1297 = vmul.f32 %v1293, 0.33333334
      %v1298 = vmul.f32 %v1294, 0.33333334
      %vm1299 = vcmp.le.f32.partialorder %v1159, %v1151
      %vm1300 = vcmp.le.f32.partialorder %v1160, %v1152
      %vm1301 = vcmp.le.f32.partialorder %v1161, %v1153
      %vm1302 = vcmp.le.f32.partialorder %v1162, %v1154
      %vm1303 = vcmp.le.f32.partialorder %v1215, %v1155
      %vm1304 = vcmp.le.f32.partialorder %v1216, %v1156
      %vm1305 = vcmp.le.f32.partialorder %v1217, %v1157
      %vm1306 = vcmp.le.f32.partialorder %v1218, %v1158
      %v1307 = vsel %vm1303, %v1215, %v1295
      %v1308 = vsel %vm1304, %v1216, %v1296
      %v1309 = vsel %vm1305, %v1217, %v1297
      %v1310 = vsel %vm1306, %v1218, %v1298
      %v1311 = vsel %vm1299, %v1159, %v1307
      %v1312 = vsel %vm1300, %v1160, %v1308
      %v1313 = vsel %vm1301, %v1161, %v1309
      %v1314 = vsel %vm1302, %v1162, %v1310
      %v1315 = vmin.f32 %v1031, %v1311
      %v1316 = vmin.f32 %v1032, %v1312
      %v1317 = vmin.f32 %v1033, %v1313
      %v1318 = vmin.f32 %v1034, %v1314
      %v1319 = vrot.slane %v1315, 7
      %v1320 = vrot.slane %v1316, 7
      %v1321 = vrot.slane %v1317, 7
      %v1322 = vrot.slane %v1318, 7
      %v1323 = vsel %vm179, %v1319, %v1321
      %v1324 = vsel %vm179, %v1320, %v1322
      %v1325 = vsel %vm179, %v1321, %v1319
      %v1326 = vsel %vm179, %v1322, %v1320
      %v1327 = vmax.f32 %v1325, %v136
      %v1328 = vmax.f32 %v1326, %v137
      %v1329 = vmax.f32 %v1323, %v138
      %v1330 = vmax.f32 %v1324, %v139
      %v1331 = vrot.slane %v1315, 1
      %v1332 = vrot.slane %v1316, 1
      %v1333 = vrot.slane %v1317, 1
      %v1334 = vrot.slane %v1318, 1
      %v1335 = vsel %vm192, %v1331, %v1333
      %v1336 = vsel %vm192, %v1332, %v1334
      %v1337 = vsel %vm192, %v1333, %v1331
      %v1338 = vsel %vm192, %v1334, %v1332
      %v1339 = vmax.f32 %v1335, %v140
      %v1340 = vmax.f32 %v1336, %v141
      %v1341 = vmax.f32 %v1337, %v142
      %v1342 = vmax.f32 %v1338, %v143
      %v1343 = vmin.f32 %v1327, %v1339
      %v1344 = vmin.f32 %v1328, %v1340
      %v1345 = vmin.f32 %v1329, %v1341
      %v1346 = vmin.f32 %v1330, %v1342
      %1347 = vrot.lane.b32.xlu0 %v1315, 16
      %v1348 = vpop.permute.xlu0 %1347
      %1349 = vrot.lane.b32.xlu0 %v1317, 16
      %v1350 = vpop.permute.xlu0 %1349
      %1351 = vrot.lane.b32.xlu0 %v1316, 16
      %v1352 = vpop.permute.xlu0 %1351
      %1353 = vrot.lane.b32.xlu0 %v1318, 16
      %v1354 = vpop.permute.xlu0 %1353
      %v1355 = vsel %vm215, %v1348, %v1352
      %v1356 = vsel %vm215, %v1350, %v1354
      %v1357 = vsel %vm215, %v1352, %v1348
      %v1358 = vsel %vm215, %v1354, %v1350
      %v1359 = vmax.f32 %v1357, %v144
      %v1360 = vmax.f32 %v1355, %v145
      %v1361 = vmax.f32 %v1358, %v146
      %v1362 = vmax.f32 %v1356, %v147
      %1363 = vrot.lane.b32.xlu0 %v1315, 112
      %v1364 = vpop.permute.xlu0 %1363
      %1365 = vrot.lane.b32.xlu0 %v1317, 112
      %v1366 = vpop.permute.xlu0 %1365
      %1367 = vrot.lane.b32.xlu0 %v1316, 112
      %v1368 = vpop.permute.xlu0 %1367
      %1369 = vrot.lane.b32.xlu0 %v1318, 112
      %v1370 = vpop.permute.xlu0 %1369
      %v1371 = vsel %vm232, %v1364, %v1368
      %v1372 = vsel %vm232, %v1366, %v1370
      %v1373 = vsel %vm232, %v1368, %v1364
      %v1374 = vsel %vm232, %v1370, %v1366
      %v1375 = vmax.f32 %v1371, %v148
      %v1376 = vmax.f32 %v1373, %v149
      %v1377 = vmax.f32 %v1372, %v150
      %v1378 = vmax.f32 %v1374, %v151
      %v1379 = vmin.f32 %v1359, %v1375
      %v1380 = vmin.f32 %v1360, %v1376
      %v1381 = vmin.f32 %v1361, %v1377
      %v1382 = vmin.f32 %v1362, %v1378
      %1383 = vrot.lane.b32.xlu0 %v1315, 1
      %v1384 = vpop.permute.xlu0 %1383
      %1385 = vrot.lane.b32.xlu0 %v1317, 1
      %v1386 = vpop.permute.xlu0 %1385
      %1387 = vrot.lane.b32.xlu0 %v1316, 1
      %v1388 = vpop.permute.xlu0 %1387
      %1389 = vrot.lane.b32.xlu0 %v1318, 1
      %v1390 = vpop.permute.xlu0 %1389
      %v1391 = vsel %vm253, %v1384, %v1388
      %v1392 = vsel %vm253, %v1386, %v1390
      %v1393 = vsel %vm253, %v1388, %v1384
      %v1394 = vsel %vm253, %v1390, %v1386
      %v1395 = vmax.f32 %v1393, %v152
      %v1396 = vmax.f32 %v1391, %v153
      %v1397 = vmax.f32 %v1394, %v154
      %v1398 = vmax.f32 %v1392, %v155
      %1399 = vrot.lane.b32.xlu0 %v1315, 127
      %v1400 = vpop.permute.xlu0 %1399
      %1401 = vrot.lane.b32.xlu0 %v1317, 127
      %v1402 = vpop.permute.xlu0 %1401
      %1403 = vrot.lane.b32.xlu0 %v1316, 127
      %v1404 = vpop.permute.xlu0 %1403
      %1405 = vrot.lane.b32.xlu0 %v1318, 127
      %v1406 = vpop.permute.xlu0 %1405
      %v1407 = vsel %vm270, %v1400, %v1404
      %v1408 = vsel %vm270, %v1402, %v1406
      %v1409 = vsel %vm270, %v1404, %v1400
      %v1410 = vsel %vm270, %v1406, %v1402
      %v1411 = vmax.f32 %v1407, %v156
      %v1412 = vmax.f32 %v1409, %v157
      %v1413 = vmax.f32 %v1408, %v158
      %v1414 = vmax.f32 %v1410, %v159
      %v1415 = vmin.f32 %v1395, %v1411
      %v1416 = vmin.f32 %v1396, %v1412
      %v1417 = vmin.f32 %v1397, %v1413
      %v1418 = vmin.f32 %v1398, %v1414
      %v1419 = vmin.f32 %v1343, %v1379
      %v1420 = vmin.f32 %v1344, %v1380
      %v1421 = vmin.f32 %v1345, %v1381
      %v1422 = vmin.f32 %v1346, %v1382
      %v1423 = vmax.f32 %v1343, %v1379
      %v1424 = vmax.f32 %v1344, %v1380
      %v1425 = vmax.f32 %v1345, %v1381
      %v1426 = vmax.f32 %v1346, %v1382
      %v1427 = vmin.f32 %v1419, %v1415
      %v1428 = vmin.f32 %v1420, %v1416
      %v1429 = vmin.f32 %v1421, %v1417
      %v1430 = vmin.f32 %v1422, %v1418
      %v1431 = vmax.f32 %v1419, %v1415
      %v1432 = vmax.f32 %v1420, %v1416
      %v1433 = vmax.f32 %v1421, %v1417
      %v1434 = vmax.f32 %v1422, %v1418
      %v1435 = vmin.f32 %v1423, %v1431
      %v1436 = vmin.f32 %v1424, %v1432
      %v1437 = vmin.f32 %v1425, %v1433
      %v1438 = vmin.f32 %v1426, %v1434
      %v1439 = vmax.f32 %v1423, %v1431
      %v1440 = vmax.f32 %v1424, %v1432
      %v1441 = vmax.f32 %v1425, %v1433
      %v1442 = vmax.f32 %v1426, %v1434
      %v1443 = vadd.f32 %v1427, %v120
      %v1444 = vadd.f32 %v1428, %v121
      %v1445 = vadd.f32 %v1429, %v122
      %v1446 = vadd.f32 %v1430, %v123
      %v1447 = vsub.f32 %v1427, %v1435
      %v1448 = vsub.f32 %v1428, %v1436
      %v1449 = vsub.f32 %v1429, %v1437
      %v1450 = vsub.f32 %v1430, %v1438
      %v1451 = vmul.f32 %v1447, %v1447
      %v1452 = vmul.f32 %v1448, %v1448
      %v1453 = vmul.f32 %v1449, %v1449
      %v1454 = vmul.f32 %v1450, %v1450
      %v1455 = vsub.f32 %v128, %v1451
      %v1456 = vsub.f32 %v129, %v1452
      %v1457 = vsub.f32 %v130, %v1453
      %v1458 = vsub.f32 %v131, %v1454
      %v1459 = vmax.f32 %v1455, 0.0
      %v1460 = vmax.f32 %v1456, 0.0
      %v1461 = vmax.f32 %v1457, 0.0
      %v1462 = vmax.f32 %v1458, 0.0
      %v1463 = vadd.f32 %v1427, %v1435
      %v1464 = vadd.f32 %v1428, %v1436
      %v1465 = vadd.f32 %v1429, %v1437
      %v1466 = vadd.f32 %v1430, %v1438
      %v1467 = vrsqrt.pop %v1459
      %v1468 = vmul.f32 %v1459, %v1467
      %vm1469 = vcmp.eq.f32.partialorder %v1459, inf
      %v1470 = vsel %vm1469, %v1459, %v1468
      %vm1471 = vcmp.eq.f32.partialorder %v1459, 0.0
      %v1472 = vand.u32 %v1459, 2147483648
      %v1473 = vsel %vm1471, %v1472, %v1470
      %v1474 = vrsqrt.pop %v1460
      %v1475 = vmul.f32 %v1460, %v1474
      %vm1476 = vcmp.eq.f32.partialorder %v1460, inf
      %v1477 = vsel %vm1476, %v1460, %v1475
      %vm1478 = vcmp.eq.f32.partialorder %v1460, 0.0
      %v1479 = vand.u32 %v1460, 2147483648
      %v1480 = vsel %vm1478, %v1479, %v1477
      %v1481 = vrsqrt.pop %v1461
      %v1482 = vmul.f32 %v1461, %v1481
      %vm1483 = vcmp.eq.f32.partialorder %v1461, inf
      %v1484 = vsel %vm1483, %v1461, %v1482
      %vm1485 = vcmp.eq.f32.partialorder %v1461, 0.0
      %v1486 = vand.u32 %v1461, 2147483648
      %v1487 = vsel %vm1485, %v1486, %v1484
      %v1488 = vrsqrt.pop %v1462
      %v1489 = vmul.f32 %v1462, %v1488
      %vm1490 = vcmp.eq.f32.partialorder %v1462, inf
      %v1491 = vsel %vm1490, %v1462, %v1489
      %vm1492 = vcmp.eq.f32.partialorder %v1462, 0.0
      %v1493 = vand.u32 %v1462, 2147483648
      %v1494 = vsel %vm1492, %v1493, %v1491
      %v1495 = vadd.f32 %v1463, %v1473
      %v1496 = vadd.f32 %v1464, %v1480
      %v1497 = vadd.f32 %v1465, %v1487
      %v1498 = vadd.f32 %v1466, %v1494
      %v1499 = vmul.f32 %v1495, 0.5
      %v1500 = vmul.f32 %v1496, 0.5
      %v1501 = vmul.f32 %v1497, 0.5
      %v1502 = vmul.f32 %v1498, 0.5
      %v1503 = vadd.f32 %v1463, %v1439
      %v1504 = vadd.f32 %v1464, %v1440
      %v1505 = vadd.f32 %v1465, %v1441
      %v1506 = vadd.f32 %v1466, %v1442
      %v1507 = vmul.f32 %v1503, %v1503
      %v1508 = vmul.f32 %v1504, %v1504
      %v1509 = vmul.f32 %v1505, %v1505
      %v1510 = vmul.f32 %v1506, %v1506
      %v1511 = vmul.f32 %v1427, %v1427
      %v1512 = vmul.f32 %v1428, %v1428
      %v1513 = vmul.f32 %v1429, %v1429
      %v1514 = vmul.f32 %v1430, %v1430
      %v1515 = vmul.f32 %v1435, %v1435
      %v1516 = vmul.f32 %v1436, %v1436
      %v1517 = vmul.f32 %v1437, %v1437
      %v1518 = vmul.f32 %v1438, %v1438
      %v1519 = vadd.f32 %v1511, %v1515
      %v1520 = vadd.f32 %v1512, %v1516
      %v1521 = vadd.f32 %v1513, %v1517
      %v1522 = vadd.f32 %v1514, %v1518
      %v1523 = vmul.f32 %v1439, %v1439
      %v1524 = vmul.f32 %v1440, %v1440
      %v1525 = vmul.f32 %v1441, %v1441
      %v1526 = vmul.f32 %v1442, %v1442
      %v1527 = vadd.f32 %v1519, %v1523
      %v1528 = vadd.f32 %v1520, %v1524
      %v1529 = vadd.f32 %v1521, %v1525
      %v1530 = vadd.f32 %v1522, %v1526
      %v1531 = vmul.f32 %v1527, 3.0
      %v1532 = vmul.f32 %v1528, 3.0
      %v1533 = vmul.f32 %v1529, 3.0
      %v1534 = vmul.f32 %v1530, 3.0
      %v1535 = vsub.f32 %v1507, %v1531
      %v1536 = vsub.f32 %v1508, %v1532
      %v1537 = vsub.f32 %v1509, %v1533
      %v1538 = vsub.f32 %v1510, %v1534
      %v1539 = vadd.f32 %v1535, %v132
      %v1540 = vadd.f32 %v1536, %v133
      %v1541 = vadd.f32 %v1537, %v134
      %v1542 = vadd.f32 %v1538, %v135
      %v1543 = vmax.f32 %v1539, 0.0
      %v1544 = vmax.f32 %v1540, 0.0
      %v1545 = vmax.f32 %v1541, 0.0
      %v1546 = vmax.f32 %v1542, 0.0
      %v1547 = vrsqrt.pop %v1543
      %v1548 = vmul.f32 %v1543, %v1547
      %vm1549 = vcmp.eq.f32.partialorder %v1543, inf
      %v1550 = vsel %vm1549, %v1543, %v1548
      %vm1551 = vcmp.eq.f32.partialorder %v1543, 0.0
      %v1552 = vand.u32 %v1543, 2147483648
      %v1553 = vsel %vm1551, %v1552, %v1550
      %v1554 = vrsqrt.pop %v1544
      %v1555 = vmul.f32 %v1544, %v1554
      %vm1556 = vcmp.eq.f32.partialorder %v1544, inf
      %v1557 = vsel %vm1556, %v1544, %v1555
      %vm1558 = vcmp.eq.f32.partialorder %v1544, 0.0
      %v1559 = vand.u32 %v1544, 2147483648
      %v1560 = vsel %vm1558, %v1559, %v1557
      %v1561 = vrsqrt.pop %v1545
      %v1562 = vmul.f32 %v1545, %v1561
      %vm1563 = vcmp.eq.f32.partialorder %v1545, inf
      %v1564 = vsel %vm1563, %v1545, %v1562
      %vm1565 = vcmp.eq.f32.partialorder %v1545, 0.0
      %v1566 = vand.u32 %v1545, 2147483648
      %v1567 = vsel %vm1565, %v1566, %v1564
      %v1568 = vrsqrt.pop %v1546
      %v1569 = vmul.f32 %v1546, %v1568
      %vm1570 = vcmp.eq.f32.partialorder %v1546, inf
      %v1571 = vsel %vm1570, %v1546, %v1569
      %vm1572 = vcmp.eq.f32.partialorder %v1546, 0.0
      %v1573 = vand.u32 %v1546, 2147483648
      %v1574 = vsel %vm1572, %v1573, %v1571
      %v1575 = vadd.f32 %v1503, %v1553
      %v1576 = vadd.f32 %v1504, %v1560
      %v1577 = vadd.f32 %v1505, %v1567
      %v1578 = vadd.f32 %v1506, %v1574
      %v1579 = vmul.f32 %v1575, 0.33333334
      %v1580 = vmul.f32 %v1576, 0.33333334
      %v1581 = vmul.f32 %v1577, 0.33333334
      %v1582 = vmul.f32 %v1578, 0.33333334
      %vm1583 = vcmp.le.f32.partialorder %v1443, %v1435
      %vm1584 = vcmp.le.f32.partialorder %v1444, %v1436
      %vm1585 = vcmp.le.f32.partialorder %v1445, %v1437
      %vm1586 = vcmp.le.f32.partialorder %v1446, %v1438
      %vm1587 = vcmp.le.f32.partialorder %v1499, %v1439
      %vm1588 = vcmp.le.f32.partialorder %v1500, %v1440
      %vm1589 = vcmp.le.f32.partialorder %v1501, %v1441
      %vm1590 = vcmp.le.f32.partialorder %v1502, %v1442
      %v1591 = vsel %vm1587, %v1499, %v1579
      %v1592 = vsel %vm1588, %v1500, %v1580
      %v1593 = vsel %vm1589, %v1501, %v1581
      %v1594 = vsel %vm1590, %v1502, %v1582
      %v1595 = vsel %vm1583, %v1443, %v1591
      %v1596 = vsel %vm1584, %v1444, %v1592
      %v1597 = vsel %vm1585, %v1445, %v1593
      %v1598 = vsel %vm1586, %v1446, %v1594
      %v1599 = vmin.f32 %v1315, %v1595
      %v1600 = vmin.f32 %v1316, %v1596
      %v1601 = vmin.f32 %v1317, %v1597
      %v1602 = vmin.f32 %v1318, %v1598
      %v1603 = vrot.slane %v1599, 7
      %v1604 = vrot.slane %v1600, 7
      %v1605 = vrot.slane %v1601, 7
      %v1606 = vrot.slane %v1602, 7
      %v1607 = vsel %vm179, %v1603, %v1605
      %v1608 = vsel %vm179, %v1604, %v1606
      %v1609 = vsel %vm179, %v1605, %v1603
      %v1610 = vsel %vm179, %v1606, %v1604
      %v1611 = vmax.f32 %v1609, %v136
      %v1612 = vmax.f32 %v1610, %v137
      %v1613 = vmax.f32 %v1607, %v138
      %v1614 = vmax.f32 %v1608, %v139
      %v1615 = vrot.slane %v1599, 1
      %v1616 = vrot.slane %v1600, 1
      %v1617 = vrot.slane %v1601, 1
      %v1618 = vrot.slane %v1602, 1
      %v1619 = vsel %vm192, %v1615, %v1617
      %v1620 = vsel %vm192, %v1616, %v1618
      %v1621 = vsel %vm192, %v1617, %v1615
      %v1622 = vsel %vm192, %v1618, %v1616
      %v1623 = vmax.f32 %v1619, %v140
      %v1624 = vmax.f32 %v1620, %v141
      %v1625 = vmax.f32 %v1621, %v142
      %v1626 = vmax.f32 %v1622, %v143
      %v1627 = vmin.f32 %v1611, %v1623
      %v1628 = vmin.f32 %v1612, %v1624
      %v1629 = vmin.f32 %v1613, %v1625
      %v1630 = vmin.f32 %v1614, %v1626
      %1631 = vrot.lane.b32.xlu0 %v1599, 16
      %v1632 = vpop.permute.xlu0 %1631
      %1633 = vrot.lane.b32.xlu0 %v1601, 16
      %v1634 = vpop.permute.xlu0 %1633
      %1635 = vrot.lane.b32.xlu0 %v1600, 16
      %v1636 = vpop.permute.xlu0 %1635
      %1637 = vrot.lane.b32.xlu0 %v1602, 16
      %v1638 = vpop.permute.xlu0 %1637
      %v1639 = vsel %vm215, %v1632, %v1636
      %v1640 = vsel %vm215, %v1634, %v1638
      %v1641 = vsel %vm215, %v1636, %v1632
      %v1642 = vsel %vm215, %v1638, %v1634
      %v1643 = vmax.f32 %v1641, %v144
      %v1644 = vmax.f32 %v1639, %v145
      %v1645 = vmax.f32 %v1642, %v146
      %v1646 = vmax.f32 %v1640, %v147
      %1647 = vrot.lane.b32.xlu0 %v1599, 112
      %v1648 = vpop.permute.xlu0 %1647
      %1649 = vrot.lane.b32.xlu0 %v1601, 112
      %v1650 = vpop.permute.xlu0 %1649
      %1651 = vrot.lane.b32.xlu0 %v1600, 112
      %v1652 = vpop.permute.xlu0 %1651
      %1653 = vrot.lane.b32.xlu0 %v1602, 112
      %v1654 = vpop.permute.xlu0 %1653
      %v1655 = vsel %vm232, %v1648, %v1652
      %v1656 = vsel %vm232, %v1650, %v1654
      %v1657 = vsel %vm232, %v1652, %v1648
      %v1658 = vsel %vm232, %v1654, %v1650
      %v1659 = vmax.f32 %v1655, %v148
      %v1660 = vmax.f32 %v1657, %v149
      %v1661 = vmax.f32 %v1656, %v150
      %v1662 = vmax.f32 %v1658, %v151
      %v1663 = vmin.f32 %v1643, %v1659
      %v1664 = vmin.f32 %v1644, %v1660
      %v1665 = vmin.f32 %v1645, %v1661
      %v1666 = vmin.f32 %v1646, %v1662
      %1667 = vrot.lane.b32.xlu0 %v1599, 1
      %v1668 = vpop.permute.xlu0 %1667
      %1669 = vrot.lane.b32.xlu0 %v1601, 1
      %v1670 = vpop.permute.xlu0 %1669
      %1671 = vrot.lane.b32.xlu0 %v1600, 1
      %v1672 = vpop.permute.xlu0 %1671
      %1673 = vrot.lane.b32.xlu0 %v1602, 1
      %v1674 = vpop.permute.xlu0 %1673
      %v1675 = vsel %vm253, %v1668, %v1672
      %v1676 = vsel %vm253, %v1670, %v1674
      %v1677 = vsel %vm253, %v1672, %v1668
      %v1678 = vsel %vm253, %v1674, %v1670
      %v1679 = vmax.f32 %v1677, %v152
      %v1680 = vmax.f32 %v1675, %v153
      %v1681 = vmax.f32 %v1678, %v154
      %v1682 = vmax.f32 %v1676, %v155
      %1683 = vrot.lane.b32.xlu0 %v1599, 127
      %v1684 = vpop.permute.xlu0 %1683
      %1685 = vrot.lane.b32.xlu0 %v1601, 127
      %v1686 = vpop.permute.xlu0 %1685
      %1687 = vrot.lane.b32.xlu0 %v1600, 127
      %v1688 = vpop.permute.xlu0 %1687
      %1689 = vrot.lane.b32.xlu0 %v1602, 127
      %v1690 = vpop.permute.xlu0 %1689
      %v1691 = vsel %vm270, %v1684, %v1688
      %v1692 = vsel %vm270, %v1686, %v1690
      %v1693 = vsel %vm270, %v1688, %v1684
      %v1694 = vsel %vm270, %v1690, %v1686
      %v1695 = vmax.f32 %v1691, %v156
      %v1696 = vmax.f32 %v1693, %v157
      %v1697 = vmax.f32 %v1692, %v158
      %v1698 = vmax.f32 %v1694, %v159
      %v1699 = vmin.f32 %v1679, %v1695
      %v1700 = vmin.f32 %v1680, %v1696
      %v1701 = vmin.f32 %v1681, %v1697
      %v1702 = vmin.f32 %v1682, %v1698
      %v1703 = vmin.f32 %v1627, %v1663
      %v1704 = vmin.f32 %v1628, %v1664
      %v1705 = vmin.f32 %v1629, %v1665
      %v1706 = vmin.f32 %v1630, %v1666
      %v1707 = vmax.f32 %v1627, %v1663
      %v1708 = vmax.f32 %v1628, %v1664
      %v1709 = vmax.f32 %v1629, %v1665
      %v1710 = vmax.f32 %v1630, %v1666
      %v1711 = vmin.f32 %v1703, %v1699
      %v1712 = vmin.f32 %v1704, %v1700
      %v1713 = vmin.f32 %v1705, %v1701
      %v1714 = vmin.f32 %v1706, %v1702
      %v1715 = vmax.f32 %v1703, %v1699
      %v1716 = vmax.f32 %v1704, %v1700
      %v1717 = vmax.f32 %v1705, %v1701
      %v1718 = vmax.f32 %v1706, %v1702
      %v1719 = vmin.f32 %v1707, %v1715
      %v1720 = vmin.f32 %v1708, %v1716
      %v1721 = vmin.f32 %v1709, %v1717
      %v1722 = vmin.f32 %v1710, %v1718
      %v1723 = vmax.f32 %v1707, %v1715
      %v1724 = vmax.f32 %v1708, %v1716
      %v1725 = vmax.f32 %v1709, %v1717
      %v1726 = vmax.f32 %v1710, %v1718
      %v1727 = vadd.f32 %v1711, %v120
      %v1728 = vadd.f32 %v1712, %v121
      %v1729 = vadd.f32 %v1713, %v122
      %v1730 = vadd.f32 %v1714, %v123
      %v1731 = vsub.f32 %v1711, %v1719
      %v1732 = vsub.f32 %v1712, %v1720
      %v1733 = vsub.f32 %v1713, %v1721
      %v1734 = vsub.f32 %v1714, %v1722
      %v1735 = vmul.f32 %v1731, %v1731
      %v1736 = vmul.f32 %v1732, %v1732
      %v1737 = vmul.f32 %v1733, %v1733
      %v1738 = vmul.f32 %v1734, %v1734
      %v1739 = vsub.f32 %v128, %v1735
      %v1740 = vsub.f32 %v129, %v1736
      %v1741 = vsub.f32 %v130, %v1737
      %v1742 = vsub.f32 %v131, %v1738
      %v1743 = vmax.f32 %v1739, 0.0
      %v1744 = vmax.f32 %v1740, 0.0
      %v1745 = vmax.f32 %v1741, 0.0
      %v1746 = vmax.f32 %v1742, 0.0
      %v1747 = vadd.f32 %v1711, %v1719
      %v1748 = vadd.f32 %v1712, %v1720
      %v1749 = vadd.f32 %v1713, %v1721
      %v1750 = vadd.f32 %v1714, %v1722
      %v1751 = vrsqrt.pop %v1743
      %v1752 = vmul.f32 %v1743, %v1751
      %vm1753 = vcmp.eq.f32.partialorder %v1743, inf
      %v1754 = vsel %vm1753, %v1743, %v1752
      %vm1755 = vcmp.eq.f32.partialorder %v1743, 0.0
      %v1756 = vand.u32 %v1743, 2147483648
      %v1757 = vsel %vm1755, %v1756, %v1754
      %v1758 = vrsqrt.pop %v1744
      %v1759 = vmul.f32 %v1744, %v1758
      %vm1760 = vcmp.eq.f32.partialorder %v1744, inf
      %v1761 = vsel %vm1760, %v1744, %v1759
      %vm1762 = vcmp.eq.f32.partialorder %v1744, 0.0
      %v1763 = vand.u32 %v1744, 2147483648
      %v1764 = vsel %vm1762, %v1763, %v1761
      %v1765 = vrsqrt.pop %v1745
      %v1766 = vmul.f32 %v1745, %v1765
      %vm1767 = vcmp.eq.f32.partialorder %v1745, inf
      %v1768 = vsel %vm1767, %v1745, %v1766
      %vm1769 = vcmp.eq.f32.partialorder %v1745, 0.0
      %v1770 = vand.u32 %v1745, 2147483648
      %v1771 = vsel %vm1769, %v1770, %v1768
      %v1772 = vrsqrt.pop %v1746
      %v1773 = vmul.f32 %v1746, %v1772
      %vm1774 = vcmp.eq.f32.partialorder %v1746, inf
      %v1775 = vsel %vm1774, %v1746, %v1773
      %vm1776 = vcmp.eq.f32.partialorder %v1746, 0.0
      %v1777 = vand.u32 %v1746, 2147483648
      %v1778 = vsel %vm1776, %v1777, %v1775
      %v1779 = vadd.f32 %v1747, %v1757
      %v1780 = vadd.f32 %v1748, %v1764
      %v1781 = vadd.f32 %v1749, %v1771
      %v1782 = vadd.f32 %v1750, %v1778
      %v1783 = vmul.f32 %v1779, 0.5
      %v1784 = vmul.f32 %v1780, 0.5
      %v1785 = vmul.f32 %v1781, 0.5
      %v1786 = vmul.f32 %v1782, 0.5
      %v1787 = vadd.f32 %v1747, %v1723
      %v1788 = vadd.f32 %v1748, %v1724
      %v1789 = vadd.f32 %v1749, %v1725
      %v1790 = vadd.f32 %v1750, %v1726
      %v1791 = vmul.f32 %v1787, %v1787
      %v1792 = vmul.f32 %v1788, %v1788
      %v1793 = vmul.f32 %v1789, %v1789
      %v1794 = vmul.f32 %v1790, %v1790
      %v1795 = vmul.f32 %v1711, %v1711
      %v1796 = vmul.f32 %v1712, %v1712
      %v1797 = vmul.f32 %v1713, %v1713
      %v1798 = vmul.f32 %v1714, %v1714
      %v1799 = vmul.f32 %v1719, %v1719
      %v1800 = vmul.f32 %v1720, %v1720
      %v1801 = vmul.f32 %v1721, %v1721
      %v1802 = vmul.f32 %v1722, %v1722
      %v1803 = vadd.f32 %v1795, %v1799
      %v1804 = vadd.f32 %v1796, %v1800
      %v1805 = vadd.f32 %v1797, %v1801
      %v1806 = vadd.f32 %v1798, %v1802
      %v1807 = vmul.f32 %v1723, %v1723
      %v1808 = vmul.f32 %v1724, %v1724
      %v1809 = vmul.f32 %v1725, %v1725
      %v1810 = vmul.f32 %v1726, %v1726
      %v1811 = vadd.f32 %v1803, %v1807
      %v1812 = vadd.f32 %v1804, %v1808
      %v1813 = vadd.f32 %v1805, %v1809
      %v1814 = vadd.f32 %v1806, %v1810
      %v1815 = vmul.f32 %v1811, 3.0
      %v1816 = vmul.f32 %v1812, 3.0
      %v1817 = vmul.f32 %v1813, 3.0
      %v1818 = vmul.f32 %v1814, 3.0
      %v1819 = vsub.f32 %v1791, %v1815
      %v1820 = vsub.f32 %v1792, %v1816
      %v1821 = vsub.f32 %v1793, %v1817
      %v1822 = vsub.f32 %v1794, %v1818
      %v1823 = vadd.f32 %v1819, %v132
      %v1824 = vadd.f32 %v1820, %v133
      %v1825 = vadd.f32 %v1821, %v134
      %v1826 = vadd.f32 %v1822, %v135
      %v1827 = vmax.f32 %v1823, 0.0
      %v1828 = vmax.f32 %v1824, 0.0
      %v1829 = vmax.f32 %v1825, 0.0
      %v1830 = vmax.f32 %v1826, 0.0
      %v1831 = vrsqrt.pop %v1827
      %v1832 = vmul.f32 %v1827, %v1831
      %vm1833 = vcmp.eq.f32.partialorder %v1827, inf
      %v1834 = vsel %vm1833, %v1827, %v1832
      %vm1835 = vcmp.eq.f32.partialorder %v1827, 0.0
      %v1836 = vand.u32 %v1827, 2147483648
      %v1837 = vsel %vm1835, %v1836, %v1834
      %v1838 = vrsqrt.pop %v1828
      %v1839 = vmul.f32 %v1828, %v1838
      %vm1840 = vcmp.eq.f32.partialorder %v1828, inf
      %v1841 = vsel %vm1840, %v1828, %v1839
      %vm1842 = vcmp.eq.f32.partialorder %v1828, 0.0
      %v1843 = vand.u32 %v1828, 2147483648
      %v1844 = vsel %vm1842, %v1843, %v1841
      %v1845 = vrsqrt.pop %v1829
      %v1846 = vmul.f32 %v1829, %v1845
      %vm1847 = vcmp.eq.f32.partialorder %v1829, inf
      %v1848 = vsel %vm1847, %v1829, %v1846
      %vm1849 = vcmp.eq.f32.partialorder %v1829, 0.0
      %v1850 = vand.u32 %v1829, 2147483648
      %v1851 = vsel %vm1849, %v1850, %v1848
      %v1852 = vrsqrt.pop %v1830
      %v1853 = vmul.f32 %v1830, %v1852
      %vm1854 = vcmp.eq.f32.partialorder %v1830, inf
      %v1855 = vsel %vm1854, %v1830, %v1853
      %vm1856 = vcmp.eq.f32.partialorder %v1830, 0.0
      %v1857 = vand.u32 %v1830, 2147483648
      %v1858 = vsel %vm1856, %v1857, %v1855
      %v1859 = vadd.f32 %v1787, %v1837
      %v1860 = vadd.f32 %v1788, %v1844
      %v1861 = vadd.f32 %v1789, %v1851
      %v1862 = vadd.f32 %v1790, %v1858
      %v1863 = vmul.f32 %v1859, 0.33333334
      %v1864 = vmul.f32 %v1860, 0.33333334
      %v1865 = vmul.f32 %v1861, 0.33333334
      %v1866 = vmul.f32 %v1862, 0.33333334
      %vm1867 = vcmp.le.f32.partialorder %v1727, %v1719
      %vm1868 = vcmp.le.f32.partialorder %v1728, %v1720
      %vm1869 = vcmp.le.f32.partialorder %v1729, %v1721
      %vm1870 = vcmp.le.f32.partialorder %v1730, %v1722
      %vm1871 = vcmp.le.f32.partialorder %v1783, %v1723
      %vm1872 = vcmp.le.f32.partialorder %v1784, %v1724
      %vm1873 = vcmp.le.f32.partialorder %v1785, %v1725
      %vm1874 = vcmp.le.f32.partialorder %v1786, %v1726
      %v1875 = vsel %vm1871, %v1783, %v1863
      %v1876 = vsel %vm1872, %v1784, %v1864
      %v1877 = vsel %vm1873, %v1785, %v1865
      %v1878 = vsel %vm1874, %v1786, %v1866
      %v1879 = vsel %vm1867, %v1727, %v1875
      %v1880 = vsel %vm1868, %v1728, %v1876
      %v1881 = vsel %vm1869, %v1729, %v1877
      %v1882 = vsel %vm1870, %v1730, %v1878
      %v1883 = vmin.f32 %v1599, %v1879
      %v1884 = vmin.f32 %v1600, %v1880
      %v1885 = vmin.f32 %v1601, %v1881
      %v1886 = vmin.f32 %v1602, %v1882
      %v1887 = vrot.slane %v1883, 7
      %v1888 = vrot.slane %v1884, 7
      %v1889 = vrot.slane %v1885, 7
      %v1890 = vrot.slane %v1886, 7
      %v1891 = vsel %vm179, %v1887, %v1889
      %v1892 = vsel %vm179, %v1888, %v1890
      %v1893 = vsel %vm179, %v1889, %v1887
      %v1894 = vsel %vm179, %v1890, %v1888
      %v1895 = vmax.f32 %v1893, %v136
      %v1896 = vmax.f32 %v1894, %v137
      %v1897 = vmax.f32 %v1891, %v138
      %v1898 = vmax.f32 %v1892, %v139
      %v1899 = vrot.slane %v1883, 1
      %v1900 = vrot.slane %v1884, 1
      %v1901 = vrot.slane %v1885, 1
      %v1902 = vrot.slane %v1886, 1
      %v1903 = vsel %vm192, %v1899, %v1901
      %v1904 = vsel %vm192, %v1900, %v1902
      %v1905 = vsel %vm192, %v1901, %v1899
      %v1906 = vsel %vm192, %v1902, %v1900
      %v1907 = vmax.f32 %v1903, %v140
      %v1908 = vmax.f32 %v1904, %v141
      %v1909 = vmax.f32 %v1905, %v142
      %v1910 = vmax.f32 %v1906, %v143
      %v1911 = vmin.f32 %v1895, %v1907
      %v1912 = vmin.f32 %v1896, %v1908
      %v1913 = vmin.f32 %v1897, %v1909
      %v1914 = vmin.f32 %v1898, %v1910
      %1915 = vrot.lane.b32.xlu0 %v1883, 16
      %v1916 = vpop.permute.xlu0 %1915
      %1917 = vrot.lane.b32.xlu0 %v1885, 16
      %v1918 = vpop.permute.xlu0 %1917
      %1919 = vrot.lane.b32.xlu0 %v1884, 16
      %v1920 = vpop.permute.xlu0 %1919
      %1921 = vrot.lane.b32.xlu0 %v1886, 16
      %v1922 = vpop.permute.xlu0 %1921
      %v1923 = vsel %vm215, %v1916, %v1920
      %v1924 = vsel %vm215, %v1918, %v1922
      %v1925 = vsel %vm215, %v1920, %v1916
      %v1926 = vsel %vm215, %v1922, %v1918
      %v1927 = vmax.f32 %v1925, %v144
      %v1928 = vmax.f32 %v1923, %v145
      %v1929 = vmax.f32 %v1926, %v146
      %v1930 = vmax.f32 %v1924, %v147
      %1931 = vrot.lane.b32.xlu0 %v1883, 112
      %v1932 = vpop.permute.xlu0 %1931
      %1933 = vrot.lane.b32.xlu0 %v1885, 112
      %v1934 = vpop.permute.xlu0 %1933
      %1935 = vrot.lane.b32.xlu0 %v1884, 112
      %v1936 = vpop.permute.xlu0 %1935
      %1937 = vrot.lane.b32.xlu0 %v1886, 112
      %v1938 = vpop.permute.xlu0 %1937
      %v1939 = vsel %vm232, %v1932, %v1936
      %v1940 = vsel %vm232, %v1934, %v1938
      %v1941 = vsel %vm232, %v1936, %v1932
      %v1942 = vsel %vm232, %v1938, %v1934
      %v1943 = vmax.f32 %v1939, %v148
      %v1944 = vmax.f32 %v1941, %v149
      %v1945 = vmax.f32 %v1940, %v150
      %v1946 = vmax.f32 %v1942, %v151
      %v1947 = vmin.f32 %v1927, %v1943
      %v1948 = vmin.f32 %v1928, %v1944
      %v1949 = vmin.f32 %v1929, %v1945
      %v1950 = vmin.f32 %v1930, %v1946
      %1951 = vrot.lane.b32.xlu0 %v1883, 1
      %v1952 = vpop.permute.xlu0 %1951
      %1953 = vrot.lane.b32.xlu0 %v1885, 1
      %v1954 = vpop.permute.xlu0 %1953
      %1955 = vrot.lane.b32.xlu0 %v1884, 1
      %v1956 = vpop.permute.xlu0 %1955
      %1957 = vrot.lane.b32.xlu0 %v1886, 1
      %v1958 = vpop.permute.xlu0 %1957
      %v1959 = vsel %vm253, %v1952, %v1956
      %v1960 = vsel %vm253, %v1954, %v1958
      %v1961 = vsel %vm253, %v1956, %v1952
      %v1962 = vsel %vm253, %v1958, %v1954
      %v1963 = vmax.f32 %v1961, %v152
      %v1964 = vmax.f32 %v1959, %v153
      %v1965 = vmax.f32 %v1962, %v154
      %v1966 = vmax.f32 %v1960, %v155
      %1967 = vrot.lane.b32.xlu0 %v1883, 127
      %v1968 = vpop.permute.xlu0 %1967
      %1969 = vrot.lane.b32.xlu0 %v1885, 127
      %v1970 = vpop.permute.xlu0 %1969
      %1971 = vrot.lane.b32.xlu0 %v1884, 127
      %v1972 = vpop.permute.xlu0 %1971
      %1973 = vrot.lane.b32.xlu0 %v1886, 127
      %v1974 = vpop.permute.xlu0 %1973
      %v1975 = vsel %vm270, %v1968, %v1972
      %v1976 = vsel %vm270, %v1970, %v1974
      %v1977 = vsel %vm270, %v1972, %v1968
      %v1978 = vsel %vm270, %v1974, %v1970
      %v1979 = vmax.f32 %v1975, %v156
      %v1980 = vmax.f32 %v1977, %v157
      %v1981 = vmax.f32 %v1976, %v158
      %v1982 = vmax.f32 %v1978, %v159
      %v1983 = vmin.f32 %v1963, %v1979
      %v1984 = vmin.f32 %v1964, %v1980
      %v1985 = vmin.f32 %v1965, %v1981
      %v1986 = vmin.f32 %v1966, %v1982
      %v1987 = vmin.f32 %v1911, %v1947
      %v1988 = vmin.f32 %v1912, %v1948
      %v1989 = vmin.f32 %v1913, %v1949
      %v1990 = vmin.f32 %v1914, %v1950
      %v1991 = vmax.f32 %v1911, %v1947
      %v1992 = vmax.f32 %v1912, %v1948
      %v1993 = vmax.f32 %v1913, %v1949
      %v1994 = vmax.f32 %v1914, %v1950
      %v1995 = vmin.f32 %v1987, %v1983
      %v1996 = vmin.f32 %v1988, %v1984
      %v1997 = vmin.f32 %v1989, %v1985
      %v1998 = vmin.f32 %v1990, %v1986
      %v1999 = vmax.f32 %v1987, %v1983
      %v2000 = vmax.f32 %v1988, %v1984
      %v2001 = vmax.f32 %v1989, %v1985
      %v2002 = vmax.f32 %v1990, %v1986
      %v2003 = vmin.f32 %v1991, %v1999
      %v2004 = vmin.f32 %v1992, %v2000
      %v2005 = vmin.f32 %v1993, %v2001
      %v2006 = vmin.f32 %v1994, %v2002
      %v2007 = vmax.f32 %v1991, %v1999
      %v2008 = vmax.f32 %v1992, %v2000
      %v2009 = vmax.f32 %v1993, %v2001
      %v2010 = vmax.f32 %v1994, %v2002
      %v2011 = vadd.f32 %v1995, %v120
      %v2012 = vadd.f32 %v1996, %v121
      %v2013 = vadd.f32 %v1997, %v122
      %v2014 = vadd.f32 %v1998, %v123
      %v2015 = vsub.f32 %v1995, %v2003
      %v2016 = vsub.f32 %v1996, %v2004
      %v2017 = vsub.f32 %v1997, %v2005
      %v2018 = vsub.f32 %v1998, %v2006
      %v2019 = vmul.f32 %v2015, %v2015
      %v2020 = vmul.f32 %v2016, %v2016
      %v2021 = vmul.f32 %v2017, %v2017
      %v2022 = vmul.f32 %v2018, %v2018
      %v2023 = vsub.f32 %v128, %v2019
      %v2024 = vsub.f32 %v129, %v2020
      %v2025 = vsub.f32 %v130, %v2021
      %v2026 = vsub.f32 %v131, %v2022
      %v2027 = vmax.f32 %v2023, 0.0
      %v2028 = vmax.f32 %v2024, 0.0
      %v2029 = vmax.f32 %v2025, 0.0
      %v2030 = vmax.f32 %v2026, 0.0
      %v2031 = vadd.f32 %v1995, %v2003
      %v2032 = vadd.f32 %v1996, %v2004
      %v2033 = vadd.f32 %v1997, %v2005
      %v2034 = vadd.f32 %v1998, %v2006
      %v2035 = vrsqrt.pop %v2027
      %v2036 = vmul.f32 %v2027, %v2035
      %vm2037 = vcmp.eq.f32.partialorder %v2027, inf
      %v2038 = vsel %vm2037, %v2027, %v2036
      %vm2039 = vcmp.eq.f32.partialorder %v2027, 0.0
      %v2040 = vand.u32 %v2027, 2147483648
      %v2041 = vsel %vm2039, %v2040, %v2038
      %v2042 = vrsqrt.pop %v2028
      %v2043 = vmul.f32 %v2028, %v2042
      %vm2044 = vcmp.eq.f32.partialorder %v2028, inf
      %v2045 = vsel %vm2044, %v2028, %v2043
      %vm2046 = vcmp.eq.f32.partialorder %v2028, 0.0
      %v2047 = vand.u32 %v2028, 2147483648
      %v2048 = vsel %vm2046, %v2047, %v2045
      %v2049 = vrsqrt.pop %v2029
      %v2050 = vmul.f32 %v2029, %v2049
      %vm2051 = vcmp.eq.f32.partialorder %v2029, inf
      %v2052 = vsel %vm2051, %v2029, %v2050
      %vm2053 = vcmp.eq.f32.partialorder %v2029, 0.0
      %v2054 = vand.u32 %v2029, 2147483648
      %v2055 = vsel %vm2053, %v2054, %v2052
      %v2056 = vrsqrt.pop %v2030
      %v2057 = vmul.f32 %v2030, %v2056
      %vm2058 = vcmp.eq.f32.partialorder %v2030, inf
      %v2059 = vsel %vm2058, %v2030, %v2057
      %vm2060 = vcmp.eq.f32.partialorder %v2030, 0.0
      %v2061 = vand.u32 %v2030, 2147483648
      %v2062 = vsel %vm2060, %v2061, %v2059
      %v2063 = vadd.f32 %v2031, %v2041
      %v2064 = vadd.f32 %v2032, %v2048
      %v2065 = vadd.f32 %v2033, %v2055
      %v2066 = vadd.f32 %v2034, %v2062
      %v2067 = vmul.f32 %v2063, 0.5
      %v2068 = vmul.f32 %v2064, 0.5
      %v2069 = vmul.f32 %v2065, 0.5
      %v2070 = vmul.f32 %v2066, 0.5
      %v2071 = vadd.f32 %v2031, %v2007
      %v2072 = vadd.f32 %v2032, %v2008
      %v2073 = vadd.f32 %v2033, %v2009
      %v2074 = vadd.f32 %v2034, %v2010
      %v2075 = vmul.f32 %v2071, %v2071
      %v2076 = vmul.f32 %v2072, %v2072
      %v2077 = vmul.f32 %v2073, %v2073
      %v2078 = vmul.f32 %v2074, %v2074
      %v2079 = vmul.f32 %v1995, %v1995
      %v2080 = vmul.f32 %v1996, %v1996
      %v2081 = vmul.f32 %v1997, %v1997
      %v2082 = vmul.f32 %v1998, %v1998
      %v2083 = vmul.f32 %v2003, %v2003
      %v2084 = vmul.f32 %v2004, %v2004
      %v2085 = vmul.f32 %v2005, %v2005
      %v2086 = vmul.f32 %v2006, %v2006
      %v2087 = vadd.f32 %v2079, %v2083
      %v2088 = vadd.f32 %v2080, %v2084
      %v2089 = vadd.f32 %v2081, %v2085
      %v2090 = vadd.f32 %v2082, %v2086
      %v2091 = vmul.f32 %v2007, %v2007
      %v2092 = vmul.f32 %v2008, %v2008
      %v2093 = vmul.f32 %v2009, %v2009
      %v2094 = vmul.f32 %v2010, %v2010
      %v2095 = vadd.f32 %v2087, %v2091
      %v2096 = vadd.f32 %v2088, %v2092
      %v2097 = vadd.f32 %v2089, %v2093
      %v2098 = vadd.f32 %v2090, %v2094
      %v2099 = vmul.f32 %v2095, 3.0
      %v2100 = vmul.f32 %v2096, 3.0
      %v2101 = vmul.f32 %v2097, 3.0
      %v2102 = vmul.f32 %v2098, 3.0
      %v2103 = vsub.f32 %v2075, %v2099
      %v2104 = vsub.f32 %v2076, %v2100
      %v2105 = vsub.f32 %v2077, %v2101
      %v2106 = vsub.f32 %v2078, %v2102
      %v2107 = vadd.f32 %v2103, %v132
      %v2108 = vadd.f32 %v2104, %v133
      %v2109 = vadd.f32 %v2105, %v134
      %v2110 = vadd.f32 %v2106, %v135
      %v2111 = vmax.f32 %v2107, 0.0
      %v2112 = vmax.f32 %v2108, 0.0
      %v2113 = vmax.f32 %v2109, 0.0
      %v2114 = vmax.f32 %v2110, 0.0
      %v2115 = vrsqrt.pop %v2111
      %v2116 = vmul.f32 %v2111, %v2115
      %vm2117 = vcmp.eq.f32.partialorder %v2111, inf
      %v2118 = vsel %vm2117, %v2111, %v2116
      %vm2119 = vcmp.eq.f32.partialorder %v2111, 0.0
      %v2120 = vand.u32 %v2111, 2147483648
      %v2121 = vsel %vm2119, %v2120, %v2118
      %v2122 = vrsqrt.pop %v2112
      %v2123 = vmul.f32 %v2112, %v2122
      %vm2124 = vcmp.eq.f32.partialorder %v2112, inf
      %v2125 = vsel %vm2124, %v2112, %v2123
      %vm2126 = vcmp.eq.f32.partialorder %v2112, 0.0
      %v2127 = vand.u32 %v2112, 2147483648
      %v2128 = vsel %vm2126, %v2127, %v2125
      %v2129 = vrsqrt.pop %v2113
      %v2130 = vmul.f32 %v2113, %v2129
      %vm2131 = vcmp.eq.f32.partialorder %v2113, inf
      %v2132 = vsel %vm2131, %v2113, %v2130
      %vm2133 = vcmp.eq.f32.partialorder %v2113, 0.0
      %v2134 = vand.u32 %v2113, 2147483648
      %v2135 = vsel %vm2133, %v2134, %v2132
      %v2136 = vrsqrt.pop %v2114
      %v2137 = vmul.f32 %v2114, %v2136
      %vm2138 = vcmp.eq.f32.partialorder %v2114, inf
      %v2139 = vsel %vm2138, %v2114, %v2137
      %vm2140 = vcmp.eq.f32.partialorder %v2114, 0.0
      %v2141 = vand.u32 %v2114, 2147483648
      %v2142 = vsel %vm2140, %v2141, %v2139
      %v2143 = vadd.f32 %v2071, %v2121
      %v2144 = vadd.f32 %v2072, %v2128
      %v2145 = vadd.f32 %v2073, %v2135
      %v2146 = vadd.f32 %v2074, %v2142
      %v2147 = vmul.f32 %v2143, 0.33333334
      %v2148 = vmul.f32 %v2144, 0.33333334
      %v2149 = vmul.f32 %v2145, 0.33333334
      %v2150 = vmul.f32 %v2146, 0.33333334
      %vm2151 = vcmp.le.f32.partialorder %v2011, %v2003
      %vm2152 = vcmp.le.f32.partialorder %v2012, %v2004
      %vm2153 = vcmp.le.f32.partialorder %v2013, %v2005
      %vm2154 = vcmp.le.f32.partialorder %v2014, %v2006
      %vm2155 = vcmp.le.f32.partialorder %v2067, %v2007
      %vm2156 = vcmp.le.f32.partialorder %v2068, %v2008
      %vm2157 = vcmp.le.f32.partialorder %v2069, %v2009
      %vm2158 = vcmp.le.f32.partialorder %v2070, %v2010
      %v2159 = vsel %vm2155, %v2067, %v2147
      %v2160 = vsel %vm2156, %v2068, %v2148
      %v2161 = vsel %vm2157, %v2069, %v2149
      %v2162 = vsel %vm2158, %v2070, %v2150
      %v2163 = vsel %vm2151, %v2011, %v2159
      %v2164 = vsel %vm2152, %v2012, %v2160
      %v2165 = vsel %vm2153, %v2013, %v2161
      %v2166 = vsel %vm2154, %v2014, %v2162
      %v2167 = vmin.f32 %v1883, %v2163
      %v2168 = vmin.f32 %v1884, %v2164
      %v2169 = vmin.f32 %v1885, %v2165
      %v2170 = vmin.f32 %v1886, %v2166
      %v2171 = vrot.slane %v2167, 7
      %v2172 = vrot.slane %v2168, 7
      %v2173 = vrot.slane %v2169, 7
      %v2174 = vrot.slane %v2170, 7
      %v2175 = vsel %vm179, %v2171, %v2173
      %v2176 = vsel %vm179, %v2172, %v2174
      %v2177 = vsel %vm179, %v2173, %v2171
      %v2178 = vsel %vm179, %v2174, %v2172
      %v2179 = vmax.f32 %v2177, %v136
      %v2180 = vmax.f32 %v2178, %v137
      %v2181 = vmax.f32 %v2175, %v138
      %v2182 = vmax.f32 %v2176, %v139
      %v2183 = vrot.slane %v2167, 1
      %v2184 = vrot.slane %v2168, 1
      %v2185 = vrot.slane %v2169, 1
      %v2186 = vrot.slane %v2170, 1
      %v2187 = vsel %vm192, %v2183, %v2185
      %v2188 = vsel %vm192, %v2184, %v2186
      %v2189 = vsel %vm192, %v2185, %v2183
      %v2190 = vsel %vm192, %v2186, %v2184
      %v2191 = vmax.f32 %v2187, %v140
      %v2192 = vmax.f32 %v2188, %v141
      %v2193 = vmax.f32 %v2189, %v142
      %v2194 = vmax.f32 %v2190, %v143
      %v2195 = vmin.f32 %v2179, %v2191
      %v2196 = vmin.f32 %v2180, %v2192
      %v2197 = vmin.f32 %v2181, %v2193
      %v2198 = vmin.f32 %v2182, %v2194
      %2199 = vrot.lane.b32.xlu0 %v2167, 16
      %v2200 = vpop.permute.xlu0 %2199
      %2201 = vrot.lane.b32.xlu0 %v2169, 16
      %v2202 = vpop.permute.xlu0 %2201
      %2203 = vrot.lane.b32.xlu0 %v2168, 16
      %v2204 = vpop.permute.xlu0 %2203
      %2205 = vrot.lane.b32.xlu0 %v2170, 16
      %v2206 = vpop.permute.xlu0 %2205
      %v2207 = vsel %vm215, %v2200, %v2204
      %v2208 = vsel %vm215, %v2202, %v2206
      %v2209 = vsel %vm215, %v2204, %v2200
      %v2210 = vsel %vm215, %v2206, %v2202
      %v2211 = vmax.f32 %v2209, %v144
      %v2212 = vmax.f32 %v2207, %v145
      %v2213 = vmax.f32 %v2210, %v146
      %v2214 = vmax.f32 %v2208, %v147
      %2215 = vrot.lane.b32.xlu0 %v2167, 112
      %v2216 = vpop.permute.xlu0 %2215
      %2217 = vrot.lane.b32.xlu0 %v2169, 112
      %v2218 = vpop.permute.xlu0 %2217
      %2219 = vrot.lane.b32.xlu0 %v2168, 112
      %v2220 = vpop.permute.xlu0 %2219
      %2221 = vrot.lane.b32.xlu0 %v2170, 112
      %v2222 = vpop.permute.xlu0 %2221
      %v2223 = vsel %vm232, %v2216, %v2220
      %v2224 = vsel %vm232, %v2218, %v2222
      %v2225 = vsel %vm232, %v2220, %v2216
      %v2226 = vsel %vm232, %v2222, %v2218
      %v2227 = vmax.f32 %v2223, %v148
      %v2228 = vmax.f32 %v2225, %v149
      %v2229 = vmax.f32 %v2224, %v150
      %v2230 = vmax.f32 %v2226, %v151
      %v2231 = vmin.f32 %v2211, %v2227
      %v2232 = vmin.f32 %v2212, %v2228
      %v2233 = vmin.f32 %v2213, %v2229
      %v2234 = vmin.f32 %v2214, %v2230
      %2235 = vrot.lane.b32.xlu0 %v2167, 1
      %v2236 = vpop.permute.xlu0 %2235
      %2237 = vrot.lane.b32.xlu0 %v2169, 1
      %v2238 = vpop.permute.xlu0 %2237
      %2239 = vrot.lane.b32.xlu0 %v2168, 1
      %v2240 = vpop.permute.xlu0 %2239
      %2241 = vrot.lane.b32.xlu0 %v2170, 1
      %v2242 = vpop.permute.xlu0 %2241
      %v2243 = vsel %vm253, %v2236, %v2240
      %v2244 = vsel %vm253, %v2238, %v2242
      %v2245 = vsel %vm253, %v2240, %v2236
      %v2246 = vsel %vm253, %v2242, %v2238
      %v2247 = vmax.f32 %v2245, %v152
      %v2248 = vmax.f32 %v2243, %v153
      %v2249 = vmax.f32 %v2246, %v154
      %v2250 = vmax.f32 %v2244, %v155
      %2251 = vrot.lane.b32.xlu0 %v2167, 127
      %v2252 = vpop.permute.xlu0 %2251
      %2253 = vrot.lane.b32.xlu0 %v2169, 127
      %v2254 = vpop.permute.xlu0 %2253
      %2255 = vrot.lane.b32.xlu0 %v2168, 127
      %v2256 = vpop.permute.xlu0 %2255
      %2257 = vrot.lane.b32.xlu0 %v2170, 127
      %v2258 = vpop.permute.xlu0 %2257
      %v2259 = vsel %vm270, %v2252, %v2256
      %v2260 = vsel %vm270, %v2254, %v2258
      %v2261 = vsel %vm270, %v2256, %v2252
      %v2262 = vsel %vm270, %v2258, %v2254
      %v2263 = vmax.f32 %v2259, %v156
      %v2264 = vmax.f32 %v2261, %v157
      %v2265 = vmax.f32 %v2260, %v158
      %v2266 = vmax.f32 %v2262, %v159
      %v2267 = vmin.f32 %v2247, %v2263
      %v2268 = vmin.f32 %v2248, %v2264
      %v2269 = vmin.f32 %v2249, %v2265
      %v2270 = vmin.f32 %v2250, %v2266
      %v2271 = vmin.f32 %v2195, %v2231
      %v2272 = vmin.f32 %v2196, %v2232
      %v2273 = vmin.f32 %v2197, %v2233
      %v2274 = vmin.f32 %v2198, %v2234
      %v2275 = vmax.f32 %v2195, %v2231
      %v2276 = vmax.f32 %v2196, %v2232
      %v2277 = vmax.f32 %v2197, %v2233
      %v2278 = vmax.f32 %v2198, %v2234
      %v2279 = vmin.f32 %v2271, %v2267
      %v2280 = vmin.f32 %v2272, %v2268
      %v2281 = vmin.f32 %v2273, %v2269
      %v2282 = vmin.f32 %v2274, %v2270
      %v2283 = vmax.f32 %v2271, %v2267
      %v2284 = vmax.f32 %v2272, %v2268
      %v2285 = vmax.f32 %v2273, %v2269
      %v2286 = vmax.f32 %v2274, %v2270
      %v2287 = vmin.f32 %v2275, %v2283
      %v2288 = vmin.f32 %v2276, %v2284
      %v2289 = vmin.f32 %v2277, %v2285
      %v2290 = vmin.f32 %v2278, %v2286
      %v2291 = vmax.f32 %v2275, %v2283
      %v2292 = vmax.f32 %v2276, %v2284
      %v2293 = vmax.f32 %v2277, %v2285
      %v2294 = vmax.f32 %v2278, %v2286
      %v2295 = vadd.f32 %v2279, %v120
      %v2296 = vadd.f32 %v2280, %v121
      %v2297 = vadd.f32 %v2281, %v122
      %v2298 = vadd.f32 %v2282, %v123
      %v2299 = vsub.f32 %v2279, %v2287
      %v2300 = vsub.f32 %v2280, %v2288
      %v2301 = vsub.f32 %v2281, %v2289
      %v2302 = vsub.f32 %v2282, %v2290
      %v2303 = vmul.f32 %v2299, %v2299
      %v2304 = vmul.f32 %v2300, %v2300
      %v2305 = vmul.f32 %v2301, %v2301
      %v2306 = vmul.f32 %v2302, %v2302
      %v2307 = vsub.f32 %v128, %v2303
      %v2308 = vsub.f32 %v129, %v2304
      %v2309 = vsub.f32 %v130, %v2305
      %v2310 = vsub.f32 %v131, %v2306
      %v2311 = vmax.f32 %v2307, 0.0
      %v2312 = vmax.f32 %v2308, 0.0
      %v2313 = vmax.f32 %v2309, 0.0
      %v2314 = vmax.f32 %v2310, 0.0
      %v2315 = vadd.f32 %v2279, %v2287
      %v2316 = vadd.f32 %v2280, %v2288
      %v2317 = vadd.f32 %v2281, %v2289
      %v2318 = vadd.f32 %v2282, %v2290
      %v2319 = vrsqrt.pop %v2311
      %v2320 = vmul.f32 %v2311, %v2319
      %vm2321 = vcmp.eq.f32.partialorder %v2311, inf
      %v2322 = vsel %vm2321, %v2311, %v2320
      %vm2323 = vcmp.eq.f32.partialorder %v2311, 0.0
      %v2324 = vand.u32 %v2311, 2147483648
      %v2325 = vsel %vm2323, %v2324, %v2322
      %v2326 = vrsqrt.pop %v2312
      %v2327 = vmul.f32 %v2312, %v2326
      %vm2328 = vcmp.eq.f32.partialorder %v2312, inf
      %v2329 = vsel %vm2328, %v2312, %v2327
      %vm2330 = vcmp.eq.f32.partialorder %v2312, 0.0
      %v2331 = vand.u32 %v2312, 2147483648
      %v2332 = vsel %vm2330, %v2331, %v2329
      %v2333 = vrsqrt.pop %v2313
      %v2334 = vmul.f32 %v2313, %v2333
      %vm2335 = vcmp.eq.f32.partialorder %v2313, inf
      %v2336 = vsel %vm2335, %v2313, %v2334
      %vm2337 = vcmp.eq.f32.partialorder %v2313, 0.0
      %v2338 = vand.u32 %v2313, 2147483648
      %v2339 = vsel %vm2337, %v2338, %v2336
      %v2340 = vrsqrt.pop %v2314
      %v2341 = vmul.f32 %v2314, %v2340
      %vm2342 = vcmp.eq.f32.partialorder %v2314, inf
      %v2343 = vsel %vm2342, %v2314, %v2341
      %vm2344 = vcmp.eq.f32.partialorder %v2314, 0.0
      %v2345 = vand.u32 %v2314, 2147483648
      %v2346 = vsel %vm2344, %v2345, %v2343
      %v2347 = vadd.f32 %v2315, %v2325
      %v2348 = vadd.f32 %v2316, %v2332
      %v2349 = vadd.f32 %v2317, %v2339
      %v2350 = vadd.f32 %v2318, %v2346
      %v2351 = vmul.f32 %v2347, 0.5
      %v2352 = vmul.f32 %v2348, 0.5
      %v2353 = vmul.f32 %v2349, 0.5
      %v2354 = vmul.f32 %v2350, 0.5
      %v2355 = vadd.f32 %v2315, %v2291
      %v2356 = vadd.f32 %v2316, %v2292
      %v2357 = vadd.f32 %v2317, %v2293
      %v2358 = vadd.f32 %v2318, %v2294
      %v2359 = vmul.f32 %v2355, %v2355
      %v2360 = vmul.f32 %v2356, %v2356
      %v2361 = vmul.f32 %v2357, %v2357
      %v2362 = vmul.f32 %v2358, %v2358
      %v2363 = vmul.f32 %v2279, %v2279
      %v2364 = vmul.f32 %v2280, %v2280
      %v2365 = vmul.f32 %v2281, %v2281
      %v2366 = vmul.f32 %v2282, %v2282
      %v2367 = vmul.f32 %v2287, %v2287
      %v2368 = vmul.f32 %v2288, %v2288
      %v2369 = vmul.f32 %v2289, %v2289
      %v2370 = vmul.f32 %v2290, %v2290
      %v2371 = vadd.f32 %v2363, %v2367
      %v2372 = vadd.f32 %v2364, %v2368
      %v2373 = vadd.f32 %v2365, %v2369
      %v2374 = vadd.f32 %v2366, %v2370
      %v2375 = vmul.f32 %v2291, %v2291
      %v2376 = vmul.f32 %v2292, %v2292
      %v2377 = vmul.f32 %v2293, %v2293
      %v2378 = vmul.f32 %v2294, %v2294
      %v2379 = vadd.f32 %v2371, %v2375
      %v2380 = vadd.f32 %v2372, %v2376
      %v2381 = vadd.f32 %v2373, %v2377
      %v2382 = vadd.f32 %v2374, %v2378
      %v2383 = vmul.f32 %v2379, 3.0
      %v2384 = vmul.f32 %v2380, 3.0
      %v2385 = vmul.f32 %v2381, 3.0
      %v2386 = vmul.f32 %v2382, 3.0
      %v2387 = vsub.f32 %v2359, %v2383
      %v2388 = vsub.f32 %v2360, %v2384
      %v2389 = vsub.f32 %v2361, %v2385
      %v2390 = vsub.f32 %v2362, %v2386
      %v2391 = vadd.f32 %v2387, %v132
      %v2392 = vadd.f32 %v2388, %v133
      %v2393 = vadd.f32 %v2389, %v134
      %v2394 = vadd.f32 %v2390, %v135
      %v2395 = vmax.f32 %v2391, 0.0
      %v2396 = vmax.f32 %v2392, 0.0
      %v2397 = vmax.f32 %v2393, 0.0
      %v2398 = vmax.f32 %v2394, 0.0
      %v2399 = vrsqrt.pop %v2395
      %v2400 = vmul.f32 %v2395, %v2399
      %vm2401 = vcmp.eq.f32.partialorder %v2395, inf
      %v2402 = vsel %vm2401, %v2395, %v2400
      %vm2403 = vcmp.eq.f32.partialorder %v2395, 0.0
      %v2404 = vand.u32 %v2395, 2147483648
      %v2405 = vsel %vm2403, %v2404, %v2402
      %v2406 = vrsqrt.pop %v2396
      %v2407 = vmul.f32 %v2396, %v2406
      %vm2408 = vcmp.eq.f32.partialorder %v2396, inf
      %v2409 = vsel %vm2408, %v2396, %v2407
      %vm2410 = vcmp.eq.f32.partialorder %v2396, 0.0
      %v2411 = vand.u32 %v2396, 2147483648
      %v2412 = vsel %vm2410, %v2411, %v2409
      %v2413 = vrsqrt.pop %v2397
      %v2414 = vmul.f32 %v2397, %v2413
      %vm2415 = vcmp.eq.f32.partialorder %v2397, inf
      %v2416 = vsel %vm2415, %v2397, %v2414
      %vm2417 = vcmp.eq.f32.partialorder %v2397, 0.0
      %v2418 = vand.u32 %v2397, 2147483648
      %v2419 = vsel %vm2417, %v2418, %v2416
      %v2420 = vrsqrt.pop %v2398
      %v2421 = vmul.f32 %v2398, %v2420
      %vm2422 = vcmp.eq.f32.partialorder %v2398, inf
      %v2423 = vsel %vm2422, %v2398, %v2421
      %vm2424 = vcmp.eq.f32.partialorder %v2398, 0.0
      %v2425 = vand.u32 %v2398, 2147483648
      %v2426 = vsel %vm2424, %v2425, %v2423
      %v2427 = vadd.f32 %v2355, %v2405
      %v2428 = vadd.f32 %v2356, %v2412
      %v2429 = vadd.f32 %v2357, %v2419
      %v2430 = vadd.f32 %v2358, %v2426
      %v2431 = vmul.f32 %v2427, 0.33333334
      %v2432 = vmul.f32 %v2428, 0.33333334
      %v2433 = vmul.f32 %v2429, 0.33333334
      %v2434 = vmul.f32 %v2430, 0.33333334
      %vm2435 = vcmp.le.f32.partialorder %v2295, %v2287
      %vm2436 = vcmp.le.f32.partialorder %v2296, %v2288
      %vm2437 = vcmp.le.f32.partialorder %v2297, %v2289
      %vm2438 = vcmp.le.f32.partialorder %v2298, %v2290
      %vm2439 = vcmp.le.f32.partialorder %v2351, %v2291
      %vm2440 = vcmp.le.f32.partialorder %v2352, %v2292
      %vm2441 = vcmp.le.f32.partialorder %v2353, %v2293
      %vm2442 = vcmp.le.f32.partialorder %v2354, %v2294
      %v2443 = vsel %vm2439, %v2351, %v2431
      %v2444 = vsel %vm2440, %v2352, %v2432
      %v2445 = vsel %vm2441, %v2353, %v2433
      %v2446 = vsel %vm2442, %v2354, %v2434
      %v2447 = vsel %vm2435, %v2295, %v2443
      %v2448 = vsel %vm2436, %v2296, %v2444
      %v2449 = vsel %vm2437, %v2297, %v2445
      %v2450 = vsel %vm2438, %v2298, %v2446
      %v2451 = vmin.f32 %v2167, %v2447
      %v2452 = vmin.f32 %v2168, %v2448
      %v2453 = vmin.f32 %v2169, %v2449
      %v2454 = vmin.f32 %v2170, %v2450
      %v2455 = vsub.f32 %v2451, %v161
      %v2456 = vsub.f32 %v2452, %v162
      %v2457 = vsub.f32 %v2453, %v163
      %v2458 = vsub.f32 %v2454, %v164
      %v2459 = vand.u32 2147483647, %v2455
      %v2460 = vand.u32 2147483647, %v2456
      %v2461 = vand.u32 2147483647, %v2457
      %v2462 = vand.u32 2147483647, %v2458
      %v2463 = vmax.f32 %v2459, %v2460
      %v2464 = vmax.f32 %v2461, %v2462
      %v2465 = vmax.f32 %v2463, %v2464
      %2466 = vmax.xlane.f32.xlu0 %v2465
      %v2467 = vpop.xlane.xlu0 %2466
      %v2468 = vrot.slane %v2467, 4
      %v2469 = vmax.f32 %v2467, %v2468
      %v2470 = vrot.slane %v2469, 2
      %v2471 = vmax.f32 %v2469, %v2470
      %v2472 = vrot.slane %v2471, 1
      %v2473 = vmax.f32 %v2471, %v2472
      %s2474 = vtos %v2473
      %s2475 = sadd.s32 %s166, 1
    $region62: #{tpu_custom_call.1} parent=1 // loop_footer
      _
    $region63: #{tpu_custom_call.1} parent=1 // loop_footer_branch
      %160 = sbr.rel target = $region59
    $region64: #{tpu_custom_call.1} parent=1 // loop_exit
      _
    %2476 = vst [vmem:[#allocation13] sm:$0xff] %v161
    %2477 = vst [vmem:[#allocation13 + $0x8] sm:$0xff] %v162
    %2478 = vst [vmem:[#allocation13 + $0x10] sm:$0xff] %v163
    %2479 = vst [vmem:[#allocation13 + $0x18] sm:$0xff] %v164
    // Predicated region
    $region65: #{tpu_custom_call.1} parent=1 // pred_check
      _
    $region66: #{tpu_custom_call.1} parent=1 // pred_check_branch
      %2481 = sbr.rel (0) target = $region68
    $region67: #{tpu_custom_call.1} parent=1 // pred_region
      %s2483 = ssub.s32 512, 512
      %2484 = vsyncadd [#allocation4], %s2483
      %s2485 = sshll.u32 [#allocation13], 4
      %s2486 = int_to_ptr.vmem [resolvable:$true] %s2485
      %2491 = dma.vmem_to_hbm [thread:$0]  %s2486, 512, %s8, [#allocation4], 256, 256, 16
    $region68: #{tpu_custom_call.1} parent=1 // pred_fallthru
      _
    // Predicated region
    $region69: #{tpu_custom_call.1} parent=1 // pred_check
      _
    $region70: #{tpu_custom_call.1} parent=1 // pred_check_branch
      %2493 = sbr.rel (0) target = $region72
    $region71: #{tpu_custom_call.1} parent=1 // pred_region
      %2494 = dma.done [#allocation4], 512
    $region72: #{tpu_custom_call.1} parent=1 // pred_fallthru
      _
    %2495 = vsyncpa [#allocation3], 1
    %2496 = vsyncpa [#allocation6], 1
    %2497 = vsyncpa [#allocation9], 1
    %2498 = vsyncpa [#allocation12], 1
    %2499 = vsyncpa [#allocation4], 1

</llo_original>
